<compile_context>
chip_gen: v5e
topology: v5e:2x2
jax: 0.10.0
libtpu: 0.0.40
codegen_flags: <defaults>
</compile_context>

<pallas_src>
import functools

import numpy as np
import jax
import jax.numpy as jnp
from jax.experimental import pallas as pl
from jax.experimental.pallas import tpu as pltpu

C = 64          # DCAB is hard-wired to 64 channels
KH = KW = 3
NTAPS = KH * KW
BN_EPS = 1e-5


def _bilinear_matrix(out_size, in_size):
    """Row operator of F.interpolate(mode='bilinear', align_corners=False)."""
    if in_size == 1:
        return np.ones((out_size, 1), np.float32)
    scale = in_size / out_size
    src = (np.arange(out_size) + 0.5) * scale - 0.5
    src = np.clip(src, 0.0, in_size - 1)
    i0 = np.floor(src).astype(np.int64)
    i1 = np.minimum(i0 + 1, in_size - 1)
    frac = (src - i0).astype(np.float32)
    A = np.zeros((out_size, in_size), np.float32)
    A[np.arange(out_size), i0] += 1.0 - frac
    A[np.arange(out_size), i1] += frac
    return A


def _dcab_kernel(H1, W1, H4, W4,
                 x1_ref, x4_ref, w1_ref, w4_ref, b_ref, kh_ref, aw_ref,
                 out_ref, xp1_ref, xp4_ref, slab_ref):
    def conv_bn_relu(x_ref, xp_ref, w_ref, bias, H, W):
        # Zero-pad into VMEM scratch (pad handled in-kernel, not in HBM).
        xp_ref[...] = jnp.zeros_like(xp_ref)
        xp_ref[1:H + 1, 1:W + 1, :] = x_ref[0]
        # im2col: build a (H*W, 9*C) bf16 slab in VMEM from Ref slices.
        M = H * W
        for t in range(NTAPS):
            dy, dx = t // KW, t % KW
            patch = xp_ref[dy:dy + H, dx:dx + W, :]          # (H, W, C) bf16
            slab_ref[0:M, t * C:(t + 1) * C] = patch.reshape(M, C)
        # Single K=576 MXU matmul; BN scale already folded into w.
        acc = jnp.dot(slab_ref[0:M, :], w_ref[...],
                      preferred_element_type=jnp.float32)     # (M, C) f32
        return jnp.maximum(acc + bias, 0.0)                   # bias + ReLU

    # --- reduce4 branch + bilinear upsample to (H1, W1) ---
    y4 = conv_bn_relu(x4_ref, xp4_ref, w4_ref, b_ref[1:2, :], H4, W4)  # (H4*W4, C)
    # H-direction: kron(A_h, I_W4) keeps the flat (rows, C) layout (no transposes).
    t = jnp.dot(kh_ref[...], y4, preferred_element_type=jnp.float32)   # (H1*W4, C)
    # W-direction: FLOP-ideal batched matmul over the H1 output rows.
    aw_b = jnp.broadcast_to(aw_ref[...], (H1, W1, W4))                  # (H1, W1, W4)
    up = jax.lax.dot_general(
        aw_b, t.reshape(H1, W4, C),
        dimension_numbers=(((2,), (1,)), ((0,), (0,))),
        preferred_element_type=jnp.float32)                             # (H1, W1, C)
    up = up.reshape(H1 * W1, C)

    # --- reduce1 branch ---
    y1 = conv_bn_relu(x1_ref, xp1_ref, w1_ref, b_ref[0:1, :], H1, W1)   # (H1*W1, C)

    # Lane-dense store: pack both results channel-wise (2*C = 128 lanes).
    packed = jnp.concatenate([up, y1], axis=-1)                         # (H1*W1, 2C)
    out_ref[0] = packed.reshape(H1, W1, 2 * C)
    # TODO(synk): DCAB.forward calls `self.dcga(x4, x1)` but only `self.cga =
    # CGAFusion(64)` exists and CGAFusion's definition is not provided in the
    # reference, so the fusion step is omitted; both fusion operands (upsampled
    # reduce4(x4) and reduce1(x1)) are returned instead of a fused output.


@jax.jit
def dcab_forward(x4, x1, w4f, w1f, bias):
    """x4: (N, H4, W4, 64), x1: (N, H1, W1, 64) float32 NHWC.

    w4f / w1f: (9*64, 64) folded conv weights (see fold_params), bf16.
    bias: (2, 64) f32, rows [bias_reduce1, bias_reduce4].
    Returns (upsampled reduce4(x4), reduce1(x1)), both (N, H1, W1, 64) f32.
    """
    N, H1, W1, _ = x1.shape
    _, H4, W4, _ = x4.shape

    # Bilinear operators are trace-time constants under jit.
    a_h = _bilinear_matrix(H1, H4)                                      # (H1, H4)
    a_w = jnp.asarray(_bilinear_matrix(W1, W4))                         # (W1, W4)
    kh = jnp.asarray(np.kron(a_h, np.eye(W4, dtype=np.float32)))        # (H1*W4, H4*W4)

    x1b = x1.astype(jnp.bfloat16)
    x4b = x4.astype(jnp.bfloat16)

    kernel = functools.partial(_dcab_kernel, H1, W1, H4, W4)
    packed = pl.pallas_call(
        kernel,
        out_shape=jax.ShapeDtypeStruct((N, H1, W1, 2 * C), jnp.float32),
        grid_spec=pltpu.PrefetchScalarGridSpec(
            num_scalar_prefetch=0,
            grid=(N,),
            in_specs=[
                pl.BlockSpec((1, H1, W1, C), lambda n: (n, 0, 0, 0)),
                pl.BlockSpec((1, H4, W4, C), lambda n: (n, 0, 0, 0)),
                # Grid-invariant operands: constant index_map -> fetched once.
                pl.BlockSpec((NTAPS * C, C), lambda n: (0, 0)),
                pl.BlockSpec((NTAPS * C, C), lambda n: (0, 0)),
                pl.BlockSpec((2, C), lambda n: (0, 0)),
                pl.BlockSpec((H1 * W4, H4 * W4), lambda n: (0, 0)),
                pl.BlockSpec((W1, W4), lambda n: (0, 0)),
            ],
            out_specs=pl.BlockSpec((1, H1, W1, 2 * C), lambda n: (n, 0, 0, 0)),
            scratch_shapes=[
                pltpu.VMEM((H1 + 2, W1 + 2, C), jnp.bfloat16),   # padded x1
                pltpu.VMEM((H4 + 2, W4 + 2, C), jnp.bfloat16),   # padded x4
                pltpu.VMEM((H1 * W1, NTAPS * C), jnp.bfloat16),  # im2col slab
            ],
        ),
        compiler_params=pltpu.CompilerParams(
            dimension_semantics=("parallel",),
            vmem_limit_bytes=32 * 1024 * 1024,
        ),
    )(x1b, x4b, w1f, w4f, bias, kh, a_w)

    out4_up = packed[..., :C]
    out1 = packed[..., C:]
    return out4_up, out1


def _init_torch_like_params(key):
    """Random parameters in PyTorch layout for the two CBR blocks."""
    k1w, k1b, k4w, k4b = jax.random.split(key, 4)
    fan_in = C * KH * KW

    def conv_w(k):  # PyTorch Conv2d weight layout (Cout, Cin, kh, kw)
        return jax.random.normal(k, (C, C, KH, KW), jnp.float32) / np.sqrt(fan_in)

    def bn(k):      # (gamma, beta, running_mean, running_var)
        kg, kb, km, kv = jax.random.split(k, 4)
        gamma = 1.0 + 0.1 * jax.random.normal(kg, (C,), jnp.float32)
        beta = 0.1 * jax.random.normal(kb, (C,), jnp.float32)
        mean = 0.1 * jax.random.normal(km, (C,), jnp.float32)
        var = jax.random.uniform(kv, (C,), jnp.float32, minval=0.5, maxval=1.5)
        return gamma, beta, mean, var

    return {"reduce1": {"w": conv_w(k1w), "bn": bn(k1b)},
            "reduce4": {"w": conv_w(k4w), "bn": bn(k4b)}}


def fold_params(params):
    """Fold eval-mode BatchNorm into the conv weights (CBR uses bias=False).

    PyTorch conv weight (Cout, Cin, kh, kw) -> (kh*kw*Cin, Cout) bf16 with the BN
    scale folded into the output channels; bias rows are (beta - mean*scale), f32.
    Row ordering of the folded weight matches the kernel's im2col slab:
    K index = (dy*3 + dx)*C + cin.
    """
    def fold(w, bn_params):
        gamma, beta, mean, var = bn_params
        scale = gamma / jnp.sqrt(var + BN_EPS)          # (Cout,)
        w = jnp.transpose(w, (2, 3, 1, 0))              # (kh, kw, Cin, Cout)
        w = w * scale                                    # broadcast over Cout
        w = w.reshape(KH * KW * C, C).astype(jnp.bfloat16)
        bias = beta - mean * scale
        return w, bias

    w1f, b1 = fold(params["reduce1"]["w"], params["reduce1"]["bn"])
    w4f, b4 = fold(params["reduce4"]["w"], params["reduce4"]["bn"])
    bias = jnp.stack([b1, b4], axis=0)                  # rows: [bias1, bias4]
    return w4f, w1f, bias


if __name__ == "__main__":
    key = jax.random.PRNGKey(0)
    kx1, kx4, kp = jax.random.split(key, 3)

    N, H1, W1 = 2, 16, 16          # high-res branch (x1)
    H4, W4 = 8, 8                  # low-res branch (x4), upsampled to (H1, W1)

    x1 = jax.random.normal(kx1, (N, H1, W1, C), jnp.float32)   # NHWC
    x4 = jax.random.normal(kx4, (N, H4, W4, C), jnp.float32)   # NHWC
    w4f, w1f, bias = fold_params(_init_torch_like_params(kp))

    out4_up, out1 = jax.block_until_ready(dcab_forward(x4, x1, w4f, w1f, bias))
    assert out4_up.shape == (N, H1, W1, C) and out1.shape == (N, H1, W1, C)
    assert bool(jnp.isfinite(out4_up).all()) and bool(jnp.isfinite(out1).all())
    print("KERNEL_OK")
</pallas_src>

<mosaic_0001>
module attributes {stable_mosaic.version = 11 : i64} {
  func.func @_dcab_kernel(%arg0: i32, %arg1: memref<1x16x16x64xbf16, #tpu.memory_space<vmem>>, %arg2: memref<1x8x8x64xbf16, #tpu.memory_space<vmem>>, %arg3: memref<576x64xbf16, #tpu.memory_space<vmem>>, %arg4: memref<576x64xbf16, #tpu.memory_space<vmem>>, %arg5: memref<2x64xf32, #tpu.memory_space<vmem>>, %arg6: memref<128x64xf32, #tpu.memory_space<vmem>>, %arg7: memref<16x8xf32, #tpu.memory_space<vmem>>, %arg8: memref<1x16x16x128xf32, #tpu.memory_space<vmem>>, %arg9: memref<18x18x64xbf16, #tpu.memory_space<vmem>>, %arg10: memref<10x10x64xbf16, #tpu.memory_space<vmem>>, %arg11: memref<256x576xbf16, #tpu.memory_space<vmem>>) attributes {dimension_semantics = [#tpu.dimension_semantics<parallel>], iteration_bounds = array<i64: 2>, scalar_prefetch = 0 : i64, scratch_operands = 3 : i64, tpu.core_type = #tpu.core_type<tc>, window_params = [{transform_indices = @transform_0, window_bounds = array<i64: 1, 16, 16, 64>}, {transform_indices = @transform_1, window_bounds = array<i64: 1, 8, 8, 64>}, {pipeline_mode = #tpu.pipeline_mode<synchronous>, transform_indices = @transform_2, window_bounds = array<i64: 576, 64>}, {pipeline_mode = #tpu.pipeline_mode<synchronous>, transform_indices = @transform_3, window_bounds = array<i64: 576, 64>}, {pipeline_mode = #tpu.pipeline_mode<synchronous>, transform_indices = @transform_4, window_bounds = array<i64: 2, 64>}, {pipeline_mode = #tpu.pipeline_mode<synchronous>, transform_indices = @transform_5, window_bounds = array<i64: 128, 64>}, {pipeline_mode = #tpu.pipeline_mode<synchronous>, transform_indices = @transform_6, window_bounds = array<i64: 16, 8>}, {transform_indices = @transform_7, window_bounds = array<i64: 1, 16, 16, 128>}]} {
    %c1 = arith.constant 1 : index
    %c0 = arith.constant 0 : index
    %0 = vector.load %arg5[%c1, %c0] : memref<2x64xf32, #tpu.memory_space<vmem>>, vector<1x64xf32>
    %cst = arith.constant 0.000000e+00 : bf16
    %1 = vector.broadcast %cst : bf16 to vector<10x10x64xbf16>
    %c0_0 = arith.constant 0 : index
    %c0_1 = arith.constant 0 : index
    %c0_2 = arith.constant 0 : index
    %2 = vector.load %arg10[%c0_0, %c0_1, %c0_2] : memref<10x10x64xbf16, #tpu.memory_space<vmem>>, vector<10x10x64xbf16>
    tpu.vector_store %arg10[%c0_0, %c0_1, %c0_2], %1 {strides = array<i32>} : memref<10x10x64xbf16, #tpu.memory_space<vmem>>, vector<10x10x64xbf16>,
    %c0_3 = arith.constant 0 : index
    %c0_4 = arith.constant 0 : index
    %c0_5 = arith.constant 0 : index
    %c0_6 = arith.constant 0 : index
    %3 = vector.load %arg2[%c0_3, %c0_4, %c0_5, %c0_6] : memref<1x8x8x64xbf16, #tpu.memory_space<vmem>>, vector<1x8x8x64xbf16>
    %4 = vector.shape_cast %3 : vector<1x8x8x64xbf16> to vector<8x8x64xbf16>
    %c1_7 = arith.constant 1 : index
    %c1_8 = arith.constant 1 : index
    %c0_9 = arith.constant 0 : index
    %5 = vector.load %arg10[%c1_7, %c1_8, %c0_9] : memref<10x10x64xbf16, #tpu.memory_space<vmem>>, vector<8x8x64xbf16>
    tpu.vector_store %arg10[%c1_7, %c1_8, %c0_9], %4 {strides = array<i32>} : memref<10x10x64xbf16, #tpu.memory_space<vmem>>, vector<8x8x64xbf16>,
    %c0_10 = arith.constant 0 : index
    %c0_11 = arith.constant 0 : index
    %c0_12 = arith.constant 0 : index
    %6 = vector.load %arg10[%c0_10, %c0_11, %c0_12] : memref<10x10x64xbf16, #tpu.memory_space<vmem>>, vector<8x8x64xbf16>
    %7 = vector.shape_cast %6 : vector<8x8x64xbf16> to vector<64x64xbf16>
    %c0_13 = arith.constant 0 : index
    %c0_14 = arith.constant 0 : index
    %8 = vector.load %arg11[%c0_13, %c0_14] : memref<256x576xbf16, #tpu.memory_space<vmem>>, vector<64x64xbf16>
    tpu.vector_store %arg11[%c0_13, %c0_14], %7 {strides = array<i32>} : memref<256x576xbf16, #tpu.memory_space<vmem>>, vector<64x64xbf16>,
    %c0_15 = arith.constant 0 : index
    %c1_16 = arith.constant 1 : index
    %c0_17 = arith.constant 0 : index
    %9 = vector.load %arg10[%c0_15, %c1_16, %c0_17] : memref<10x10x64xbf16, #tpu.memory_space<vmem>>, vector<8x8x64xbf16>
    %10 = vector.shape_cast %9 : vector<8x8x64xbf16> to vector<64x64xbf16>
    %c0_18 = arith.constant 0 : index
    %c64 = arith.constant 64 : index
    %11 = vector.load %arg11[%c0_18, %c64] : memref<256x576xbf16, #tpu.memory_space<vmem>>, vector<64x64xbf16>
    tpu.vector_store %arg11[%c0_18, %c64], %10 {strides = array<i32>} : memref<256x576xbf16, #tpu.memory_space<vmem>>, vector<64x64xbf16>,
    %c0_19 = arith.constant 0 : index
    %c2 = arith.constant 2 : index
    %c0_20 = arith.constant 0 : index
    %12 = vector.load %arg10[%c0_19, %c2, %c0_20] : memref<10x10x64xbf16, #tpu.memory_space<vmem>>, vector<8x8x64xbf16>
    %13 = vector.shape_cast %12 : vector<8x8x64xbf16> to vector<64x64xbf16>
    %c0_21 = arith.constant 0 : index
    %c128 = arith.constant 128 : index
    %14 = vector.load %arg11[%c0_21, %c128] : memref<256x576xbf16, #tpu.memory_space<vmem>>, vector<64x64xbf16>
    tpu.vector_store %arg11[%c0_21, %c128], %13 {strides = array<i32>} : memref<256x576xbf16, #tpu.memory_space<vmem>>, vector<64x64xbf16>,
    %c1_22 = arith.constant 1 : index
    %c0_23 = arith.constant 0 : index
    %c0_24 = arith.constant 0 : index
    %15 = vector.load %arg10[%c1_22, %c0_23, %c0_24] : memref<10x10x64xbf16, #tpu.memory_space<vmem>>, vector<8x8x64xbf16>
    %16 = vector.shape_cast %15 : vector<8x8x64xbf16> to vector<64x64xbf16>
    %c0_25 = arith.constant 0 : index
    %c192 = arith.constant 192 : index
    %17 = vector.load %arg11[%c0_25, %c192] : memref<256x576xbf16, #tpu.memory_space<vmem>>, vector<64x64xbf16>
    tpu.vector_store %arg11[%c0_25, %c192], %16 {strides = array<i32>} : memref<256x576xbf16, #tpu.memory_space<vmem>>, vector<64x64xbf16>,
    %c1_26 = arith.constant 1 : index
    %c1_27 = arith.constant 1 : index
    %c0_28 = arith.constant 0 : index
    %18 = vector.load %arg10[%c1_26, %c1_27, %c0_28] : memref<10x10x64xbf16, #tpu.memory_space<vmem>>, vector<8x8x64xbf16>
    %19 = vector.shape_cast %18 : vector<8x8x64xbf16> to vector<64x64xbf16>
    %c0_29 = arith.constant 0 : index
    %c256 = arith.constant 256 : index
    %20 = vector.load %arg11[%c0_29, %c256] : memref<256x576xbf16, #tpu.memory_space<vmem>>, vector<64x64xbf16>
    tpu.vector_store %arg11[%c0_29, %c256], %19 {strides = array<i32>} : memref<256x576xbf16, #tpu.memory_space<vmem>>, vector<64x64xbf16>,
    %c1_30 = arith.constant 1 : index
    %c2_31 = arith.constant 2 : index
    %c0_32 = arith.constant 0 : index
    %21 = vector.load %arg10[%c1_30, %c2_31, %c0_32] : memref<10x10x64xbf16, #tpu.memory_space<vmem>>, vector<8x8x64xbf16>
    %22 = vector.shape_cast %21 : vector<8x8x64xbf16> to vector<64x64xbf16>
    %c0_33 = arith.constant 0 : index
    %c320 = arith.constant 320 : index
    %23 = vector.load %arg11[%c0_33, %c320] : memref<256x576xbf16, #tpu.memory_space<vmem>>, vector<64x64xbf16>
    tpu.vector_store %arg11[%c0_33, %c320], %22 {strides = array<i32>} : memref<256x576xbf16, #tpu.memory_space<vmem>>, vector<64x64xbf16>,
    %c2_34 = arith.constant 2 : index
    %c0_35 = arith.constant 0 : index
    %c0_36 = arith.constant 0 : index
    %24 = vector.load %arg10[%c2_34, %c0_35, %c0_36] : memref<10x10x64xbf16, #tpu.memory_space<vmem>>, vector<8x8x64xbf16>
    %25 = vector.shape_cast %24 : vector<8x8x64xbf16> to vector<64x64xbf16>
    %c0_37 = arith.constant 0 : index
    %c384 = arith.constant 384 : index
    %26 = vector.load %arg11[%c0_37, %c384] : memref<256x576xbf16, #tpu.memory_space<vmem>>, vector<64x64xbf16>
    tpu.vector_store %arg11[%c0_37, %c384], %25 {strides = array<i32>} : memref<256x576xbf16, #tpu.memory_space<vmem>>, vector<64x64xbf16>,
    %c2_38 = arith.constant 2 : index
    %c1_39 = arith.constant 1 : index
    %c0_40 = arith.constant 0 : index
    %27 = vector.load %arg10[%c2_38, %c1_39, %c0_40] : memref<10x10x64xbf16, #tpu.memory_space<vmem>>, vector<8x8x64xbf16>
    %28 = vector.shape_cast %27 : vector<8x8x64xbf16> to vector<64x64xbf16>
    %c0_41 = arith.constant 0 : index
    %c448 = arith.constant 448 : index
    %29 = vector.load %arg11[%c0_41, %c448] : memref<256x576xbf16, #tpu.memory_space<vmem>>, vector<64x64xbf16>
    tpu.vector_store %arg11[%c0_41, %c448], %28 {strides = array<i32>} : memref<256x576xbf16, #tpu.memory_space<vmem>>, vector<64x64xbf16>,
    %c2_42 = arith.constant 2 : index
    %c2_43 = arith.constant 2 : index
    %c0_44 = arith.constant 0 : index
    %30 = vector.load %arg10[%c2_42, %c2_43, %c0_44] : memref<10x10x64xbf16, #tpu.memory_space<vmem>>, vector<8x8x64xbf16>
    %31 = vector.shape_cast %30 : vector<8x8x64xbf16> to vector<64x64xbf16>
    %c0_45 = arith.constant 0 : index
    %c512 = arith.constant 512 : index
    %32 = vector.load %arg11[%c0_45, %c512] : memref<256x576xbf16, #tpu.memory_space<vmem>>, vector<64x64xbf16>
    tpu.vector_store %arg11[%c0_45, %c512], %31 {strides = array<i32>} : memref<256x576xbf16, #tpu.memory_space<vmem>>, vector<64x64xbf16>,
    %c0_46 = arith.constant 0 : index
    %c0_47 = arith.constant 0 : index
    %33 = vector.load %arg11[%c0_46, %c0_47] : memref<256x576xbf16, #tpu.memory_space<vmem>>, vector<64x576xbf16>
    %c0_48 = arith.constant 0 : index
    %c0_49 = arith.constant 0 : index
    %34 = vector.load %arg4[%c0_48, %c0_49] : memref<576x64xbf16, #tpu.memory_space<vmem>>, vector<576x64xbf16>
    %cst_50 = arith.constant dense<0.000000e+00> : vector<64x64xf32>
    %35 = tpu.matmul %33, %34, %cst_50 {dimension_numbers = #tpu.dot_dimension_numbers<[1], [0], [0], [1], [0, 0, 1, 1], [], []>} : vector<64x576xbf16>, vector<576x64xbf16>, vector<64x64xf32> -> vector<64x64xf32>
    %36 = vector.broadcast %0 : vector<1x64xf32> to vector<64x64xf32>
    %37 = arith.addf %35, %36 : vector<64x64xf32>
    %cst_51 = arith.constant 0.000000e+00 : f32
    %38 = vector.broadcast %cst_51 : f32 to vector<64x64xf32>
    %39 = arith.maximumf %37, %38 : vector<64x64xf32>
    %c0_52 = arith.constant 0 : index
    %c0_53 = arith.constant 0 : index
    %40 = vector.load %arg6[%c0_52, %c0_53] : memref<128x64xf32, #tpu.memory_space<vmem>>, vector<128x64xf32>
    %cst_54 = arith.constant dense<0.000000e+00> : vector<128x64xf32>
    %41 = tpu.matmul %40, %39, %cst_54 {dimension_numbers = #tpu.dot_dimension_numbers<[1], [0], [0], [1], [0, 0, 1, 1], [], []>} : vector<128x64xf32>, vector<64x64xf32>, vector<128x64xf32> -> vector<128x64xf32>
    %c0_55 = arith.constant 0 : index
    %c0_56 = arith.constant 0 : index
    %42 = vector.load %arg7[%c0_55, %c0_56] : memref<16x8xf32, #tpu.memory_space<vmem>>, vector<16x8xf32>
    %43 = vector.shape_cast %42 : vector<16x8xf32> to vector<1x16x8xf32>
    %44 = vector.broadcast %43 : vector<1x16x8xf32> to vector<16x16x8xf32>
    %45 = vector.shape_cast %41 : vector<128x64xf32> to vector<16x8x64xf32>
    %cst_57 = arith.constant dense<0.000000e+00> : vector<16x16x64xf32>
    %46 = tpu.matmul %44, %45, %cst_57 {dimension_numbers = #tpu.dot_dimension_numbers<[2], [1], [1], [2], [0, 0, 0, 1, 1, 2], [0], [0]>} : vector<16x16x8xf32>, vector<16x8x64xf32>, vector<16x16x64xf32> -> vector<16x16x64xf32>
    %47 = vector.shape_cast %46 : vector<16x16x64xf32> to vector<256x64xf32>
    %c0_58 = arith.constant 0 : index
    %c0_59 = arith.constant 0 : index
    %48 = vector.load %arg5[%c0_58, %c0_59] : memref<2x64xf32, #tpu.memory_space<vmem>>, vector<1x64xf32>
    %cst_60 = arith.constant 0.000000e+00 : bf16
    %49 = vector.broadcast %cst_60 : bf16 to vector<18x18x64xbf16>
    %c0_61 = arith.constant 0 : index
    %c0_62 = arith.constant 0 : index
    %c0_63 = arith.constant 0 : index
    %50 = vector.load %arg9[%c0_61, %c0_62, %c0_63] : memref<18x18x64xbf16, #tpu.memory_space<vmem>>, vector<18x18x64xbf16>
    tpu.vector_store %arg9[%c0_61, %c0_62, %c0_63], %49 {strides = array<i32>} : memref<18x18x64xbf16, #tpu.memory_space<vmem>>, vector<18x18x64xbf16>,
    %c0_64 = arith.constant 0 : index
    %c0_65 = arith.constant 0 : index
    %c0_66 = arith.constant 0 : index
    %c0_67 = arith.constant 0 : index
    %51 = vector.load %arg1[%c0_64, %c0_65, %c0_66, %c0_67] : memref<1x16x16x64xbf16, #tpu.memory_space<vmem>>, vector<1x16x16x64xbf16>
    %52 = vector.shape_cast %51 : vector<1x16x16x64xbf16> to vector<16x16x64xbf16>
    %c1_68 = arith.constant 1 : index
    %c1_69 = arith.constant 1 : index
    %c0_70 = arith.constant 0 : index
    %53 = vector.load %arg9[%c1_68, %c1_69, %c0_70] : memref<18x18x64xbf16, #tpu.memory_space<vmem>>, vector<16x16x64xbf16>
    tpu.vector_store %arg9[%c1_68, %c1_69, %c0_70], %52 {strides = array<i32>} : memref<18x18x64xbf16, #tpu.memory_space<vmem>>, vector<16x16x64xbf16>,
    %c0_71 = arith.constant 0 : index
    %c0_72 = arith.constant 0 : index
    %c0_73 = arith.constant 0 : index
    %54 = vector.load %arg9[%c0_71, %c0_72, %c0_73] : memref<18x18x64xbf16, #tpu.memory_space<vmem>>, vector<16x16x64xbf16>
    %55 = vector.shape_cast %54 : vector<16x16x64xbf16> to vector<256x64xbf16>
    %c0_74 = arith.constant 0 : index
    %c0_75 = arith.constant 0 : index
    %56 = vector.load %arg11[%c0_74, %c0_75] : memref<256x576xbf16, #tpu.memory_space<vmem>>, vector<256x64xbf16>
    tpu.vector_store %arg11[%c0_74, %c0_75], %55 {strides = array<i32>} : memref<256x576xbf16, #tpu.memory_space<vmem>>, vector<256x64xbf16>,
    %c0_76 = arith.constant 0 : index
    %c1_77 = arith.constant 1 : index
    %c0_78 = arith.constant 0 : index
    %57 = vector.load %arg9[%c0_76, %c1_77, %c0_78] : memref<18x18x64xbf16, #tpu.memory_space<vmem>>, vector<16x16x64xbf16>
    %58 = vector.shape_cast %57 : vector<16x16x64xbf16> to vector<256x64xbf16>
    %c0_79 = arith.constant 0 : index
    %c64_80 = arith.constant 64 : index
    %59 = vector.load %arg11[%c0_79, %c64_80] : memref<256x576xbf16, #tpu.memory_space<vmem>>, vector<256x64xbf16>
    tpu.vector_store %arg11[%c0_79, %c64_80], %58 {strides = array<i32>} : memref<256x576xbf16, #tpu.memory_space<vmem>>, vector<256x64xbf16>,
    %c0_81 = arith.constant 0 : index
    %c2_82 = arith.constant 2 : index
    %c0_83 = arith.constant 0 : index
    %60 = vector.load %arg9[%c0_81, %c2_82, %c0_83] : memref<18x18x64xbf16, #tpu.memory_space<vmem>>, vector<16x16x64xbf16>
    %61 = vector.shape_cast %60 : vector<16x16x64xbf16> to vector<256x64xbf16>
    %c0_84 = arith.constant 0 : index
    %c128_85 = arith.constant 128 : index
    %62 = vector.load %arg11[%c0_84, %c128_85] : memref<256x576xbf16, #tpu.memory_space<vmem>>, vector<256x64xbf16>
    tpu.vector_store %arg11[%c0_84, %c128_85], %61 {strides = array<i32>} : memref<256x576xbf16, #tpu.memory_space<vmem>>, vector<256x64xbf16>,
    %c1_86 = arith.constant 1 : index
    %c0_87 = arith.constant 0 : index
    %c0_88 = arith.constant 0 : index
    %63 = vector.load %arg9[%c1_86, %c0_87, %c0_88] : memref<18x18x64xbf16, #tpu.memory_space<vmem>>, vector<16x16x64xbf16>
    %64 = vector.shape_cast %63 : vector<16x16x64xbf16> to vector<256x64xbf16>
    %c0_89 = arith.constant 0 : index
    %c192_90 = arith.constant 192 : index
    %65 = vector.load %arg11[%c0_89, %c192_90] : memref<256x576xbf16, #tpu.memory_space<vmem>>, vector<256x64xbf16>
    tpu.vector_store %arg11[%c0_89, %c192_90], %64 {strides = array<i32>} : memref<256x576xbf16, #tpu.memory_space<vmem>>, vector<256x64xbf16>,
    %c1_91 = arith.constant 1 : index
    %c1_92 = arith.constant 1 : index
    %c0_93 = arith.constant 0 : index
    %66 = vector.load %arg9[%c1_91, %c1_92, %c0_93] : memref<18x18x64xbf16, #tpu.memory_space<vmem>>, vector<16x16x64xbf16>
    %67 = vector.shape_cast %66 : vector<16x16x64xbf16> to vector<256x64xbf16>
    %c0_94 = arith.constant 0 : index
    %c256_95 = arith.constant 256 : index
    %68 = vector.load %arg11[%c0_94, %c256_95] : memref<256x576xbf16, #tpu.memory_space<vmem>>, vector<256x64xbf16>
    tpu.vector_store %arg11[%c0_94, %c256_95], %67 {strides = array<i32>} : memref<256x576xbf16, #tpu.memory_space<vmem>>, vector<256x64xbf16>,
    %c1_96 = arith.constant 1 : index
    %c2_97 = arith.constant 2 : index
    %c0_98 = arith.constant 0 : index
    %69 = vector.load %arg9[%c1_96, %c2_97, %c0_98] : memref<18x18x64xbf16, #tpu.memory_space<vmem>>, vector<16x16x64xbf16>
    %70 = vector.shape_cast %69 : vector<16x16x64xbf16> to vector<256x64xbf16>
    %c0_99 = arith.constant 0 : index
    %c320_100 = arith.constant 320 : index
    %71 = vector.load %arg11[%c0_99, %c320_100] : memref<256x576xbf16, #tpu.memory_space<vmem>>, vector<256x64xbf16>
    tpu.vector_store %arg11[%c0_99, %c320_100], %70 {strides = array<i32>} : memref<256x576xbf16, #tpu.memory_space<vmem>>, vector<256x64xbf16>,
    %c2_101 = arith.constant 2 : index
    %c0_102 = arith.constant 0 : index
    %c0_103 = arith.constant 0 : index
    %72 = vector.load %arg9[%c2_101, %c0_102, %c0_103] : memref<18x18x64xbf16, #tpu.memory_space<vmem>>, vector<16x16x64xbf16>
    %73 = vector.shape_cast %72 : vector<16x16x64xbf16> to vector<256x64xbf16>
    %c0_104 = arith.constant 0 : index
    %c384_105 = arith.constant 384 : index
    %74 = vector.load %arg11[%c0_104, %c384_105] : memref<256x576xbf16, #tpu.memory_space<vmem>>, vector<256x64xbf16>
    tpu.vector_store %arg11[%c0_104, %c384_105], %73 {strides = array<i32>} : memref<256x576xbf16, #tpu.memory_space<vmem>>, vector<256x64xbf16>,
    %c2_106 = arith.constant 2 : index
    %c1_107 = arith.constant 1 : index
    %c0_108 = arith.constant 0 : index
    %75 = vector.load %arg9[%c2_106, %c1_107, %c0_108] : memref<18x18x64xbf16, #tpu.memory_space<vmem>>, vector<16x16x64xbf16>
    %76 = vector.shape_cast %75 : vector<16x16x64xbf16> to vector<256x64xbf16>
    %c0_109 = arith.constant 0 : index
    %c448_110 = arith.constant 448 : index
    %77 = vector.load %arg11[%c0_109, %c448_110] : memref<256x576xbf16, #tpu.memory_space<vmem>>, vector<256x64xbf16>
    tpu.vector_store %arg11[%c0_109, %c448_110], %76 {strides = array<i32>} : memref<256x576xbf16, #tpu.memory_space<vmem>>, vector<256x64xbf16>,
    %c2_111 = arith.constant 2 : index
    %c2_112 = arith.constant 2 : index
    %c0_113 = arith.constant 0 : index
    %78 = vector.load %arg9[%c2_111, %c2_112, %c0_113] : memref<18x18x64xbf16, #tpu.memory_space<vmem>>, vector<16x16x64xbf16>
    %79 = vector.shape_cast %78 : vector<16x16x64xbf16> to vector<256x64xbf16>
    %c0_114 = arith.constant 0 : index
    %c512_115 = arith.constant 512 : index
    %80 = vector.load %arg11[%c0_114, %c512_115] : memref<256x576xbf16, #tpu.memory_space<vmem>>, vector<256x64xbf16>
    tpu.vector_store %arg11[%c0_114, %c512_115], %79 {strides = array<i32>} : memref<256x576xbf16, #tpu.memory_space<vmem>>, vector<256x64xbf16>,
    %c0_116 = arith.constant 0 : index
    %c0_117 = arith.constant 0 : index
    %81 = vector.load %arg11[%c0_116, %c0_117] : memref<256x576xbf16, #tpu.memory_space<vmem>>, vector<256x576xbf16>
    %c0_118 = arith.constant 0 : index
    %c0_119 = arith.constant 0 : index
    %82 = vector.load %arg3[%c0_118, %c0_119] : memref<576x64xbf16, #tpu.memory_space<vmem>>, vector<576x64xbf16>
    %cst_120 = arith.constant dense<0.000000e+00> : vector<256x64xf32>
    %83 = tpu.matmul %81, %82, %cst_120 {dimension_numbers = #tpu.dot_dimension_numbers<[1], [0], [0], [1], [0, 0, 1, 1], [], []>} : vector<256x576xbf16>, vector<576x64xbf16>, vector<256x64xf32> -> vector<256x64xf32>
    %84 = vector.broadcast %48 : vector<1x64xf32> to vector<256x64xf32>
    %85 = arith.addf %83, %84 : vector<256x64xf32>
    %cst_121 = arith.constant 0.000000e+00 : f32
    %86 = vector.broadcast %cst_121 : f32 to vector<256x64xf32>
    %87 = arith.maximumf %85, %86 : vector<256x64xf32>
    %88 = tpu.concatenate %47, %87 in 1 : vector<256x64xf32>, vector<256x64xf32> -> vector<256x128xf32>
    %89 = vector.shape_cast %88 : vector<256x128xf32> to vector<16x16x128xf32>
    %c0_122 = arith.constant 0 : index
    %c0_123 = arith.constant 0 : index
    %c0_124 = arith.constant 0 : index
    %c0_125 = arith.constant 0 : index
    %90 = vector.load %arg8[%c0_122, %c0_123, %c0_124, %c0_125] : memref<1x16x16x128xf32, #tpu.memory_space<vmem>>, vector<1x16x16x128xf32>
    %91 = vector.shape_cast %90 : vector<1x16x16x128xf32> to vector<16x16x128xf32>
    %92 = vector.shape_cast %89 : vector<16x16x128xf32> to vector<1x16x16x128xf32>
    tpu.vector_store %arg8[%c0_122, %c0_123, %c0_124, %c0_125], %92 {strides = array<i32>} : memref<1x16x16x128xf32, #tpu.memory_space<vmem>>, vector<1x16x16x128xf32>,
    return
  }
  func.func @transform_0(%arg0: i32) -> (i32, i32, i32, i32) {
    %c0_i32 = arith.constant 0 : i32
    %c0_i32_0 = arith.constant 0 : i32
    %c0_i32_1 = arith.constant 0 : i32
    %c0_i32_2 = arith.constant 0 : i32
    return %arg0, %c0_i32, %c0_i32_0, %c0_i32_1 : i32, i32, i32, i32
  }
  func.func @transform_1(%arg0: i32) -> (i32, i32, i32, i32) {
    %c0_i32 = arith.constant 0 : i32
    %c0_i32_0 = arith.constant 0 : i32
    %c0_i32_1 = arith.constant 0 : i32
    %c0_i32_2 = arith.constant 0 : i32
    return %arg0, %c0_i32, %c0_i32_0, %c0_i32_1 : i32, i32, i32, i32
  }
  func.func @transform_2(%arg0: i32) -> (i32, i32) {
    %c0_i32 = arith.constant 0 : i32
    %c0_i32_0 = arith.constant 0 : i32
    %c0_i32_1 = arith.constant 0 : i32
    return %c0_i32, %c0_i32_0 : i32, i32
  }
  func.func @transform_3(%arg0: i32) -> (i32, i32) {
    %c0_i32 = arith.constant 0 : i32
    %c0_i32_0 = arith.constant 0 : i32
    %c0_i32_1 = arith.constant 0 : i32
    return %c0_i32, %c0_i32_0 : i32, i32
  }
  func.func @transform_4(%arg0: i32) -> (i32, i32) {
    %c0_i32 = arith.constant 0 : i32
    %c0_i32_0 = arith.constant 0 : i32
    %c0_i32_1 = arith.constant 0 : i32
    return %c0_i32, %c0_i32_0 : i32, i32
  }
  func.func @transform_5(%arg0: i32) -> (i32, i32) {
    %c0_i32 = arith.constant 0 : i32
    %c0_i32_0 = arith.constant 0 : i32
    %c0_i32_1 = arith.constant 0 : i32
    return %c0_i32, %c0_i32_0 : i32, i32
  }
  func.func @transform_6(%arg0: i32) -> (i32, i32) {
    %c0_i32 = arith.constant 0 : i32
    %c0_i32_0 = arith.constant 0 : i32
    %c0_i32_1 = arith.constant 0 : i32
    return %c0_i32, %c0_i32_0 : i32, i32
  }
  func.func @transform_7(%arg0: i32) -> (i32, i32, i32, i32) {
    %c0_i32 = arith.constant 0 : i32
    %c0_i32_0 = arith.constant 0 : i32
    %c0_i32_1 = arith.constant 0 : i32
    %c0_i32_2 = arith.constant 0 : i32
    return %arg0, %c0_i32, %c0_i32_0, %c0_i32_1 : i32, i32, i32, i32
  }
}

</mosaic_0001>

<llo_original>
// kernel: dcab_forward.1
$region0: #{dcab_forward.1}
  #allocation0 [shape = 'u32[]', space=smem, size = 0x4, offset = 0x4, fixed_abs, tag = 'smem constant byte address 0x4 - core index']
  #allocation1 [shape = 'u32[72,128]{1,0:T(1,128)}', space=vmem, size = 0x9000, scoped, tag = 'internal scratch']
  #allocation2 [shape = 'bf16[18,18,64]{2,1,0:T(8,128)(2,1)}', space=vmem, size = 0x1b000, scoped, tag = 'scratch operand']
  #allocation3 [shape = 'bf16[10,10,64]{2,1,0:T(8,128)(2,1)}', space=vmem, size = 0xa000, scoped, tag = 'scratch operand']
  #allocation4 [shape = 'bf16[256,576]{1,0:T(8,128)(2,1)}', space=vmem, size = 0x50000, scoped, tag = 'scratch operand']
  %s0 = inlined_call_operand.vmem [shape: bf16[2,16,16,64], index: 0, kind: input, shape index: {}]
  %s1 = inlined_call_operand.vmem [shape: bf16[2,8,8,64], index: 1, kind: input, shape index: {}]
  %s2 = inlined_call_operand.vmem [shape: bf16[576,64], index: 2, kind: input, shape index: {}]
  %s3 = inlined_call_operand.vmem [shape: bf16[576,64], index: 3, kind: input, shape index: {}]
  %s4 = inlined_call_operand.vmem [shape: f32[2,64], index: 4, kind: input, shape index: {}]
  %s5 = inlined_call_operand.vmem [shape: f32[128,64], index: 5, kind: input, shape index: {}]
  %s6 = inlined_call_operand.vmem [shape: f32[16,8], index: 6, kind: input, shape index: {}]
  %s7 = inlined_call_operand.vmem [shape: f32[2,16,16,128], index: 7, kind: output, shape index: {}]
  %s8 = sld [smem:[#allocation0]]
  $region61: #{dcab_forward.1} parent=0
    _
  %s10 = ssub.s32 1, %s8
  %s11 = scalar_select 0, %s10, %s8
  loop: start=0, step=1, limit=4
  $region2: #{dcab_forward.1} parent=0 // loop_pre_header
    _
  $region3: #{dcab_forward.1} parent=0 // loop_header
    %s13 = sphi 0, %s17
    %p14 = scmp.ge.s32.totalorder %s13, 4
    %s23 = sphi 0, %s25
    %s26 = sphi 0, %s23
    %s27 = sphi 0, %s26
    %s43 = sphi 0, %s27
    %s49 = sphi 0, %s51
    %s52 = sphi 0, %s49
    %s53 = sphi 0, %s52
    %s69 = sphi 0, %s53
    %s73 = sphi 0, %s73
    %s75 = sphi 0, %s73
    %s76 = sphi 0, %s75
    %s90 = sphi 0, %s76
    %s94 = sphi 0, %s94
    %s96 = sphi 0, %s94
    %s97 = sphi 0, %s96
    %s111 = sphi 0, %s97
    %s115 = sphi 0, %s115
    %s117 = sphi 0, %s115
    %s118 = sphi 0, %s117
    %s132 = sphi 0, %s118
    %s136 = sphi 0, %s136
    %s138 = sphi 0, %s136
    %s139 = sphi 0, %s138
    %s153 = sphi 0, %s139
    %s157 = sphi 0, %s157
    %s159 = sphi 0, %s157
    %s160 = sphi 0, %s159
    %s174 = sphi 0, %s160
    %s180 = sphi 0, %s182
    %s183 = sphi 0, %s180
    %s184 = sphi 0, %s183
    %s200 = sphi 0, %s184
  $region4: #{dcab_forward.1} parent=0 // loop_header_branch
    %16 = sbr.rel (%p14) target = $region8
  $region5: #{dcab_forward.1} parent=0 // loop_body
    %s18 = ssub.s32 %s13, 1
    %s19 = ssub.s32 %s13, 2
    %s20 = sadd.s32 %s13, 1
    %s21 = ssub.s32 %s13, %s20
    %p22 = scmp.eq.s32.totalorder %s21, 0
    %s24 = sadd.s32 %s23, 1
    %s25 = scalar_select %p22, %s23, %s24
    %p28 = pneg %p22
    %p29 = scmp.eq.s32.totalorder %s13, 1
    %p30 = por %p28, %p29
    %p31 = scmp.ne.s32.totalorder %s23, %s26
    %p32 = scmp.eq.s32.totalorder %s13, 0
    %p33 = por %p31, %p32
    %p34 = scmp.ne.s32.totalorder %s23, %s26
    %p35 = scmp.eq.s32.totalorder %s18, 1
    %p36 = por %p34, %p35
    %p37 = scmp.ne.s32.totalorder %s26, %s27
    %p38 = scmp.eq.s32.totalorder %s18, 0
    %p39 = por %p37, %p38
    %p40 = scmp.ne.s32.totalorder %s26, %s27
    %p41 = scmp.eq.s32.totalorder %s19, 1
    %p42 = por %p40, %p41
    %p44 = scmp.ne.s32.totalorder %s27, %s43
    %p45 = scmp.eq.s32.totalorder %s19, 0
    %p46 = por %p44, %p45
    %s47 = ssub.s32 %s13, %s20
    %p48 = scmp.eq.s32.totalorder %s47, 0
    %s50 = sadd.s32 %s49, 1
    %s51 = scalar_select %p48, %s49, %s50
    %p54 = pneg %p48
    %p55 = scmp.eq.s32.totalorder %s13, 1
    %p56 = por %p54, %p55
    %p57 = scmp.ne.s32.totalorder %s49, %s52
    %p58 = scmp.eq.s32.totalorder %s13, 0
    %p59 = por %p57, %p58
    %p60 = scmp.ne.s32.totalorder %s49, %s52
    %p61 = scmp.eq.s32.totalorder %s18, 1
    %p62 = por %p60, %p61
    %p63 = scmp.ne.s32.totalorder %s52, %s53
    %p64 = scmp.eq.s32.totalorder %s18, 0
    %p65 = por %p63, %p64
    %p66 = scmp.ne.s32.totalorder %s52, %s53
    %p67 = scmp.eq.s32.totalorder %s19, 1
    %p68 = por %p66, %p67
    %p70 = scmp.ne.s32.totalorder %s53, %s69
    %p71 = scmp.eq.s32.totalorder %s19, 0
    %p72 = por %p70, %p71
    %s74 = sadd.s32 %s73, 1
    %p77 = scmp.eq.s32.totalorder %s13, 1
    %p78 = scmp.ne.s32.totalorder %s73, %s75
    %p79 = scmp.eq.s32.totalorder %s13, 0
    %p80 = por %p78, %p79
    %p81 = scmp.ne.s32.totalorder %s73, %s75
    %p82 = scmp.eq.s32.totalorder %s18, 1
    %p83 = por %p81, %p82
    %p84 = scmp.ne.s32.totalorder %s75, %s76
    %p85 = scmp.eq.s32.totalorder %s18, 0
    %p86 = por %p84, %p85
    %p87 = scmp.ne.s32.totalorder %s75, %s76
    %p88 = scmp.eq.s32.totalorder %s19, 1
    %p89 = por %p87, %p88
    %p91 = scmp.ne.s32.totalorder %s76, %s90
    %p92 = scmp.eq.s32.totalorder %s19, 0
    %p93 = por %p91, %p92
    %s95 = sadd.s32 %s94, 1
    %p98 = scmp.eq.s32.totalorder %s13, 1
    %p99 = scmp.ne.s32.totalorder %s94, %s96
    %p100 = scmp.eq.s32.totalorder %s13, 0
    %p101 = por %p99, %p100
    %p102 = scmp.ne.s32.totalorder %s94, %s96
    %p103 = scmp.eq.s32.totalorder %s18, 1
    %p104 = por %p102, %p103
    %p105 = scmp.ne.s32.totalorder %s96, %s97
    %p106 = scmp.eq.s32.totalorder %s18, 0
    %p107 = por %p105, %p106
    %p108 = scmp.ne.s32.totalorder %s96, %s97
    %p109 = scmp.eq.s32.totalorder %s19, 1
    %p110 = por %p108, %p109
    %p112 = scmp.ne.s32.totalorder %s97, %s111
    %p113 = scmp.eq.s32.totalorder %s19, 0
    %p114 = por %p112, %p113
    %s116 = sadd.s32 %s115, 1
    %p119 = scmp.eq.s32.totalorder %s13, 1
    %p120 = scmp.ne.s32.totalorder %s115, %s117
    %p121 = scmp.eq.s32.totalorder %s13, 0
    %p122 = por %p120, %p121
    %p123 = scmp.ne.s32.totalorder %s115, %s117
    %p124 = scmp.eq.s32.totalorder %s18, 1
    %p125 = por %p123, %p124
    %p126 = scmp.ne.s32.totalorder %s117, %s118
    %p127 = scmp.eq.s32.totalorder %s18, 0
    %p128 = por %p126, %p127
    %p129 = scmp.ne.s32.totalorder %s117, %s118
    %p130 = scmp.eq.s32.totalorder %s19, 1
    %p131 = por %p129, %p130
    %p133 = scmp.ne.s32.totalorder %s118, %s132
    %p134 = scmp.eq.s32.totalorder %s19, 0
    %p135 = por %p133, %p134
    %s137 = sadd.s32 %s136, 1
    %p140 = scmp.eq.s32.totalorder %s13, 1
    %p141 = scmp.ne.s32.totalorder %s136, %s138
    %p142 = scmp.eq.s32.totalorder %s13, 0
    %p143 = por %p141, %p142
    %p144 = scmp.ne.s32.totalorder %s136, %s138
    %p145 = scmp.eq.s32.totalorder %s18, 1
    %p146 = por %p144, %p145
    %p147 = scmp.ne.s32.totalorder %s138, %s139
    %p148 = scmp.eq.s32.totalorder %s18, 0
    %p149 = por %p147, %p148
    %p150 = scmp.ne.s32.totalorder %s138, %s139
    %p151 = scmp.eq.s32.totalorder %s19, 1
    %p152 = por %p150, %p151
    %p154 = scmp.ne.s32.totalorder %s139, %s153
    %p155 = scmp.eq.s32.totalorder %s19, 0
    %p156 = por %p154, %p155
    %s158 = sadd.s32 %s157, 1
    %p161 = scmp.eq.s32.totalorder %s13, 1
    %p162 = scmp.ne.s32.totalorder %s157, %s159
    %p163 = scmp.eq.s32.totalorder %s13, 0
    %p164 = por %p162, %p163
    %p165 = scmp.ne.s32.totalorder %s157, %s159
    %p166 = scmp.eq.s32.totalorder %s18, 1
    %p167 = por %p165, %p166
    %p168 = scmp.ne.s32.totalorder %s159, %s160
    %p169 = scmp.eq.s32.totalorder %s18, 0
    %p170 = por %p168, %p169
    %p171 = scmp.ne.s32.totalorder %s159, %s160
    %p172 = scmp.eq.s32.totalorder %s19, 1
    %p173 = por %p171, %p172
    %p175 = scmp.ne.s32.totalorder %s160, %s174
    %p176 = scmp.eq.s32.totalorder %s19, 0
    %p177 = por %p175, %p176
    %s178 = ssub.s32 %s13, %s20
    %p179 = scmp.eq.s32.totalorder %s178, 0
    %s181 = sadd.s32 %s180, 1
    %s182 = scalar_select %p179, %s180, %s181
    %p185 = pneg %p179
    %p186 = scmp.eq.s32.totalorder %s13, 1
    %p187 = por %p185, %p186
    %p188 = scmp.ne.s32.totalorder %s180, %s183
    %p189 = scmp.eq.s32.totalorder %s13, 0
    %p190 = por %p188, %p189
    %p191 = scmp.ne.s32.totalorder %s180, %s183
    %p192 = scmp.eq.s32.totalorder %s18, 1
    %p193 = por %p191, %p192
    %p194 = scmp.ne.s32.totalorder %s183, %s184
    %p195 = scmp.eq.s32.totalorder %s18, 0
    %p196 = por %p194, %p195
    %p197 = scmp.ne.s32.totalorder %s183, %s184
    %p198 = scmp.eq.s32.totalorder %s19, 1
    %p199 = por %p197, %p198
    %p201 = scmp.ne.s32.totalorder %s184, %s200
    %p202 = scmp.eq.s32.totalorder %s19, 0
    %p203 = por %p201, %p202
    %p204 = scmp.le.s32.totalorder 1, %s13
    %p205 = scmp.lt.s32.totalorder %s13, 3
    %p206 = pnand %p204, %p205
    %p207 = pneg %p206
    // Predicated region
    $region9: #{dcab_forward.1} parent=5 // pred_check
      _
    $region10: #{dcab_forward.1} parent=5 // pred_check_branch
      %209 = sbr.rel (%p206) target = $region12
    $region11: #{dcab_forward.1} parent=5 // pred_region
      %s210 = ssub.s32 %s13, 1
      // Predicated region
      $region13: #{dcab_forward.1} parent=11 // pred_check
        %p211 = pneg %p86
      $region14: #{dcab_forward.1} parent=11 // pred_check_branch
        %213 = sbr.rel (%p211) target = $region16
      $region15: #{dcab_forward.1} parent=11 // pred_region
        _
      $region16: #{dcab_forward.1} parent=11 // pred_fallthru
        _
      // Predicated region
      $region17: #{dcab_forward.1} parent=11 // pred_check
        %p214 = pneg %p107
      $region18: #{dcab_forward.1} parent=11 // pred_check_branch
        %216 = sbr.rel (%p214) target = $region20
      $region19: #{dcab_forward.1} parent=11 // pred_region
        _
      $region20: #{dcab_forward.1} parent=11 // pred_fallthru
        _
      // Predicated region
      $region21: #{dcab_forward.1} parent=11 // pred_check
        %p217 = pneg %p128
      $region22: #{dcab_forward.1} parent=11 // pred_check_branch
        %219 = sbr.rel (%p217) target = $region24
      $region23: #{dcab_forward.1} parent=11 // pred_region
        _
      $region24: #{dcab_forward.1} parent=11 // pred_fallthru
        _
      // Predicated region
      $region25: #{dcab_forward.1} parent=11 // pred_check
        %p220 = pneg %p149
      $region26: #{dcab_forward.1} parent=11 // pred_check_branch
        %222 = sbr.rel (%p220) target = $region28
      $region27: #{dcab_forward.1} parent=11 // pred_region
        _
      $region28: #{dcab_forward.1} parent=11 // pred_fallthru
        _
      // Predicated region
      $region29: #{dcab_forward.1} parent=11 // pred_check
        %p223 = pneg %p170
      $region30: #{dcab_forward.1} parent=11 // pred_check_branch
        %225 = sbr.rel (%p223) target = $region32
      $region31: #{dcab_forward.1} parent=11 // pred_region
        _
      $region32: #{dcab_forward.1} parent=11 // pred_fallthru
        _
    $region12: #{dcab_forward.1} parent=5 // pred_fallthru
      _
    %p226 = scmp.lt.s32.totalorder %s13, 2
    // Predicated region
    $region33: #{dcab_forward.1} parent=5 // pred_check
      %p227 = pneg %p226
    $region34: #{dcab_forward.1} parent=5 // pred_check_branch
      %229 = sbr.rel (%p227) target = $region36
    $region35: #{dcab_forward.1} parent=5 // pred_region
      // Predicated region
      $region37: #{dcab_forward.1} parent=35 // pred_check
        %p230 = pneg %p33
      $region38: #{dcab_forward.1} parent=35 // pred_check_branch
        %232 = sbr.rel (%p230) target = $region40
      $region39: #{dcab_forward.1} parent=35 // pred_region
        %p233 = scmp.lt.s32.totalorder %s13, 1
        %s234 = scalar_select %p233, %s13, 1
        %s235 = smul.addr %s234, 32
        %s236 = smul.addr %s235, 4
        %s237 = scalar_lea.vmem %s0, %s236
      $region40: #{dcab_forward.1} parent=35 // pred_fallthru
        _
      // Predicated region
      $region41: #{dcab_forward.1} parent=35 // pred_check
        %p238 = pneg %p59
      $region42: #{dcab_forward.1} parent=35 // pred_check_branch
        %240 = sbr.rel (%p238) target = $region44
      $region43: #{dcab_forward.1} parent=35 // pred_region
        %p241 = scmp.lt.s32.totalorder %s13, 1
        %s242 = scalar_select %p241, %s13, 1
        %s243 = smul.addr %s242, 8
        %s244 = smul.addr %s243, 4
        %s245 = scalar_lea.vmem %s1, %s244
      $region44: #{dcab_forward.1} parent=35 // pred_fallthru
        _
    $region36: #{dcab_forward.1} parent=5 // pred_fallthru
      _
    %p246 = scmp.le.s32.totalorder 1, %s13
    %p247 = scmp.lt.s32.totalorder %s13, 3
    %p248 = pnand %p246, %p247
    %p249 = pneg %p248
    // Predicated region
    $region45: #{dcab_forward.1} parent=5 // pred_check
      _
    $region46: #{dcab_forward.1} parent=5 // pred_check_branch
      %251 = sbr.rel (%p248) target = $region48
    $region47: #{dcab_forward.1} parent=5 // pred_region
      %s252 = ssub.s32 %s13, 1
      %p253 = scmp.lt.s32.totalorder %s18, 1
      %s254 = scalar_select %p253, %s18, 1
      %s255 = smul.addr %s254, 32
      %s256 = smul.addr %s255, 4
      %s257 = scalar_lea.vmem %s0, %s256
      %p258 = pneg %p39
      %p259 = pneg %p36
      %p260 = scmp.lt.s32.totalorder %s18, 1
      %s261 = scalar_select %p260, %s18, 1
      %s262 = smul.addr %s261, 8
      %s263 = smul.addr %s262, 4
      %s264 = scalar_lea.vmem %s1, %s263
      %p265 = pneg %p65
      %p266 = pneg %p62
      %p267 = pneg %p86
      %p268 = pneg %p83
      %p269 = pneg %p107
      %p270 = pneg %p104
      %p271 = pneg %p128
      %p272 = pneg %p125
      %p273 = pneg %p149
      %p274 = pneg %p146
      %p275 = pneg %p170
      %p276 = pneg %p167
      %p277 = pneg %p196
      %p278 = pneg %p193
      %p279 = scmp.lt.s32.totalorder %s18, 1
      %s280 = scalar_select %p279, %s18, 1
      %s281 = smul.addr %s280, 32
      %s282 = smul.addr %s281, 8
      %s283 = scalar_lea.vmem %s7, %s282
      %p284 = scmp.lt.s32.totalorder %s18, 1
      %s285 = scalar_select %p284, %s18, 1
      %s286 = smul.addr %s285, 32
      %s287 = smul.addr %s286, 4
      %s288 = scalar_lea.vmem %s0, %s287
      %p289 = scmp.lt.s32.totalorder %s18, 1
      %s290 = scalar_select %p289, %s18, 1
      %s291 = smul.addr %s290, 8
      %s292 = smul.addr %s291, 4
      %s293 = scalar_lea.vmem %s1, %s292
      %p294 = scmp.lt.s32.totalorder %s18, 1
      %s295 = scalar_select %p294, %s18, 1
      %s296 = smul.addr %s295, 32
      %s297 = smul.addr %s296, 8
      %s298 = scalar_lea.vmem %s7, %s297
      %v300 = vld [vmem:[%s4 + $0x1] sm:$0x1]
      %vm301 = vcmask 519168
      %302 = vst.msk [vmem:[#allocation3] sm:$0xf] %vm301, 0
      %vm303 = vcmask 516096
      %304 = vst.msk [vmem:[#allocation3 + $0x4] sm:$0x1] %vm303, 0
      %305 = vst.msk [vmem:[#allocation3 + $0x8] sm:$0xf] %vm301, 0
      %306 = vst.msk [vmem:[#allocation3 + $0xc] sm:$0x1] %vm303, 0
      %307 = vst.msk [vmem:[#allocation3 + $0x10] sm:$0xf] %vm301, 0
      %308 = vst.msk [vmem:[#allocation3 + $0x14] sm:$0x1] %vm303, 0
      %309 = vst.msk [vmem:[#allocation3 + $0x18] sm:$0xf] %vm301, 0
      %310 = vst.msk [vmem:[#allocation3 + $0x1c] sm:$0x1] %vm303, 0
      %311 = vst.msk [vmem:[#allocation3 + $0x20] sm:$0xf] %vm301, 0
      %312 = vst.msk [vmem:[#allocation3 + $0x24] sm:$0x1] %vm303, 0
      %313 = vst.msk [vmem:[#allocation3 + $0x28] sm:$0xf] %vm301, 0
      %314 = vst.msk [vmem:[#allocation3 + $0x2c] sm:$0x1] %vm303, 0
      %315 = vst.msk [vmem:[#allocation3 + $0x30] sm:$0xf] %vm301, 0
      %316 = vst.msk [vmem:[#allocation3 + $0x34] sm:$0x1] %vm303, 0
      %317 = vst.msk [vmem:[#allocation3 + $0x38] sm:$0xf] %vm301, 0
      %318 = vst.msk [vmem:[#allocation3 + $0x3c] sm:$0x1] %vm303, 0
      %319 = vst.msk [vmem:[#allocation3 + $0x40] sm:$0xf] %vm301, 0
      %320 = vst.msk [vmem:[#allocation3 + $0x44] sm:$0x1] %vm303, 0
      %321 = vst.msk [vmem:[#allocation3 + $0x48] sm:$0xf] %vm301, 0
      %322 = vst.msk [vmem:[#allocation3 + $0x4c] sm:$0x1] %vm303, 0
      %v323 = vld [vmem:[%s293] sm:$0xf]
      %v324 = vld [vmem:[%s293 + $0x4] sm:$0xf]
      %v325 = vld [vmem:[%s293 + $0x8] sm:$0xf]
      %v326 = vld [vmem:[%s293 + $0xc] sm:$0xf]
      %v327 = vld [vmem:[%s293 + $0x10] sm:$0xf]
      %v328 = vld [vmem:[%s293 + $0x14] sm:$0xf]
      %v329 = vld [vmem:[%s293 + $0x18] sm:$0xf]
      %v330 = vld [vmem:[%s293 + $0x1c] sm:$0xf]
      %v332 = vshrl.u32 %v323, 16
      %v334 = vrot.slane %v332, 7
      %v335 = vshll.u32 %v323, 16
      %v337 = vor.u32 %v334, %v335
      %v338 = vrot.slane %v334, 4
      %v340 = vshrl.u32 %v324, 16
      %v342 = vrot.slane %v340, 7
      %v343 = vshll.u32 %v324, 16
      %v345 = vor.u32 %v342, %v343
      %v346 = vrot.slane %v342, 4
      %v348 = vshrl.u32 %v325, 16
      %v350 = vrot.slane %v348, 7
      %v351 = vshll.u32 %v325, 16
      %v353 = vor.u32 %v350, %v351
      %v354 = vrot.slane %v350, 4
      %v356 = vshrl.u32 %v326, 16
      %v358 = vrot.slane %v356, 7
      %v359 = vshll.u32 %v326, 16
      %v361 = vor.u32 %v358, %v359
      %v362 = vrot.slane %v358, 4
      %v364 = vshrl.u32 %v327, 16
      %v366 = vrot.slane %v364, 7
      %v367 = vshll.u32 %v327, 16
      %v369 = vor.u32 %v366, %v367
      %v370 = vrot.slane %v366, 4
      %v372 = vshrl.u32 %v328, 16
      %v374 = vrot.slane %v372, 7
      %v375 = vshll.u32 %v328, 16
      %v377 = vor.u32 %v374, %v375
      %v378 = vrot.slane %v374, 4
      %v380 = vshrl.u32 %v329, 16
      %v382 = vrot.slane %v380, 7
      %v383 = vshll.u32 %v329, 16
      %v385 = vor.u32 %v382, %v383
      %v386 = vrot.slane %v382, 4
      %v388 = vshrl.u32 %v330, 16
      %v390 = vrot.slane %v388, 7
      %v391 = vshll.u32 %v330, 16
      %v393 = vor.u32 %v390, %v391
      %v394 = vrot.slane %v390, 4
      %s411 = scalar_lea.vmem [#allocation3], 8
      %vm412 = vcmask 519168
      %vm413 = vsmask.f32 7938
      %vm414 = vmand %vm412, %vm413
      %v415 = vld [vmem:[%s411] sm:$0xf]
      %v416 = vsel %vm414, %v337, %v415
      %417 = vst [vmem:[%s411] sm:$0xf] %v416
      %vm418 = vcmask 516096
      %vm419 = vsmask.f32 256
      %vm420 = vmand %vm418, %vm419
      %v421 = vld [vmem:[%s411 + $0x4] sm:$0x1]
      %v422 = vsel %vm420, %v338, %v421
      %423 = vst [vmem:[%s411 + $0x4] sm:$0x1] %v422
      %v424 = vld [vmem:[%s411 + $0x8] sm:$0xf]
      %v425 = vsel %vm414, %v345, %v424
      %426 = vst [vmem:[%s411 + $0x8] sm:$0xf] %v425
      %v427 = vld [vmem:[%s411 + $0xc] sm:$0x1]
      %v428 = vsel %vm420, %v346, %v427
      %429 = vst [vmem:[%s411 + $0xc] sm:$0x1] %v428
      %v430 = vld [vmem:[%s411 + $0x10] sm:$0xf]
      %v431 = vsel %vm414, %v353, %v430
      %432 = vst [vmem:[%s411 + $0x10] sm:$0xf] %v431
      %v433 = vld [vmem:[%s411 + $0x14] sm:$0x1]
      %v434 = vsel %vm420, %v354, %v433
      %435 = vst [vmem:[%s411 + $0x14] sm:$0x1] %v434
      %v436 = vld [vmem:[%s411 + $0x18] sm:$0xf]
      %v437 = vsel %vm414, %v361, %v436
      %438 = vst [vmem:[%s411 + $0x18] sm:$0xf] %v437
      %v439 = vld [vmem:[%s411 + $0x1c] sm:$0x1]
      %v440 = vsel %vm420, %v362, %v439
      %441 = vst [vmem:[%s411 + $0x1c] sm:$0x1] %v440
      %v442 = vld [vmem:[%s411 + $0x20] sm:$0xf]
      %v443 = vsel %vm414, %v369, %v442
      %444 = vst [vmem:[%s411 + $0x20] sm:$0xf] %v443
      %v445 = vld [vmem:[%s411 + $0x24] sm:$0x1]
      %v446 = vsel %vm420, %v370, %v445
      %447 = vst [vmem:[%s411 + $0x24] sm:$0x1] %v446
      %v448 = vld [vmem:[%s411 + $0x28] sm:$0xf]
      %v449 = vsel %vm414, %v377, %v448
      %450 = vst [vmem:[%s411 + $0x28] sm:$0xf] %v449
      %v451 = vld [vmem:[%s411 + $0x2c] sm:$0x1]
      %v452 = vsel %vm420, %v378, %v451
      %453 = vst [vmem:[%s411 + $0x2c] sm:$0x1] %v452
      %v454 = vld [vmem:[%s411 + $0x30] sm:$0xf]
      %v455 = vsel %vm414, %v385, %v454
      %456 = vst [vmem:[%s411 + $0x30] sm:$0xf] %v455
      %v457 = vld [vmem:[%s411 + $0x34] sm:$0x1]
      %v458 = vsel %vm420, %v386, %v457
      %459 = vst [vmem:[%s411 + $0x34] sm:$0x1] %v458
      %v460 = vld [vmem:[%s411 + $0x38] sm:$0xf]
      %v461 = vsel %vm414, %v393, %v460
      %462 = vst [vmem:[%s411 + $0x38] sm:$0xf] %v461
      %v463 = vld [vmem:[%s411 + $0x3c] sm:$0x1]
      %v464 = vsel %vm420, %v394, %v463
      %465 = vst [vmem:[%s411 + $0x3c] sm:$0x1] %v464
      %v466 = vld [vmem:[#allocation3] sm:$0xf]
      %v467 = vld [vmem:[#allocation3 + $0x8] sm:$0xf]
      %v468 = vld [vmem:[#allocation3 + $0x10] sm:$0xf]
      %v469 = vld [vmem:[#allocation3 + $0x18] sm:$0xf]
      %v470 = vld [vmem:[#allocation3 + $0x20] sm:$0xf]
      %v471 = vld [vmem:[#allocation3 + $0x28] sm:$0xf]
      %v472 = vld [vmem:[#allocation3 + $0x30] sm:$0xf]
      %v473 = vld [vmem:[#allocation3 + $0x38] sm:$0xf]
      %474 = vst.msk [vmem:[#allocation4] sm:$0xf] %vm301, %v466
      %475 = vst.msk [vmem:[#allocation4 + $0x14] sm:$0xf] %vm301, %v467
      %476 = vst.msk [vmem:[#allocation4 + $0x28] sm:$0xf] %vm301, %v468
      %477 = vst.msk [vmem:[#allocation4 + $0x3c] sm:$0xf] %vm301, %v469
      %478 = vst.msk [vmem:[#allocation4 + $0x50] sm:$0xf] %vm301, %v470
      %479 = vst.msk [vmem:[#allocation4 + $0x64] sm:$0xf] %vm301, %v471
      %480 = vst.msk [vmem:[#allocation4 + $0x78] sm:$0xf] %vm301, %v472
      %481 = vst.msk [vmem:[#allocation4 + $0x8c] sm:$0xf] %vm301, %v473
      %v482 = vld [vmem:[#allocation3] sm:$0xf]
      %v483 = vld [vmem:[#allocation3 + $0x4] sm:$0x1]
      %v484 = vld [vmem:[#allocation3 + $0x8] sm:$0xf]
      %v485 = vld [vmem:[#allocation3 + $0xc] sm:$0x1]
      %v486 = vld [vmem:[#allocation3 + $0x10] sm:$0xf]
      %v487 = vld [vmem:[#allocation3 + $0x14] sm:$0x1]
      %v488 = vld [vmem:[#allocation3 + $0x18] sm:$0xf]
      %v489 = vld [vmem:[#allocation3 + $0x1c] sm:$0x1]
      %v490 = vld [vmem:[#allocation3 + $0x20] sm:$0xf]
      %v491 = vld [vmem:[#allocation3 + $0x24] sm:$0x1]
      %v492 = vld [vmem:[#allocation3 + $0x28] sm:$0xf]
      %v493 = vld [vmem:[#allocation3 + $0x2c] sm:$0x1]
      %v494 = vld [vmem:[#allocation3 + $0x30] sm:$0xf]
      %v495 = vld [vmem:[#allocation3 + $0x34] sm:$0x1]
      %v496 = vld [vmem:[#allocation3 + $0x38] sm:$0xf]
      %v497 = vld [vmem:[#allocation3 + $0x3c] sm:$0x1]
      %vm498 = vsmask.f32 3328
      %vm499 = vsmask.f32 7440
      %vm500 = vmor %vm498, %vm499
      %v502 = vshrl.u32 %v482, 16
      %v504 = vrot.slane %v502, 4
      %v505 = vshll.u32 %v482, 16
      %v507 = vrot.slane %v505, 5
      %v508 = vor.u32 %v504, %v507
      %v509 = vrot.slane %v508, 4
      %v511 = vshll.u32 %v483, 16
      %v513 = vrot.slane %v511, 5
      %v514 = vsel %vm500, %v509, %v513
      %v516 = vshrl.u32 %v484, 16
      %v518 = vrot.slane %v516, 4
      %v519 = vshll.u32 %v484, 16
      %v521 = vrot.slane %v519, 5
      %v522 = vor.u32 %v518, %v521
      %v523 = vrot.slane %v522, 4
      %v525 = vshll.u32 %v485, 16
      %v527 = vrot.slane %v525, 5
      %v528 = vsel %vm500, %v523, %v527
      %v530 = vshrl.u32 %v486, 16
      %v532 = vrot.slane %v530, 4
      %v533 = vshll.u32 %v486, 16
      %v535 = vrot.slane %v533, 5
      %v536 = vor.u32 %v532, %v535
      %v537 = vrot.slane %v536, 4
      %v539 = vshll.u32 %v487, 16
      %v541 = vrot.slane %v539, 5
      %v542 = vsel %vm500, %v537, %v541
      %v544 = vshrl.u32 %v488, 16
      %v546 = vrot.slane %v544, 4
      %v547 = vshll.u32 %v488, 16
      %v549 = vrot.slane %v547, 5
      %v550 = vor.u32 %v546, %v549
      %v551 = vrot.slane %v550, 4
      %v553 = vshll.u32 %v489, 16
      %v555 = vrot.slane %v553, 5
      %v556 = vsel %vm500, %v551, %v555
      %v558 = vshrl.u32 %v490, 16
      %v560 = vrot.slane %v558, 4
      %v561 = vshll.u32 %v490, 16
      %v563 = vrot.slane %v561, 5
      %v564 = vor.u32 %v560, %v563
      %v565 = vrot.slane %v564, 4
      %v567 = vshll.u32 %v491, 16
      %v569 = vrot.slane %v567, 5
      %v570 = vsel %vm500, %v565, %v569
      %v572 = vshrl.u32 %v492, 16
      %v574 = vrot.slane %v572, 4
      %v575 = vshll.u32 %v492, 16
      %v577 = vrot.slane %v575, 5
      %v578 = vor.u32 %v574, %v577
      %v579 = vrot.slane %v578, 4
      %v581 = vshll.u32 %v493, 16
      %v583 = vrot.slane %v581, 5
      %v584 = vsel %vm500, %v579, %v583
      %v586 = vshrl.u32 %v494, 16
      %v588 = vrot.slane %v586, 4
      %v589 = vshll.u32 %v494, 16
      %v591 = vrot.slane %v589, 5
      %v592 = vor.u32 %v588, %v591
      %v593 = vrot.slane %v592, 4
      %v595 = vshll.u32 %v495, 16
      %v597 = vrot.slane %v595, 5
      %v598 = vsel %vm500, %v593, %v597
      %v600 = vshrl.u32 %v496, 16
      %v602 = vrot.slane %v600, 4
      %v603 = vshll.u32 %v496, 16
      %v605 = vrot.slane %v603, 5
      %v606 = vor.u32 %v602, %v605
      %v607 = vrot.slane %v606, 4
      %v609 = vshll.u32 %v497, 16
      %v611 = vrot.slane %v609, 5
      %v612 = vsel %vm500, %v607, %v611
      %613 = vrot.lane.b32.xlu0 %v514, 64
      %v614 = vpop.permute.xlu0 %613
      %615 = vrot.lane.b32.xlu0 %v528, 64
      %v616 = vpop.permute.xlu0 %615
      %617 = vrot.lane.b32.xlu0 %v542, 64
      %v618 = vpop.permute.xlu0 %617
      %619 = vrot.lane.b32.xlu0 %v556, 64
      %v620 = vpop.permute.xlu0 %619
      %621 = vrot.lane.b32.xlu0 %v570, 64
      %v622 = vpop.permute.xlu0 %621
      %623 = vrot.lane.b32.xlu0 %v584, 64
      %v624 = vpop.permute.xlu0 %623
      %625 = vrot.lane.b32.xlu0 %v598, 64
      %v626 = vpop.permute.xlu0 %625
      %627 = vrot.lane.b32.xlu0 %v612, 64
      %v628 = vpop.permute.xlu0 %627
      %vm637 = vcmask 1043968
      %638 = vst.msk [vmem:[#allocation4] sm:$0xf] %vm637, %v614
      %639 = vst.msk [vmem:[#allocation4 + $0x14] sm:$0xf] %vm637, %v616
      %640 = vst.msk [vmem:[#allocation4 + $0x28] sm:$0xf] %vm637, %v618
      %641 = vst.msk [vmem:[#allocation4 + $0x3c] sm:$0xf] %vm637, %v620
      %642 = vst.msk [vmem:[#allocation4 + $0x50] sm:$0xf] %vm637, %v622
      %643 = vst.msk [vmem:[#allocation4 + $0x64] sm:$0xf] %vm637, %v624
      %644 = vst.msk [vmem:[#allocation4 + $0x78] sm:$0xf] %vm637, %v626
      %645 = vst.msk [vmem:[#allocation4 + $0x8c] sm:$0xf] %vm637, %v628
      %v646 = vld [vmem:[#allocation3] sm:$0xe]
      %v647 = vld [vmem:[#allocation3 + $0x4] sm:$0x1]
      %v648 = vld [vmem:[#allocation3 + $0x8] sm:$0xe]
      %v649 = vld [vmem:[#allocation3 + $0xc] sm:$0x1]
      %v650 = vld [vmem:[#allocation3 + $0x10] sm:$0xe]
      %v651 = vld [vmem:[#allocation3 + $0x14] sm:$0x1]
      %v652 = vld [vmem:[#allocation3 + $0x18] sm:$0xe]
      %v653 = vld [vmem:[#allocation3 + $0x1c] sm:$0x1]
      %v654 = vld [vmem:[#allocation3 + $0x20] sm:$0xe]
      %v655 = vld [vmem:[#allocation3 + $0x24] sm:$0x1]
      %v656 = vld [vmem:[#allocation3 + $0x28] sm:$0xe]
      %v657 = vld [vmem:[#allocation3 + $0x2c] sm:$0x1]
      %v658 = vld [vmem:[#allocation3 + $0x30] sm:$0xe]
      %v659 = vld [vmem:[#allocation3 + $0x34] sm:$0x1]
      %v660 = vld [vmem:[#allocation3 + $0x38] sm:$0xe]
      %v661 = vld [vmem:[#allocation3 + $0x3c] sm:$0x1]
      %vm678 = vcmask 1042432
      %vm679 = vcmask 1046532
      %vm680 = vmor %vm678, %vm679
      %v681 = vrot.slane %v646, 5
      %v682 = vrot.slane %v681, 4
      %v683 = vrot.slane %v647, 5
      %v684 = vsel %vm680, %v682, %v683
      %v685 = vrot.slane %v648, 5
      %v686 = vrot.slane %v685, 4
      %v687 = vrot.slane %v649, 5
      %v688 = vsel %vm680, %v686, %v687
      %v689 = vrot.slane %v650, 5
      %v690 = vrot.slane %v689, 4
      %v691 = vrot.slane %v651, 5
      %v692 = vsel %vm680, %v690, %v691
      %v693 = vrot.slane %v652, 5
      %v694 = vrot.slane %v693, 4
      %v695 = vrot.slane %v653, 5
      %v696 = vsel %vm680, %v694, %v695
      %v697 = vrot.slane %v654, 5
      %v698 = vrot.slane %v697, 4
      %v699 = vrot.slane %v655, 5
      %v700 = vsel %vm680, %v698, %v699
      %v701 = vrot.slane %v656, 5
      %v702 = vrot.slane %v701, 4
      %v703 = vrot.slane %v657, 5
      %v704 = vsel %vm680, %v702, %v703
      %v705 = vrot.slane %v658, 5
      %v706 = vrot.slane %v705, 4
      %v707 = vrot.slane %v659, 5
      %v708 = vsel %vm680, %v706, %v707
      %v709 = vrot.slane %v660, 5
      %v710 = vrot.slane %v709, 4
      %v711 = vrot.slane %v661, 5
      %v712 = vsel %vm680, %v710, %v711
      %721 = vst.msk [vmem:[#allocation4 + $0x4] sm:$0xf] %vm301, %v684
      %722 = vst.msk [vmem:[#allocation4 + $0x18] sm:$0xf] %vm301, %v688
      %723 = vst.msk [vmem:[#allocation4 + $0x2c] sm:$0xf] %vm301, %v692
      %724 = vst.msk [vmem:[#allocation4 + $0x40] sm:$0xf] %vm301, %v696
      %725 = vst.msk [vmem:[#allocation4 + $0x54] sm:$0xf] %vm301, %v700
      %726 = vst.msk [vmem:[#allocation4 + $0x68] sm:$0xf] %vm301, %v704
      %727 = vst.msk [vmem:[#allocation4 + $0x7c] sm:$0xf] %vm301, %v708
      %728 = vst.msk [vmem:[#allocation4 + $0x90] sm:$0xf] %vm301, %v712
      %v729 = vld [vmem:[%s411] sm:$0xf]
      %v730 = vld [vmem:[%s411 + $0x8] sm:$0xf]
      %v731 = vld [vmem:[%s411 + $0x10] sm:$0xf]
      %v732 = vld [vmem:[%s411 + $0x18] sm:$0xf]
      %v733 = vld [vmem:[%s411 + $0x20] sm:$0xf]
      %v734 = vld [vmem:[%s411 + $0x28] sm:$0xf]
      %v735 = vld [vmem:[%s411 + $0x30] sm:$0xf]
      %v736 = vld [vmem:[%s411 + $0x38] sm:$0xf]
      %745 = vrot.lane.b32.xlu0 %v729, 64
      %v746 = vpop.permute.xlu0 %745
      %747 = vrot.lane.b32.xlu0 %v730, 64
      %v748 = vpop.permute.xlu0 %747
      %749 = vrot.lane.b32.xlu0 %v731, 64
      %v750 = vpop.permute.xlu0 %749
      %751 = vrot.lane.b32.xlu0 %v732, 64
      %v752 = vpop.permute.xlu0 %751
      %753 = vrot.lane.b32.xlu0 %v733, 64
      %v754 = vpop.permute.xlu0 %753
      %755 = vrot.lane.b32.xlu0 %v734, 64
      %v756 = vpop.permute.xlu0 %755
      %757 = vrot.lane.b32.xlu0 %v735, 64
      %v758 = vpop.permute.xlu0 %757
      %759 = vrot.lane.b32.xlu0 %v736, 64
      %v760 = vpop.permute.xlu0 %759
      %769 = vst.msk [vmem:[#allocation4 + $0x4] sm:$0xf] %vm637, %v746
      %770 = vst.msk [vmem:[#allocation4 + $0x18] sm:$0xf] %vm637, %v748
      %771 = vst.msk [vmem:[#allocation4 + $0x2c] sm:$0xf] %vm637, %v750
      %772 = vst.msk [vmem:[#allocation4 + $0x40] sm:$0xf] %vm637, %v752
      %773 = vst.msk [vmem:[#allocation4 + $0x54] sm:$0xf] %vm637, %v754
      %774 = vst.msk [vmem:[#allocation4 + $0x68] sm:$0xf] %vm637, %v756
      %775 = vst.msk [vmem:[#allocation4 + $0x7c] sm:$0xf] %vm637, %v758
      %776 = vst.msk [vmem:[#allocation4 + $0x90] sm:$0xf] %vm637, %v760
      %v777 = vld [vmem:[%s411] sm:$0xf]
      %v778 = vld [vmem:[%s411 + $0x4] sm:$0x1]
      %v779 = vld [vmem:[%s411 + $0x8] sm:$0xf]
      %v780 = vld [vmem:[%s411 + $0xc] sm:$0x1]
      %v781 = vld [vmem:[%s411 + $0x10] sm:$0xf]
      %v782 = vld [vmem:[%s411 + $0x14] sm:$0x1]
      %v783 = vld [vmem:[%s411 + $0x18] sm:$0xf]
      %v784 = vld [vmem:[%s411 + $0x1c] sm:$0x1]
      %v785 = vld [vmem:[%s411 + $0x20] sm:$0xf]
      %v786 = vld [vmem:[%s411 + $0x24] sm:$0x1]
      %v787 = vld [vmem:[%s411 + $0x28] sm:$0xf]
      %v788 = vld [vmem:[%s411 + $0x2c] sm:$0x1]
      %v789 = vld [vmem:[%s411 + $0x30] sm:$0xf]
      %v790 = vld [vmem:[%s411 + $0x34] sm:$0x1]
      %v791 = vld [vmem:[%s411 + $0x38] sm:$0xf]
      %v792 = vld [vmem:[%s411 + $0x3c] sm:$0x1]
      %v794 = vshrl.u32 %v777, 16
      %v796 = vrot.slane %v794, 4
      %v797 = vshll.u32 %v777, 16
      %v799 = vrot.slane %v797, 5
      %v800 = vor.u32 %v796, %v799
      %v801 = vrot.slane %v800, 4
      %v803 = vshll.u32 %v778, 16
      %v805 = vrot.slane %v803, 5
      %v806 = vsel %vm500, %v801, %v805
      %v808 = vshrl.u32 %v779, 16
      %v810 = vrot.slane %v808, 4
      %v811 = vshll.u32 %v779, 16
      %v813 = vrot.slane %v811, 5
      %v814 = vor.u32 %v810, %v813
      %v815 = vrot.slane %v814, 4
      %v817 = vshll.u32 %v780, 16
      %v819 = vrot.slane %v817, 5
      %v820 = vsel %vm500, %v815, %v819
      %v822 = vshrl.u32 %v781, 16
      %v824 = vrot.slane %v822, 4
      %v825 = vshll.u32 %v781, 16
      %v827 = vrot.slane %v825, 5
      %v828 = vor.u32 %v824, %v827
      %v829 = vrot.slane %v828, 4
      %v831 = vshll.u32 %v782, 16
      %v833 = vrot.slane %v831, 5
      %v834 = vsel %vm500, %v829, %v833
      %v836 = vshrl.u32 %v783, 16
      %v838 = vrot.slane %v836, 4
      %v839 = vshll.u32 %v783, 16
      %v841 = vrot.slane %v839, 5
      %v842 = vor.u32 %v838, %v841
      %v843 = vrot.slane %v842, 4
      %v845 = vshll.u32 %v784, 16
      %v847 = vrot.slane %v845, 5
      %v848 = vsel %vm500, %v843, %v847
      %v850 = vshrl.u32 %v785, 16
      %v852 = vrot.slane %v850, 4
      %v853 = vshll.u32 %v785, 16
      %v855 = vrot.slane %v853, 5
      %v856 = vor.u32 %v852, %v855
      %v857 = vrot.slane %v856, 4
      %v859 = vshll.u32 %v786, 16
      %v861 = vrot.slane %v859, 5
      %v862 = vsel %vm500, %v857, %v861
      %v864 = vshrl.u32 %v787, 16
      %v866 = vrot.slane %v864, 4
      %v867 = vshll.u32 %v787, 16
      %v869 = vrot.slane %v867, 5
      %v870 = vor.u32 %v866, %v869
      %v871 = vrot.slane %v870, 4
      %v873 = vshll.u32 %v788, 16
      %v875 = vrot.slane %v873, 5
      %v876 = vsel %vm500, %v871, %v875
      %v878 = vshrl.u32 %v789, 16
      %v880 = vrot.slane %v878, 4
      %v881 = vshll.u32 %v789, 16
      %v883 = vrot.slane %v881, 5
      %v884 = vor.u32 %v880, %v883
      %v885 = vrot.slane %v884, 4
      %v887 = vshll.u32 %v790, 16
      %v889 = vrot.slane %v887, 5
      %v890 = vsel %vm500, %v885, %v889
      %v892 = vshrl.u32 %v791, 16
      %v894 = vrot.slane %v892, 4
      %v895 = vshll.u32 %v791, 16
      %v897 = vrot.slane %v895, 5
      %v898 = vor.u32 %v894, %v897
      %v899 = vrot.slane %v898, 4
      %v901 = vshll.u32 %v792, 16
      %v903 = vrot.slane %v901, 5
      %v904 = vsel %vm500, %v899, %v903
      %913 = vst.msk [vmem:[#allocation4 + $0x8] sm:$0xf] %vm301, %v806
      %914 = vst.msk [vmem:[#allocation4 + $0x1c] sm:$0xf] %vm301, %v820
      %915 = vst.msk [vmem:[#allocation4 + $0x30] sm:$0xf] %vm301, %v834
      %916 = vst.msk [vmem:[#allocation4 + $0x44] sm:$0xf] %vm301, %v848
      %917 = vst.msk [vmem:[#allocation4 + $0x58] sm:$0xf] %vm301, %v862
      %918 = vst.msk [vmem:[#allocation4 + $0x6c] sm:$0xf] %vm301, %v876
      %919 = vst.msk [vmem:[#allocation4 + $0x80] sm:$0xf] %vm301, %v890
      %920 = vst.msk [vmem:[#allocation4 + $0x94] sm:$0xf] %vm301, %v904
      %v921 = vld [vmem:[%s411] sm:$0xe]
      %v922 = vld [vmem:[%s411 + $0x4] sm:$0x1]
      %v923 = vld [vmem:[%s411 + $0x8] sm:$0xe]
      %v924 = vld [vmem:[%s411 + $0xc] sm:$0x1]
      %v925 = vld [vmem:[%s411 + $0x10] sm:$0xe]
      %v926 = vld [vmem:[%s411 + $0x14] sm:$0x1]
      %v927 = vld [vmem:[%s411 + $0x18] sm:$0xe]
      %v928 = vld [vmem:[%s411 + $0x1c] sm:$0x1]
      %v929 = vld [vmem:[%s411 + $0x20] sm:$0xe]
      %v930 = vld [vmem:[%s411 + $0x24] sm:$0x1]
      %v931 = vld [vmem:[%s411 + $0x28] sm:$0xe]
      %v932 = vld [vmem:[%s411 + $0x2c] sm:$0x1]
      %v933 = vld [vmem:[%s411 + $0x30] sm:$0xe]
      %v934 = vld [vmem:[%s411 + $0x34] sm:$0x1]
      %v935 = vld [vmem:[%s411 + $0x38] sm:$0xe]
      %v936 = vld [vmem:[%s411 + $0x3c] sm:$0x1]
      %v953 = vrot.slane %v921, 5
      %v954 = vrot.slane %v953, 4
      %v955 = vrot.slane %v922, 5
      %v956 = vsel %vm680, %v954, %v955
      %v957 = vrot.slane %v923, 5
      %v958 = vrot.slane %v957, 4
      %v959 = vrot.slane %v924, 5
      %v960 = vsel %vm680, %v958, %v959
      %v961 = vrot.slane %v925, 5
      %v962 = vrot.slane %v961, 4
      %v963 = vrot.slane %v926, 5
      %v964 = vsel %vm680, %v962, %v963
      %v965 = vrot.slane %v927, 5
      %v966 = vrot.slane %v965, 4
      %v967 = vrot.slane %v928, 5
      %v968 = vsel %vm680, %v966, %v967
      %v969 = vrot.slane %v929, 5
      %v970 = vrot.slane %v969, 4
      %v971 = vrot.slane %v930, 5
      %v972 = vsel %vm680, %v970, %v971
      %v973 = vrot.slane %v931, 5
      %v974 = vrot.slane %v973, 4
      %v975 = vrot.slane %v932, 5
      %v976 = vsel %vm680, %v974, %v975
      %v977 = vrot.slane %v933, 5
      %v978 = vrot.slane %v977, 4
      %v979 = vrot.slane %v934, 5
      %v980 = vsel %vm680, %v978, %v979
      %v981 = vrot.slane %v935, 5
      %v982 = vrot.slane %v981, 4
      %v983 = vrot.slane %v936, 5
      %v984 = vsel %vm680, %v982, %v983
      %985 = vrot.lane.b32.xlu0 %v956, 64
      %v986 = vpop.permute.xlu0 %985
      %987 = vrot.lane.b32.xlu0 %v960, 64
      %v988 = vpop.permute.xlu0 %987
      %989 = vrot.lane.b32.xlu0 %v964, 64
      %v990 = vpop.permute.xlu0 %989
      %991 = vrot.lane.b32.xlu0 %v968, 64
      %v992 = vpop.permute.xlu0 %991
      %993 = vrot.lane.b32.xlu0 %v972, 64
      %v994 = vpop.permute.xlu0 %993
      %995 = vrot.lane.b32.xlu0 %v976, 64
      %v996 = vpop.permute.xlu0 %995
      %997 = vrot.lane.b32.xlu0 %v980, 64
      %v998 = vpop.permute.xlu0 %997
      %999 = vrot.lane.b32.xlu0 %v984, 64
      %v1000 = vpop.permute.xlu0 %999
      %1009 = vst.msk [vmem:[#allocation4 + $0x8] sm:$0xf] %vm637, %v986
      %1010 = vst.msk [vmem:[#allocation4 + $0x1c] sm:$0xf] %vm637, %v988
      %1011 = vst.msk [vmem:[#allocation4 + $0x30] sm:$0xf] %vm637, %v990
      %1012 = vst.msk [vmem:[#allocation4 + $0x44] sm:$0xf] %vm637, %v992
      %1013 = vst.msk [vmem:[#allocation4 + $0x58] sm:$0xf] %vm637, %v994
      %1014 = vst.msk [vmem:[#allocation4 + $0x6c] sm:$0xf] %vm637, %v996
      %1015 = vst.msk [vmem:[#allocation4 + $0x80] sm:$0xf] %vm637, %v998
      %1016 = vst.msk [vmem:[#allocation4 + $0x94] sm:$0xf] %vm637, %v1000
      %s1017 = scalar_lea.vmem [#allocation3], 16
      %v1018 = vld [vmem:[%s1017] sm:$0xf]
      %v1019 = vld [vmem:[%s1017 + $0x8] sm:$0xf]
      %v1020 = vld [vmem:[%s1017 + $0x10] sm:$0xf]
      %v1021 = vld [vmem:[%s1017 + $0x18] sm:$0xf]
      %v1022 = vld [vmem:[%s1017 + $0x20] sm:$0xf]
      %v1023 = vld [vmem:[%s1017 + $0x28] sm:$0xf]
      %v1024 = vld [vmem:[%s1017 + $0x30] sm:$0xf]
      %v1025 = vld [vmem:[%s1017 + $0x38] sm:$0xf]
      %1026 = vst.msk [vmem:[#allocation4 + $0xc] sm:$0xf] %vm301, %v1018
      %1027 = vst.msk [vmem:[#allocation4 + $0x20] sm:$0xf] %vm301, %v1019
      %1028 = vst.msk [vmem:[#allocation4 + $0x34] sm:$0xf] %vm301, %v1020
      %1029 = vst.msk [vmem:[#allocation4 + $0x48] sm:$0xf] %vm301, %v1021
      %1030 = vst.msk [vmem:[#allocation4 + $0x5c] sm:$0xf] %vm301, %v1022
      %1031 = vst.msk [vmem:[#allocation4 + $0x70] sm:$0xf] %vm301, %v1023
      %1032 = vst.msk [vmem:[#allocation4 + $0x84] sm:$0xf] %vm301, %v1024
      %1033 = vst.msk [vmem:[#allocation4 + $0x98] sm:$0xf] %vm301, %v1025
      %v1034 = vld [vmem:[%s1017] sm:$0xf]
      %v1035 = vld [vmem:[%s1017 + $0x4] sm:$0x1]
      %v1036 = vld [vmem:[%s1017 + $0x8] sm:$0xf]
      %v1037 = vld [vmem:[%s1017 + $0xc] sm:$0x1]
      %v1038 = vld [vmem:[%s1017 + $0x10] sm:$0xf]
      %v1039 = vld [vmem:[%s1017 + $0x14] sm:$0x1]
      %v1040 = vld [vmem:[%s1017 + $0x18] sm:$0xf]
      %v1041 = vld [vmem:[%s1017 + $0x1c] sm:$0x1]
      %v1042 = vld [vmem:[%s1017 + $0x20] sm:$0xf]
      %v1043 = vld [vmem:[%s1017 + $0x24] sm:$0x1]
      %v1044 = vld [vmem:[%s1017 + $0x28] sm:$0xf]
      %v1045 = vld [vmem:[%s1017 + $0x2c] sm:$0x1]
      %v1046 = vld [vmem:[%s1017 + $0x30] sm:$0xf]
      %v1047 = vld [vmem:[%s1017 + $0x34] sm:$0x1]
      %v1048 = vld [vmem:[%s1017 + $0x38] sm:$0xf]
      %v1049 = vld [vmem:[%s1017 + $0x3c] sm:$0x1]
      %v1051 = vshrl.u32 %v1034, 16
      %v1053 = vrot.slane %v1051, 4
      %v1054 = vshll.u32 %v1034, 16
      %v1056 = vrot.slane %v1054, 5
      %v1057 = vor.u32 %v1053, %v1056
      %v1058 = vrot.slane %v1057, 4
      %v1060 = vshll.u32 %v1035, 16
      %v1062 = vrot.slane %v1060, 5
      %v1063 = vsel %vm500, %v1058, %v1062
      %v1065 = vshrl.u32 %v1036, 16
      %v1067 = vrot.slane %v1065, 4
      %v1068 = vshll.u32 %v1036, 16
      %v1070 = vrot.slane %v1068, 5
      %v1071 = vor.u32 %v1067, %v1070
      %v1072 = vrot.slane %v1071, 4
      %v1074 = vshll.u32 %v1037, 16
      %v1076 = vrot.slane %v1074, 5
      %v1077 = vsel %vm500, %v1072, %v1076
      %v1079 = vshrl.u32 %v1038, 16
      %v1081 = vrot.slane %v1079, 4
      %v1082 = vshll.u32 %v1038, 16
      %v1084 = vrot.slane %v1082, 5
      %v1085 = vor.u32 %v1081, %v1084
      %v1086 = vrot.slane %v1085, 4
      %v1088 = vshll.u32 %v1039, 16
      %v1090 = vrot.slane %v1088, 5
      %v1091 = vsel %vm500, %v1086, %v1090
      %v1093 = vshrl.u32 %v1040, 16
      %v1095 = vrot.slane %v1093, 4
      %v1096 = vshll.u32 %v1040, 16
      %v1098 = vrot.slane %v1096, 5
      %v1099 = vor.u32 %v1095, %v1098
      %v1100 = vrot.slane %v1099, 4
      %v1102 = vshll.u32 %v1041, 16
      %v1104 = vrot.slane %v1102, 5
      %v1105 = vsel %vm500, %v1100, %v1104
      %v1107 = vshrl.u32 %v1042, 16
      %v1109 = vrot.slane %v1107, 4
      %v1110 = vshll.u32 %v1042, 16
      %v1112 = vrot.slane %v1110, 5
      %v1113 = vor.u32 %v1109, %v1112
      %v1114 = vrot.slane %v1113, 4
      %v1116 = vshll.u32 %v1043, 16
      %v1118 = vrot.slane %v1116, 5
      %v1119 = vsel %vm500, %v1114, %v1118
      %v1121 = vshrl.u32 %v1044, 16
      %v1123 = vrot.slane %v1121, 4
      %v1124 = vshll.u32 %v1044, 16
      %v1126 = vrot.slane %v1124, 5
      %v1127 = vor.u32 %v1123, %v1126
      %v1128 = vrot.slane %v1127, 4
      %v1130 = vshll.u32 %v1045, 16
      %v1132 = vrot.slane %v1130, 5
      %v1133 = vsel %vm500, %v1128, %v1132
      %v1135 = vshrl.u32 %v1046, 16
      %v1137 = vrot.slane %v1135, 4
      %v1138 = vshll.u32 %v1046, 16
      %v1140 = vrot.slane %v1138, 5
      %v1141 = vor.u32 %v1137, %v1140
      %v1142 = vrot.slane %v1141, 4
      %v1144 = vshll.u32 %v1047, 16
      %v1146 = vrot.slane %v1144, 5
      %v1147 = vsel %vm500, %v1142, %v1146
      %v1149 = vshrl.u32 %v1048, 16
      %v1151 = vrot.slane %v1149, 4
      %v1152 = vshll.u32 %v1048, 16
      %v1154 = vrot.slane %v1152, 5
      %v1155 = vor.u32 %v1151, %v1154
      %v1156 = vrot.slane %v1155, 4
      %v1158 = vshll.u32 %v1049, 16
      %v1160 = vrot.slane %v1158, 5
      %v1161 = vsel %vm500, %v1156, %v1160
      %1162 = vrot.lane.b32.xlu0 %v1063, 64
      %v1163 = vpop.permute.xlu0 %1162
      %1164 = vrot.lane.b32.xlu0 %v1077, 64
      %v1165 = vpop.permute.xlu0 %1164
      %1166 = vrot.lane.b32.xlu0 %v1091, 64
      %v1167 = vpop.permute.xlu0 %1166
      %1168 = vrot.lane.b32.xlu0 %v1105, 64
      %v1169 = vpop.permute.xlu0 %1168
      %1170 = vrot.lane.b32.xlu0 %v1119, 64
      %v1171 = vpop.permute.xlu0 %1170
      %1172 = vrot.lane.b32.xlu0 %v1133, 64
      %v1173 = vpop.permute.xlu0 %1172
      %1174 = vrot.lane.b32.xlu0 %v1147, 64
      %v1175 = vpop.permute.xlu0 %1174
      %1176 = vrot.lane.b32.xlu0 %v1161, 64
      %v1177 = vpop.permute.xlu0 %1176
      %1186 = vst.msk [vmem:[#allocation4 + $0xc] sm:$0xf] %vm637, %v1163
      %1187 = vst.msk [vmem:[#allocation4 + $0x20] sm:$0xf] %vm637, %v1165
      %1188 = vst.msk [vmem:[#allocation4 + $0x34] sm:$0xf] %vm637, %v1167
      %1189 = vst.msk [vmem:[#allocation4 + $0x48] sm:$0xf] %vm637, %v1169
      %1190 = vst.msk [vmem:[#allocation4 + $0x5c] sm:$0xf] %vm637, %v1171
      %1191 = vst.msk [vmem:[#allocation4 + $0x70] sm:$0xf] %vm637, %v1173
      %1192 = vst.msk [vmem:[#allocation4 + $0x84] sm:$0xf] %vm637, %v1175
      %1193 = vst.msk [vmem:[#allocation4 + $0x98] sm:$0xf] %vm637, %v1177
      %v1194 = vld [vmem:[%s1017] sm:$0xe]
      %v1195 = vld [vmem:[%s1017 + $0x4] sm:$0x1]
      %v1196 = vld [vmem:[%s1017 + $0x8] sm:$0xe]
      %v1197 = vld [vmem:[%s1017 + $0xc] sm:$0x1]
      %v1198 = vld [vmem:[%s1017 + $0x10] sm:$0xe]
      %v1199 = vld [vmem:[%s1017 + $0x14] sm:$0x1]
      %v1200 = vld [vmem:[%s1017 + $0x18] sm:$0xe]
      %v1201 = vld [vmem:[%s1017 + $0x1c] sm:$0x1]
      %v1202 = vld [vmem:[%s1017 + $0x20] sm:$0xe]
      %v1203 = vld [vmem:[%s1017 + $0x24] sm:$0x1]
      %v1204 = vld [vmem:[%s1017 + $0x28] sm:$0xe]
      %v1205 = vld [vmem:[%s1017 + $0x2c] sm:$0x1]
      %v1206 = vld [vmem:[%s1017 + $0x30] sm:$0xe]
      %v1207 = vld [vmem:[%s1017 + $0x34] sm:$0x1]
      %v1208 = vld [vmem:[%s1017 + $0x38] sm:$0xe]
      %v1209 = vld [vmem:[%s1017 + $0x3c] sm:$0x1]
      %v1226 = vrot.slane %v1194, 5
      %v1227 = vrot.slane %v1226, 4
      %v1228 = vrot.slane %v1195, 5
      %v1229 = vsel %vm680, %v1227, %v1228
      %v1230 = vrot.slane %v1196, 5
      %v1231 = vrot.slane %v1230, 4
      %v1232 = vrot.slane %v1197, 5
      %v1233 = vsel %vm680, %v1231, %v1232
      %v1234 = vrot.slane %v1198, 5
      %v1235 = vrot.slane %v1234, 4
      %v1236 = vrot.slane %v1199, 5
      %v1237 = vsel %vm680, %v1235, %v1236
      %v1238 = vrot.slane %v1200, 5
      %v1239 = vrot.slane %v1238, 4
      %v1240 = vrot.slane %v1201, 5
      %v1241 = vsel %vm680, %v1239, %v1240
      %v1242 = vrot.slane %v1202, 5
      %v1243 = vrot.slane %v1242, 4
      %v1244 = vrot.slane %v1203, 5
      %v1245 = vsel %vm680, %v1243, %v1244
      %v1246 = vrot.slane %v1204, 5
      %v1247 = vrot.slane %v1246, 4
      %v1248 = vrot.slane %v1205, 5
      %v1249 = vsel %vm680, %v1247, %v1248
      %v1250 = vrot.slane %v1206, 5
      %v1251 = vrot.slane %v1250, 4
      %v1252 = vrot.slane %v1207, 5
      %v1253 = vsel %vm680, %v1251, %v1252
      %v1254 = vrot.slane %v1208, 5
      %v1255 = vrot.slane %v1254, 4
      %v1256 = vrot.slane %v1209, 5
      %v1257 = vsel %vm680, %v1255, %v1256
      %1266 = vst.msk [vmem:[#allocation4 + $0x10] sm:$0xf] %vm301, %v1229
      %1267 = vst.msk [vmem:[#allocation4 + $0x24] sm:$0xf] %vm301, %v1233
      %1268 = vst.msk [vmem:[#allocation4 + $0x38] sm:$0xf] %vm301, %v1237
      %1269 = vst.msk [vmem:[#allocation4 + $0x4c] sm:$0xf] %vm301, %v1241
      %1270 = vst.msk [vmem:[#allocation4 + $0x60] sm:$0xf] %vm301, %v1245
      %1271 = vst.msk [vmem:[#allocation4 + $0x74] sm:$0xf] %vm301, %v1249
      %1272 = vst.msk [vmem:[#allocation4 + $0x88] sm:$0xf] %vm301, %v1253
      %1273 = vst.msk [vmem:[#allocation4 + $0x9c] sm:$0xf] %vm301, %v1257
      %v1274 = vld [vmem:[#allocation4] sm:$0xff]
      %v1275 = vld [vmem:[#allocation4 + $0x8] sm:$0xff]
      %v1276 = vld [vmem:[#allocation4 + $0x10] sm:$0xf]
      %v1277 = vld [vmem:[#allocation4 + $0x14] sm:$0xff]
      %v1278 = vld [vmem:[#allocation4 + $0x1c] sm:$0xff]
      %v1279 = vld [vmem:[#allocation4 + $0x24] sm:$0xf]
      %v1280 = vld [vmem:[#allocation4 + $0x28] sm:$0xff]
      %v1281 = vld [vmem:[#allocation4 + $0x30] sm:$0xff]
      %v1282 = vld [vmem:[#allocation4 + $0x38] sm:$0xf]
      %v1283 = vld [vmem:[#allocation4 + $0x3c] sm:$0xff]
      %v1284 = vld [vmem:[#allocation4 + $0x44] sm:$0xff]
      %v1285 = vld [vmem:[#allocation4 + $0x4c] sm:$0xf]
      %v1286 = vld [vmem:[#allocation4 + $0x50] sm:$0xff]
      %v1287 = vld [vmem:[#allocation4 + $0x58] sm:$0xff]
      %v1288 = vld [vmem:[#allocation4 + $0x60] sm:$0xf]
      %v1289 = vld [vmem:[#allocation4 + $0x64] sm:$0xff]
      %v1290 = vld [vmem:[#allocation4 + $0x6c] sm:$0xff]
      %v1291 = vld [vmem:[#allocation4 + $0x74] sm:$0xf]
      %v1292 = vld [vmem:[#allocation4 + $0x78] sm:$0xff]
      %v1293 = vld [vmem:[#allocation4 + $0x80] sm:$0xff]
      %v1294 = vld [vmem:[#allocation4 + $0x88] sm:$0xf]
      %v1295 = vld [vmem:[#allocation4 + $0x8c] sm:$0xff]
      %v1296 = vld [vmem:[#allocation4 + $0x94] sm:$0xff]
      %v1297 = vld [vmem:[#allocation4 + $0x9c] sm:$0xf]
      %v1298 = vld [vmem:[%s3] sm:$0xf]
      %v1299 = vld [vmem:[%s3 + $0x4] sm:$0xf]
      %v1300 = vld [vmem:[%s3 + $0x8] sm:$0xf]
      %v1301 = vld [vmem:[%s3 + $0xc] sm:$0xf]
      %v1302 = vld [vmem:[%s3 + $0x10] sm:$0xf]
      %v1303 = vld [vmem:[%s3 + $0x14] sm:$0xf]
      %v1304 = vld [vmem:[%s3 + $0x18] sm:$0xf]
      %v1305 = vld [vmem:[%s3 + $0x1c] sm:$0xf]
      %v1306 = vld [vmem:[%s3 + $0x20] sm:$0xf]
      %v1307 = vld [vmem:[%s3 + $0x24] sm:$0xf]
      %v1308 = vld [vmem:[%s3 + $0x28] sm:$0xf]
      %v1309 = vld [vmem:[%s3 + $0x2c] sm:$0xf]
      %v1310 = vld [vmem:[%s3 + $0x30] sm:$0xf]
      %v1311 = vld [vmem:[%s3 + $0x34] sm:$0xf]
      %v1312 = vld [vmem:[%s3 + $0x38] sm:$0xf]
      %v1313 = vld [vmem:[%s3 + $0x3c] sm:$0xf]
      %v1314 = vld [vmem:[%s3 + $0x40] sm:$0xf]
      %v1315 = vld [vmem:[%s3 + $0x44] sm:$0xf]
      %v1316 = vld [vmem:[%s3 + $0x48] sm:$0xf]
      %v1317 = vld [vmem:[%s3 + $0x4c] sm:$0xf]
      %v1318 = vld [vmem:[%s3 + $0x50] sm:$0xf]
      %v1319 = vld [vmem:[%s3 + $0x54] sm:$0xf]
      %v1320 = vld [vmem:[%s3 + $0x58] sm:$0xf]
      %v1321 = vld [vmem:[%s3 + $0x5c] sm:$0xf]
      %v1322 = vld [vmem:[%s3 + $0x60] sm:$0xf]
      %v1323 = vld [vmem:[%s3 + $0x64] sm:$0xf]
      %v1324 = vld [vmem:[%s3 + $0x68] sm:$0xf]
      %v1325 = vld [vmem:[%s3 + $0x6c] sm:$0xf]
      %v1326 = vld [vmem:[%s3 + $0x70] sm:$0xf]
      %v1327 = vld [vmem:[%s3 + $0x74] sm:$0xf]
      %v1328 = vld [vmem:[%s3 + $0x78] sm:$0xf]
      %v1329 = vld [vmem:[%s3 + $0x7c] sm:$0xf]
      %v1330 = vld [vmem:[%s3 + $0x80] sm:$0xf]
      %v1331 = vld [vmem:[%s3 + $0x84] sm:$0xf]
      %v1332 = vld [vmem:[%s3 + $0x88] sm:$0xf]
      %v1333 = vld [vmem:[%s3 + $0x8c] sm:$0xf]
      %v1334 = vld [vmem:[%s3 + $0x90] sm:$0xf]
      %v1335 = vld [vmem:[%s3 + $0x94] sm:$0xf]
      %v1336 = vld [vmem:[%s3 + $0x98] sm:$0xf]
      %v1337 = vld [vmem:[%s3 + $0x9c] sm:$0xf]
      %v1338 = vld [vmem:[%s3 + $0xa0] sm:$0xf]
      %v1339 = vld [vmem:[%s3 + $0xa4] sm:$0xf]
      %v1340 = vld [vmem:[%s3 + $0xa8] sm:$0xf]
      %v1341 = vld [vmem:[%s3 + $0xac] sm:$0xf]
      %v1342 = vld [vmem:[%s3 + $0xb0] sm:$0xf]
      %v1343 = vld [vmem:[%s3 + $0xb4] sm:$0xf]
      %v1344 = vld [vmem:[%s3 + $0xb8] sm:$0xf]
      %v1345 = vld [vmem:[%s3 + $0xbc] sm:$0xf]
      %v1346 = vld [vmem:[%s3 + $0xc0] sm:$0xf]
      %v1347 = vld [vmem:[%s3 + $0xc4] sm:$0xf]
      %v1348 = vld [vmem:[%s3 + $0xc8] sm:$0xf]
      %v1349 = vld [vmem:[%s3 + $0xcc] sm:$0xf]
      %v1350 = vld [vmem:[%s3 + $0xd0] sm:$0xf]
      %v1351 = vld [vmem:[%s3 + $0xd4] sm:$0xf]
      %v1352 = vld [vmem:[%s3 + $0xd8] sm:$0xf]
      %v1353 = vld [vmem:[%s3 + $0xdc] sm:$0xf]
      %v1354 = vld [vmem:[%s3 + $0xe0] sm:$0xf]
      %v1355 = vld [vmem:[%s3 + $0xe4] sm:$0xf]
      %v1356 = vld [vmem:[%s3 + $0xe8] sm:$0xf]
      %v1357 = vld [vmem:[%s3 + $0xec] sm:$0xf]
      %v1358 = vld [vmem:[%s3 + $0xf0] sm:$0xf]
      %v1359 = vld [vmem:[%s3 + $0xf4] sm:$0xf]
      %v1360 = vld [vmem:[%s3 + $0xf8] sm:$0xf]
      %v1361 = vld [vmem:[%s3 + $0xfc] sm:$0xf]
      %v1362 = vld [vmem:[%s3 + $0x100] sm:$0xf]
      %v1363 = vld [vmem:[%s3 + $0x104] sm:$0xf]
      %v1364 = vld [vmem:[%s3 + $0x108] sm:$0xf]
      %v1365 = vld [vmem:[%s3 + $0x10c] sm:$0xf]
      %v1366 = vld [vmem:[%s3 + $0x110] sm:$0xf]
      %v1367 = vld [vmem:[%s3 + $0x114] sm:$0xf]
      %v1368 = vld [vmem:[%s3 + $0x118] sm:$0xf]
      %v1369 = vld [vmem:[%s3 + $0x11c] sm:$0xf]
      %v1370 = vperm.slane %v300, 0
      %v1395 = vunpack.c.l.b16 %v1274
      %v1396 = vunpack.c.h.b16 %v1274
      %v1397 = vunpack.c.l.b16 %v1275
      %v1398 = vunpack.c.h.b16 %v1275
      %v1399 = vunpack.c.l.b16 %v1276
      %v1400 = vunpack.c.l.b16 %v1277
      %v1401 = vunpack.c.h.b16 %v1277
      %v1402 = vunpack.c.l.b16 %v1278
      %v1403 = vunpack.c.h.b16 %v1278
      %v1404 = vunpack.c.l.b16 %v1279
      %v1405 = vunpack.c.l.b16 %v1280
      %v1406 = vunpack.c.h.b16 %v1280
      %v1407 = vunpack.c.l.b16 %v1281
      %v1408 = vunpack.c.h.b16 %v1281
      %v1409 = vunpack.c.l.b16 %v1282
      %v1410 = vunpack.c.l.b16 %v1283
      %v1411 = vunpack.c.h.b16 %v1283
      %v1412 = vunpack.c.l.b16 %v1284
      %v1413 = vunpack.c.h.b16 %v1284
      %v1414 = vunpack.c.l.b16 %v1285
      %v1415 = vunpack.c.l.b16 %v1286
      %v1416 = vunpack.c.h.b16 %v1286
      %v1417 = vunpack.c.l.b16 %v1287
      %v1418 = vunpack.c.h.b16 %v1287
      %v1419 = vunpack.c.l.b16 %v1288
      %v1420 = vunpack.c.l.b16 %v1289
      %v1421 = vunpack.c.h.b16 %v1289
      %v1422 = vunpack.c.l.b16 %v1290
      %v1423 = vunpack.c.h.b16 %v1290
      %v1424 = vunpack.c.l.b16 %v1291
      %v1425 = vunpack.c.l.b16 %v1292
      %v1426 = vunpack.c.h.b16 %v1292
      %v1427 = vunpack.c.l.b16 %v1293
      %v1428 = vunpack.c.h.b16 %v1293
      %v1429 = vunpack.c.l.b16 %v1294
      %v1430 = vunpack.c.l.b16 %v1295
      %v1431 = vunpack.c.h.b16 %v1295
      %v1432 = vunpack.c.l.b16 %v1296
      %v1433 = vunpack.c.h.b16 %v1296
      %v1434 = vunpack.c.l.b16 %v1297
      %v1435 = vpack.c.b16 %v1400, %v1395
      %v1436 = vpack.c.b16 %v1401, %v1396
      %v1437 = vpack.c.b16 %v1402, %v1397
      %v1438 = vpack.c.b16 %v1403, %v1398
      %v1439 = vpack.c.b16 %v1404, %v1399
      %v1440 = vpack.c.b16 %v1410, %v1405
      %v1441 = vpack.c.b16 %v1411, %v1406
      %v1442 = vpack.c.b16 %v1412, %v1407
      %v1443 = vpack.c.b16 %v1413, %v1408
      %v1444 = vpack.c.b16 %v1414, %v1409
      %v1445 = vpack.c.b16 %v1420, %v1415
      %v1446 = vpack.c.b16 %v1421, %v1416
      %v1447 = vpack.c.b16 %v1422, %v1417
      %v1448 = vpack.c.b16 %v1423, %v1418
      %v1449 = vpack.c.b16 %v1424, %v1419
      %v1450 = vpack.c.b16 %v1430, %v1425
      %v1451 = vpack.c.b16 %v1431, %v1426
      %v1452 = vpack.c.b16 %v1432, %v1427
      %v1453 = vpack.c.b16 %v1433, %v1428
      %v1454 = vpack.c.b16 %v1434, %v1429
      %v1543 = vunpack.c.l.b16 %v1298
      %v1544 = vunpack.c.l.b16 %v1299
      %v1545 = vunpack.c.l.b16 %v1300
      %v1546 = vunpack.c.l.b16 %v1301
      %v1547 = vunpack.c.l.b16 %v1302
      %v1548 = vunpack.c.l.b16 %v1303
      %v1549 = vunpack.c.l.b16 %v1304
      %v1550 = vunpack.c.l.b16 %v1305
      %v1551 = vunpack.c.l.b16 %v1306
      %v1552 = vunpack.c.l.b16 %v1307
      %v1553 = vunpack.c.l.b16 %v1308
      %v1554 = vunpack.c.l.b16 %v1309
      %v1555 = vunpack.c.l.b16 %v1310
      %v1556 = vunpack.c.l.b16 %v1311
      %v1557 = vunpack.c.l.b16 %v1312
      %v1558 = vunpack.c.l.b16 %v1313
      %v1559 = vunpack.c.l.b16 %v1314
      %v1560 = vunpack.c.l.b16 %v1315
      %v1561 = vunpack.c.l.b16 %v1316
      %v1562 = vunpack.c.l.b16 %v1317
      %v1563 = vunpack.c.l.b16 %v1318
      %v1564 = vunpack.c.l.b16 %v1319
      %v1565 = vunpack.c.l.b16 %v1320
      %v1566 = vunpack.c.l.b16 %v1321
      %v1567 = vunpack.c.l.b16 %v1322
      %v1568 = vunpack.c.l.b16 %v1323
      %v1569 = vunpack.c.l.b16 %v1324
      %v1570 = vunpack.c.l.b16 %v1325
      %v1571 = vunpack.c.l.b16 %v1326
      %v1572 = vunpack.c.l.b16 %v1327
      %v1573 = vunpack.c.l.b16 %v1328
      %v1574 = vunpack.c.l.b16 %v1329
      %v1575 = vunpack.c.l.b16 %v1330
      %v1576 = vunpack.c.l.b16 %v1331
      %v1577 = vunpack.c.l.b16 %v1332
      %v1578 = vunpack.c.l.b16 %v1333
      %v1579 = vunpack.c.l.b16 %v1334
      %v1580 = vunpack.c.l.b16 %v1335
      %v1581 = vunpack.c.l.b16 %v1336
      %v1582 = vunpack.c.l.b16 %v1337
      %v1583 = vunpack.c.l.b16 %v1338
      %v1584 = vunpack.c.l.b16 %v1339
      %v1585 = vunpack.c.l.b16 %v1340
      %v1586 = vunpack.c.l.b16 %v1341
      %v1587 = vunpack.c.l.b16 %v1342
      %v1588 = vunpack.c.l.b16 %v1343
      %v1589 = vunpack.c.l.b16 %v1344
      %v1590 = vunpack.c.l.b16 %v1345
      %v1591 = vunpack.c.l.b16 %v1346
      %v1592 = vunpack.c.l.b16 %v1347
      %v1593 = vunpack.c.l.b16 %v1348
      %v1594 = vunpack.c.l.b16 %v1349
      %v1595 = vunpack.c.l.b16 %v1350
      %v1596 = vunpack.c.l.b16 %v1351
      %v1597 = vunpack.c.l.b16 %v1352
      %v1598 = vunpack.c.l.b16 %v1353
      %v1599 = vunpack.c.l.b16 %v1354
      %v1600 = vunpack.c.l.b16 %v1355
      %v1601 = vunpack.c.l.b16 %v1356
      %v1602 = vunpack.c.l.b16 %v1357
      %v1603 = vunpack.c.l.b16 %v1358
      %v1604 = vunpack.c.l.b16 %v1359
      %v1605 = vunpack.c.l.b16 %v1360
      %v1606 = vunpack.c.l.b16 %v1361
      %v1607 = vunpack.c.l.b16 %v1362
      %v1608 = vunpack.c.l.b16 %v1363
      %v1609 = vunpack.c.l.b16 %v1364
      %v1610 = vunpack.c.l.b16 %v1365
      %v1611 = vunpack.c.l.b16 %v1366
      %v1612 = vunpack.c.l.b16 %v1367
      %v1613 = vunpack.c.l.b16 %v1368
      %v1614 = vunpack.c.l.b16 %v1369
      %v1615 = vpack.c.b16 %v1544, %v1543
      %v1616 = vpack.c.b16 %v1546, %v1545
      %v1617 = vpack.c.b16 %v1548, %v1547
      %v1618 = vpack.c.b16 %v1550, %v1549
      %v1619 = vpack.c.b16 %v1552, %v1551
      %v1620 = vpack.c.b16 %v1554, %v1553
      %v1621 = vpack.c.b16 %v1556, %v1555
      %v1622 = vpack.c.b16 %v1558, %v1557
      %v1623 = vpack.c.b16 %v1560, %v1559
      %v1624 = vpack.c.b16 %v1562, %v1561
      %v1625 = vpack.c.b16 %v1564, %v1563
      %v1626 = vpack.c.b16 %v1566, %v1565
      %v1627 = vpack.c.b16 %v1568, %v1567
      %v1628 = vpack.c.b16 %v1570, %v1569
      %v1629 = vpack.c.b16 %v1572, %v1571
      %v1630 = vpack.c.b16 %v1574, %v1573
      %v1631 = vpack.c.b16 %v1576, %v1575
      %v1632 = vpack.c.b16 %v1578, %v1577
      %v1633 = vpack.c.b16 %v1580, %v1579
      %v1634 = vpack.c.b16 %v1582, %v1581
      %v1635 = vpack.c.b16 %v1584, %v1583
      %v1636 = vpack.c.b16 %v1586, %v1585
      %v1637 = vpack.c.b16 %v1588, %v1587
      %v1638 = vpack.c.b16 %v1590, %v1589
      %v1639 = vpack.c.b16 %v1592, %v1591
      %v1640 = vpack.c.b16 %v1594, %v1593
      %v1641 = vpack.c.b16 %v1596, %v1595
      %v1642 = vpack.c.b16 %v1598, %v1597
      %v1643 = vpack.c.b16 %v1600, %v1599
      %v1644 = vpack.c.b16 %v1602, %v1601
      %v1645 = vpack.c.b16 %v1604, %v1603
      %v1646 = vpack.c.b16 %v1606, %v1605
      %v1647 = vpack.c.b16 %v1608, %v1607
      %v1648 = vpack.c.b16 %v1610, %v1609
      %v1649 = vpack.c.b16 %v1612, %v1611
      %v1650 = vpack.c.b16 %v1614, %v1613
      %vm1687 = vcmask 523264
      %v1689 = vsel %vm1687, %v1439, 0
      %v1692 = vsel %vm1687, %v1444, 0
      %v1695 = vsel %vm1687, %v1449, 0
      %v1698 = vsel %vm1687, %v1454, 0
      %1700 = vmatpush.bf16.msra.mxu0 %v1622
      %1701 = vmatpush.bf16.msra.mxu0 %v1621
      %1702 = vmatpush.bf16.msra.mxu0 %v1620
      %1703 = vmatpush.bf16.msra.mxu0 %v1619
      %1704 = vmatpush.bf16.msra.mxu0 %v1618
      %1705 = vmatpush.bf16.msra.mxu0 %v1617
      %1706 = vmatpush.bf16.msra.mxu0 %v1616
      %1707 = vmatpush.bf16.msra.mxu0 %v1615
      %1708 = vmatmul.bf16.gmra.mxu0 %v1435
      %v1709 = vpop.f32.mrf.mxu0
      %v1710 = vadd.f32 %v1370, %v1709
      %v1711 = vpop.f32.mrf.mxu0
      %v1712 = vadd.f32 %v1370, %v1711
      %1713 = vmatmul.bf16.gmra.mxu0 %v1440
      %v1714 = vpop.f32.mrf.mxu0
      %v1715 = vadd.f32 %v1370, %v1714
      %v1716 = vpop.f32.mrf.mxu0
      %v1717 = vadd.f32 %v1370, %v1716
      %1718 = vmatmul.bf16.gmra.mxu0 %v1445
      %v1719 = vpop.f32.mrf.mxu0
      %v1720 = vadd.f32 %v1370, %v1719
      %v1721 = vpop.f32.mrf.mxu0
      %v1722 = vadd.f32 %v1370, %v1721
      %1723 = vmatmul.bf16.gmra.mxu0 %v1450
      %v1724 = vpop.f32.mrf.mxu0
      %v1725 = vadd.f32 %v1370, %v1724
      %v1726 = vpop.f32.mrf.mxu0
      %v1727 = vadd.f32 %v1370, %v1726
      %1728 = vdwg.mxu0
      %1729 = vmatpush.bf16.msra.mxu0 %v1630
      %1730 = vmatpush.bf16.msra.mxu0 %v1629
      %1731 = vmatpush.bf16.msra.mxu0 %v1628
      %1732 = vmatpush.bf16.msra.mxu0 %v1627
      %1733 = vmatpush.bf16.msra.mxu0 %v1626
      %1734 = vmatpush.bf16.msra.mxu0 %v1625
      %1735 = vmatpush.bf16.msra.mxu0 %v1624
      %1736 = vmatpush.bf16.msra.mxu0 %v1623
      %1737 = vmatmul.bf16.gmra.mxu0 %v1436
      %v1738 = vpop.f32.mrf.mxu0
      %v1739 = vadd.f32 %v1710, %v1738
      %v1740 = vpop.f32.mrf.mxu0
      %v1741 = vadd.f32 %v1712, %v1740
      %1742 = vmatmul.bf16.gmra.mxu0 %v1441
      %v1743 = vpop.f32.mrf.mxu0
      %v1744 = vadd.f32 %v1715, %v1743
      %v1745 = vpop.f32.mrf.mxu0
      %v1746 = vadd.f32 %v1717, %v1745
      %1747 = vmatmul.bf16.gmra.mxu0 %v1446
      %v1748 = vpop.f32.mrf.mxu0
      %v1749 = vadd.f32 %v1720, %v1748
      %v1750 = vpop.f32.mrf.mxu0
      %v1751 = vadd.f32 %v1722, %v1750
      %1752 = vmatmul.bf16.gmra.mxu0 %v1451
      %v1753 = vpop.f32.mrf.mxu0
      %v1754 = vadd.f32 %v1725, %v1753
      %v1755 = vpop.f32.mrf.mxu0
      %v1756 = vadd.f32 %v1727, %v1755
      %1757 = vdwg.mxu0
      %1758 = vmatpush.bf16.msra.mxu0 %v1638
      %1759 = vmatpush.bf16.msra.mxu0 %v1637
      %1760 = vmatpush.bf16.msra.mxu0 %v1636
      %1761 = vmatpush.bf16.msra.mxu0 %v1635
      %1762 = vmatpush.bf16.msra.mxu0 %v1634
      %1763 = vmatpush.bf16.msra.mxu0 %v1633
      %1764 = vmatpush.bf16.msra.mxu0 %v1632
      %1765 = vmatpush.bf16.msra.mxu0 %v1631
      %1766 = vmatmul.bf16.gmra.mxu0 %v1437
      %v1767 = vpop.f32.mrf.mxu0
      %v1768 = vadd.f32 %v1739, %v1767
      %v1769 = vpop.f32.mrf.mxu0
      %v1770 = vadd.f32 %v1741, %v1769
      %1771 = vmatmul.bf16.gmra.mxu0 %v1442
      %v1772 = vpop.f32.mrf.mxu0
      %v1773 = vadd.f32 %v1744, %v1772
      %v1774 = vpop.f32.mrf.mxu0
      %v1775 = vadd.f32 %v1746, %v1774
      %1776 = vmatmul.bf16.gmra.mxu0 %v1447
      %v1777 = vpop.f32.mrf.mxu0
      %v1778 = vadd.f32 %v1749, %v1777
      %v1779 = vpop.f32.mrf.mxu0
      %v1780 = vadd.f32 %v1751, %v1779
      %1781 = vmatmul.bf16.gmra.mxu0 %v1452
      %v1782 = vpop.f32.mrf.mxu0
      %v1783 = vadd.f32 %v1754, %v1782
      %v1784 = vpop.f32.mrf.mxu0
      %v1785 = vadd.f32 %v1756, %v1784
      %1786 = vdwg.mxu0
      %1787 = vmatpush.bf16.msra.mxu0 %v1646
      %1788 = vmatpush.bf16.msra.mxu0 %v1645
      %1789 = vmatpush.bf16.msra.mxu0 %v1644
      %1790 = vmatpush.bf16.msra.mxu0 %v1643
      %1791 = vmatpush.bf16.msra.mxu0 %v1642
      %1792 = vmatpush.bf16.msra.mxu0 %v1641
      %1793 = vmatpush.bf16.msra.mxu0 %v1640
      %1794 = vmatpush.bf16.msra.mxu0 %v1639
      %1795 = vmatmul.bf16.gmra.mxu0 %v1438
      %v1796 = vpop.f32.mrf.mxu0
      %v1797 = vadd.f32 %v1768, %v1796
      %v1798 = vpop.f32.mrf.mxu0
      %v1799 = vadd.f32 %v1770, %v1798
      %1800 = vmatmul.bf16.gmra.mxu0 %v1443
      %v1801 = vpop.f32.mrf.mxu0
      %v1802 = vadd.f32 %v1773, %v1801
      %v1803 = vpop.f32.mrf.mxu0
      %v1804 = vadd.f32 %v1775, %v1803
      %1805 = vmatmul.bf16.gmra.mxu0 %v1448
      %v1806 = vpop.f32.mrf.mxu0
      %v1807 = vadd.f32 %v1778, %v1806
      %v1808 = vpop.f32.mrf.mxu0
      %v1809 = vadd.f32 %v1780, %v1808
      %1810 = vmatmul.bf16.gmra.mxu0 %v1453
      %v1811 = vpop.f32.mrf.mxu0
      %v1812 = vadd.f32 %v1783, %v1811
      %v1813 = vpop.f32.mrf.mxu0
      %v1814 = vadd.f32 %v1785, %v1813
      %1815 = vdwg.mxu0
      %1816 = vmatpush.bf16.msra.mxu0 0
      %1817 = vmatpush.bf16.msra.mxu0 0
      %1818 = vmatpush.bf16.msra.mxu0 0
      %1819 = vmatpush.bf16.msra.mxu0 0
      %1820 = vmatpush.bf16.msra.mxu0 %v1650
      %1821 = vmatpush.bf16.msra.mxu0 %v1649
      %1822 = vmatpush.bf16.msra.mxu0 %v1648
      %1823 = vmatpush.bf16.msra.mxu0 %v1647
      %1824 = vmatmul.bf16.gmra.mxu0 %v1689
      %v1825 = vpop.f32.mrf.mxu0
      %v1826 = vadd.f32 %v1797, %v1825
      %v1827 = vpop.f32.mrf.mxu0
      %v1828 = vadd.f32 %v1799, %v1827
      %1829 = vmatmul.bf16.gmra.mxu0 %v1692
      %v1830 = vpop.f32.mrf.mxu0
      %v1831 = vadd.f32 %v1802, %v1830
      %v1832 = vpop.f32.mrf.mxu0
      %v1833 = vadd.f32 %v1804, %v1832
      %1834 = vmatmul.bf16.gmra.mxu0 %v1695
      %v1835 = vpop.f32.mrf.mxu0
      %v1836 = vadd.f32 %v1807, %v1835
      %v1837 = vpop.f32.mrf.mxu0
      %v1838 = vadd.f32 %v1809, %v1837
      %1839 = vmatmul.bf16.gmra.mxu0 %v1698
      %v1840 = vpop.f32.mrf.mxu0
      %v1841 = vadd.f32 %v1812, %v1840
      %v1842 = vpop.f32.mrf.mxu0
      %v1843 = vadd.f32 %v1814, %v1842
      %1844 = vdwg.mxu0
      %v1845 = vmax.f32 %v1826, 0.0
      %v1846 = vmax.f32 %v1828, 0.0
      %v1847 = vmax.f32 %v1831, 0.0
      %v1848 = vmax.f32 %v1833, 0.0
      %v1849 = vmax.f32 %v1836, 0.0
      %v1850 = vmax.f32 %v1838, 0.0
      %v1851 = vmax.f32 %v1841, 0.0
      %v1852 = vmax.f32 %v1843, 0.0
      %v1853 = vld [vmem:[%s5] sm:$0xff]
      %v1854 = vld [vmem:[%s5 + $0x8] sm:$0xff]
      %v1855 = vld [vmem:[%s5 + $0x10] sm:$0xff]
      %v1856 = vld [vmem:[%s5 + $0x18] sm:$0xff]
      %v1857 = vld [vmem:[%s5 + $0x20] sm:$0xff]
      %v1858 = vld [vmem:[%s5 + $0x28] sm:$0xff]
      %v1859 = vld [vmem:[%s5 + $0x30] sm:$0xff]
      %v1860 = vld [vmem:[%s5 + $0x38] sm:$0xff]
      %v1861 = vld [vmem:[%s5 + $0x40] sm:$0xff]
      %v1862 = vld [vmem:[%s5 + $0x48] sm:$0xff]
      %v1863 = vld [vmem:[%s5 + $0x50] sm:$0xff]
      %v1864 = vld [vmem:[%s5 + $0x58] sm:$0xff]
      %v1865 = vld [vmem:[%s5 + $0x60] sm:$0xff]
      %v1866 = vld [vmem:[%s5 + $0x68] sm:$0xff]
      %v1867 = vld [vmem:[%s5 + $0x70] sm:$0xff]
      %v1868 = vld [vmem:[%s5 + $0x78] sm:$0xff]
      %v1870 = vsel %vm1687, %v1853, 0
      %v1873 = vsel %vm1687, %v1854, 0
      %v1876 = vsel %vm1687, %v1855, 0
      %v1879 = vsel %vm1687, %v1856, 0
      %v1882 = vsel %vm1687, %v1857, 0
      %v1885 = vsel %vm1687, %v1858, 0
      %v1888 = vsel %vm1687, %v1859, 0
      %v1891 = vsel %vm1687, %v1860, 0
      %v1894 = vsel %vm1687, %v1861, 0
      %v1897 = vsel %vm1687, %v1862, 0
      %v1900 = vsel %vm1687, %v1863, 0
      %v1903 = vsel %vm1687, %v1864, 0
      %v1906 = vsel %vm1687, %v1865, 0
      %v1909 = vsel %vm1687, %v1866, 0
      %v1912 = vsel %vm1687, %v1867, 0
      %v1915 = vsel %vm1687, %v1868, 0
      %1917 = vmatpush.msra.mxu0 0.0
      %1918 = vmatpush.msra.mxu0 0.0
      %1919 = vmatpush.msra.mxu0 0.0
      %1920 = vmatpush.msra.mxu0 0.0
      %1921 = vmatpush.msra.mxu0 0.0
      %1922 = vmatpush.msra.mxu0 0.0
      %1923 = vmatpush.msra.mxu0 0.0
      %1924 = vmatpush.msra.mxu0 0.0
      %1925 = vmatpush.msra.mxu0 %v1852
      %1926 = vmatpush.msra.mxu0 %v1851
      %1927 = vmatpush.msra.mxu0 %v1850
      %1928 = vmatpush.msra.mxu0 %v1849
      %1929 = vmatpush.msra.mxu0 %v1848
      %1930 = vmatpush.msra.mxu0 %v1847
      %1931 = vmatpush.msra.mxu0 %v1846
      %1932 = vmatpush.msra.mxu0 %v1845
      %1933 = vmatmul.f32.gmra.mxu0 %v1870
      %v1934 = vpop.f32.mrf.mxu0
      %v1935 = vadd.f32 0.0, %v1934
      %1936 = vmatmul.f32.gmra.mxu0 %v1873
      %v1937 = vpop.f32.mrf.mxu0
      %v1938 = vadd.f32 0.0, %v1937
      %1939 = vmatmul.f32.gmra.mxu0 %v1876
      %v1940 = vpop.f32.mrf.mxu0
      %v1941 = vadd.f32 0.0, %v1940
      %1942 = vmatmul.f32.gmra.mxu0 %v1879
      %v1943 = vpop.f32.mrf.mxu0
      %v1944 = vadd.f32 0.0, %v1943
      %1945 = vmatmul.f32.gmra.mxu0 %v1882
      %v1946 = vpop.f32.mrf.mxu0
      %v1947 = vadd.f32 0.0, %v1946
      %1948 = vmatmul.f32.gmra.mxu0 %v1885
      %v1949 = vpop.f32.mrf.mxu0
      %v1950 = vadd.f32 0.0, %v1949
      %1951 = vmatmul.f32.gmra.mxu0 %v1888
      %v1952 = vpop.f32.mrf.mxu0
      %v1953 = vadd.f32 0.0, %v1952
      %1954 = vmatmul.f32.gmra.mxu0 %v1891
      %v1955 = vpop.f32.mrf.mxu0
      %v1956 = vadd.f32 0.0, %v1955
      %1957 = vmatmul.f32.gmra.mxu0 %v1894
      %v1958 = vpop.f32.mrf.mxu0
      %v1959 = vadd.f32 0.0, %v1958
      %1960 = vmatmul.f32.gmra.mxu0 %v1897
      %v1961 = vpop.f32.mrf.mxu0
      %v1962 = vadd.f32 0.0, %v1961
      %1963 = vmatmul.f32.gmra.mxu0 %v1900
      %v1964 = vpop.f32.mrf.mxu0
      %v1965 = vadd.f32 0.0, %v1964
      %1966 = vmatmul.f32.gmra.mxu0 %v1903
      %v1967 = vpop.f32.mrf.mxu0
      %v1968 = vadd.f32 0.0, %v1967
      %1969 = vmatmul.f32.gmra.mxu0 %v1906
      %v1970 = vpop.f32.mrf.mxu0
      %v1971 = vadd.f32 0.0, %v1970
      %1972 = vmatmul.f32.gmra.mxu0 %v1909
      %v1973 = vpop.f32.mrf.mxu0
      %v1974 = vadd.f32 0.0, %v1973
      %1975 = vmatmul.f32.gmra.mxu0 %v1912
      %v1976 = vpop.f32.mrf.mxu0
      %v1977 = vadd.f32 0.0, %v1976
      %1978 = vmatmul.f32.gmra.mxu0 %v1915
      %v1979 = vpop.f32.mrf.mxu0
      %v1980 = vadd.f32 0.0, %v1979
      %1981 = vdwg.mxu0
      %v1982 = vld [vmem:[%s6] sm:$0xff]
      %v1983 = vld [vmem:[%s6 + $0x8] sm:$0xff]
      %vm1984 = vcmask 64512
      %v1986 = vsel %vm1984, %v1982, 0
      %v1989 = vsel %vm1984, %v1983, 0
      %1991 = vmatpush.msra.mxu0 0.0
      %1992 = vmatpush.msra.mxu0 0.0
      %1993 = vmatpush.msra.mxu0 0.0
      %1994 = vmatpush.msra.mxu0 0.0
      %1995 = vmatpush.msra.mxu0 0.0
      %1996 = vmatpush.msra.mxu0 0.0
      %1997 = vmatpush.msra.mxu0 0.0
      %1998 = vmatpush.msra.mxu0 0.0
      %1999 = vmatpush.msra.mxu0 0.0
      %2000 = vmatpush.msra.mxu0 0.0
      %2001 = vmatpush.msra.mxu0 0.0
      %2002 = vmatpush.msra.mxu0 0.0
      %2003 = vmatpush.msra.mxu0 0.0
      %2004 = vmatpush.msra.mxu0 0.0
      %2005 = vmatpush.msra.mxu0 0.0
      %2006 = vmatpush.msra.mxu0 %v1935
      %2007 = vmatmul.f32.gmra.mxu0 %v1986
      %v2008 = vpop.f32.mrf.mxu0
      %v2009 = vadd.f32 0.0, %v2008
      %2010 = vmatmul.f32.gmra.mxu0 %v1989
      %v2011 = vpop.f32.mrf.mxu0
      %v2012 = vadd.f32 0.0, %v2011
      %2013 = vdwg.mxu0
      %2014 = vmatpush.msra.mxu0 0.0
      %2015 = vmatpush.msra.mxu0 0.0
      %2016 = vmatpush.msra.mxu0 0.0
      %2017 = vmatpush.msra.mxu0 0.0
      %2018 = vmatpush.msra.mxu0 0.0
      %2019 = vmatpush.msra.mxu0 0.0
      %2020 = vmatpush.msra.mxu0 0.0
      %2021 = vmatpush.msra.mxu0 0.0
      %2022 = vmatpush.msra.mxu0 0.0
      %2023 = vmatpush.msra.mxu0 0.0
      %2024 = vmatpush.msra.mxu0 0.0
      %2025 = vmatpush.msra.mxu0 0.0
      %2026 = vmatpush.msra.mxu0 0.0
      %2027 = vmatpush.msra.mxu0 0.0
      %2028 = vmatpush.msra.mxu0 0.0
      %2029 = vmatpush.msra.mxu0 %v1938
      %2030 = vmatmul.f32.gmra.mxu0 %v1986
      %v2031 = vpop.f32.mrf.mxu0
      %v2032 = vadd.f32 0.0, %v2031
      %2033 = vmatmul.f32.gmra.mxu0 %v1989
      %v2034 = vpop.f32.mrf.mxu0
      %v2035 = vadd.f32 0.0, %v2034
      %2036 = vdwg.mxu0
      %2037 = vmatpush.msra.mxu0 0.0
      %2038 = vmatpush.msra.mxu0 0.0
      %2039 = vmatpush.msra.mxu0 0.0
      %2040 = vmatpush.msra.mxu0 0.0
      %2041 = vmatpush.msra.mxu0 0.0
      %2042 = vmatpush.msra.mxu0 0.0
      %2043 = vmatpush.msra.mxu0 0.0
      %2044 = vmatpush.msra.mxu0 0.0
      %2045 = vmatpush.msra.mxu0 0.0
      %2046 = vmatpush.msra.mxu0 0.0
      %2047 = vmatpush.msra.mxu0 0.0
      %2048 = vmatpush.msra.mxu0 0.0
      %2049 = vmatpush.msra.mxu0 0.0
      %2050 = vmatpush.msra.mxu0 0.0
      %2051 = vmatpush.msra.mxu0 0.0
      %2052 = vmatpush.msra.mxu0 %v1941
      %2053 = vmatmul.f32.gmra.mxu0 %v1986
      %v2054 = vpop.f32.mrf.mxu0
      %v2055 = vadd.f32 0.0, %v2054
      %2056 = vmatmul.f32.gmra.mxu0 %v1989
      %v2057 = vpop.f32.mrf.mxu0
      %v2058 = vadd.f32 0.0, %v2057
      %2059 = vdwg.mxu0
      %2060 = vmatpush.msra.mxu0 0.0
      %2061 = vmatpush.msra.mxu0 0.0
      %2062 = vmatpush.msra.mxu0 0.0
      %2063 = vmatpush.msra.mxu0 0.0
      %2064 = vmatpush.msra.mxu0 0.0
      %2065 = vmatpush.msra.mxu0 0.0
      %2066 = vmatpush.msra.mxu0 0.0
      %2067 = vmatpush.msra.mxu0 0.0
      %2068 = vmatpush.msra.mxu0 0.0
      %2069 = vmatpush.msra.mxu0 0.0
      %2070 = vmatpush.msra.mxu0 0.0
      %2071 = vmatpush.msra.mxu0 0.0
      %2072 = vmatpush.msra.mxu0 0.0
      %2073 = vmatpush.msra.mxu0 0.0
      %2074 = vmatpush.msra.mxu0 0.0
      %2075 = vmatpush.msra.mxu0 %v1944
      %2076 = vmatmul.f32.gmra.mxu0 %v1986
      %v2077 = vpop.f32.mrf.mxu0
      %v2078 = vadd.f32 0.0, %v2077
      %2079 = vmatmul.f32.gmra.mxu0 %v1989
      %v2080 = vpop.f32.mrf.mxu0
      %v2081 = vadd.f32 0.0, %v2080
      %2082 = vdwg.mxu0
      %2083 = vmatpush.msra.mxu0 0.0
      %2084 = vmatpush.msra.mxu0 0.0
      %2085 = vmatpush.msra.mxu0 0.0
      %2086 = vmatpush.msra.mxu0 0.0
      %2087 = vmatpush.msra.mxu0 0.0
      %2088 = vmatpush.msra.mxu0 0.0
      %2089 = vmatpush.msra.mxu0 0.0
      %2090 = vmatpush.msra.mxu0 0.0
      %2091 = vmatpush.msra.mxu0 0.0
      %2092 = vmatpush.msra.mxu0 0.0
      %2093 = vmatpush.msra.mxu0 0.0
      %2094 = vmatpush.msra.mxu0 0.0
      %2095 = vmatpush.msra.mxu0 0.0
      %2096 = vmatpush.msra.mxu0 0.0
      %2097 = vmatpush.msra.mxu0 0.0
      %2098 = vmatpush.msra.mxu0 %v1947
      %2099 = vmatmul.f32.gmra.mxu0 %v1986
      %v2100 = vpop.f32.mrf.mxu0
      %v2101 = vadd.f32 0.0, %v2100
      %2102 = vmatmul.f32.gmra.mxu0 %v1989
      %v2103 = vpop.f32.mrf.mxu0
      %v2104 = vadd.f32 0.0, %v2103
      %2105 = vdwg.mxu0
      %2106 = vmatpush.msra.mxu0 0.0
      %2107 = vmatpush.msra.mxu0 0.0
      %2108 = vmatpush.msra.mxu0 0.0
      %2109 = vmatpush.msra.mxu0 0.0
      %2110 = vmatpush.msra.mxu0 0.0
      %2111 = vmatpush.msra.mxu0 0.0
      %2112 = vmatpush.msra.mxu0 0.0
      %2113 = vmatpush.msra.mxu0 0.0
      %2114 = vmatpush.msra.mxu0 0.0
      %2115 = vmatpush.msra.mxu0 0.0
      %2116 = vmatpush.msra.mxu0 0.0
      %2117 = vmatpush.msra.mxu0 0.0
      %2118 = vmatpush.msra.mxu0 0.0
      %2119 = vmatpush.msra.mxu0 0.0
      %2120 = vmatpush.msra.mxu0 0.0
      %2121 = vmatpush.msra.mxu0 %v1950
      %2122 = vmatmul.f32.gmra.mxu0 %v1986
      %v2123 = vpop.f32.mrf.mxu0
      %v2124 = vadd.f32 0.0, %v2123
      %2125 = vmatmul.f32.gmra.mxu0 %v1989
      %v2126 = vpop.f32.mrf.mxu0
      %v2127 = vadd.f32 0.0, %v2126
      %2128 = vdwg.mxu0
      %2129 = vmatpush.msra.mxu0 0.0
      %2130 = vmatpush.msra.mxu0 0.0
      %2131 = vmatpush.msra.mxu0 0.0
      %2132 = vmatpush.msra.mxu0 0.0
      %2133 = vmatpush.msra.mxu0 0.0
      %2134 = vmatpush.msra.mxu0 0.0
      %2135 = vmatpush.msra.mxu0 0.0
      %2136 = vmatpush.msra.mxu0 0.0
      %2137 = vmatpush.msra.mxu0 0.0
      %2138 = vmatpush.msra.mxu0 0.0
      %2139 = vmatpush.msra.mxu0 0.0
      %2140 = vmatpush.msra.mxu0 0.0
      %2141 = vmatpush.msra.mxu0 0.0
      %2142 = vmatpush.msra.mxu0 0.0
      %2143 = vmatpush.msra.mxu0 0.0
      %2144 = vmatpush.msra.mxu0 %v1953
      %2145 = vmatmul.f32.gmra.mxu0 %v1986
      %v2146 = vpop.f32.mrf.mxu0
      %v2147 = vadd.f32 0.0, %v2146
      %2148 = vmatmul.f32.gmra.mxu0 %v1989
      %v2149 = vpop.f32.mrf.mxu0
      %v2150 = vadd.f32 0.0, %v2149
      %2151 = vdwg.mxu0
      %2152 = vmatpush.msra.mxu0 0.0
      %2153 = vmatpush.msra.mxu0 0.0
      %2154 = vmatpush.msra.mxu0 0.0
      %2155 = vmatpush.msra.mxu0 0.0
      %2156 = vmatpush.msra.mxu0 0.0
      %2157 = vmatpush.msra.mxu0 0.0
      %2158 = vmatpush.msra.mxu0 0.0
      %2159 = vmatpush.msra.mxu0 0.0
      %2160 = vmatpush.msra.mxu0 0.0
      %2161 = vmatpush.msra.mxu0 0.0
      %2162 = vmatpush.msra.mxu0 0.0
      %2163 = vmatpush.msra.mxu0 0.0
      %2164 = vmatpush.msra.mxu0 0.0
      %2165 = vmatpush.msra.mxu0 0.0
      %2166 = vmatpush.msra.mxu0 0.0
      %2167 = vmatpush.msra.mxu0 %v1956
      %2168 = vmatmul.f32.gmra.mxu0 %v1986
      %v2169 = vpop.f32.mrf.mxu0
      %v2170 = vadd.f32 0.0, %v2169
      %2171 = vmatmul.f32.gmra.mxu0 %v1989
      %v2172 = vpop.f32.mrf.mxu0
      %v2173 = vadd.f32 0.0, %v2172
      %2174 = vdwg.mxu0
      %2175 = vmatpush.msra.mxu0 0.0
      %2176 = vmatpush.msra.mxu0 0.0
      %2177 = vmatpush.msra.mxu0 0.0
      %2178 = vmatpush.msra.mxu0 0.0
      %2179 = vmatpush.msra.mxu0 0.0
      %2180 = vmatpush.msra.mxu0 0.0
      %2181 = vmatpush.msra.mxu0 0.0
      %2182 = vmatpush.msra.mxu0 0.0
      %2183 = vmatpush.msra.mxu0 0.0
      %2184 = vmatpush.msra.mxu0 0.0
      %2185 = vmatpush.msra.mxu0 0.0
      %2186 = vmatpush.msra.mxu0 0.0
      %2187 = vmatpush.msra.mxu0 0.0
      %2188 = vmatpush.msra.mxu0 0.0
      %2189 = vmatpush.msra.mxu0 0.0
      %2190 = vmatpush.msra.mxu0 %v1959
      %2191 = vmatmul.f32.gmra.mxu0 %v1986
      %v2192 = vpop.f32.mrf.mxu0
      %v2193 = vadd.f32 0.0, %v2192
      %2194 = vmatmul.f32.gmra.mxu0 %v1989
      %v2195 = vpop.f32.mrf.mxu0
      %v2196 = vadd.f32 0.0, %v2195
      %2197 = vdwg.mxu0
      %2198 = vmatpush.msra.mxu0 0.0
      %2199 = vmatpush.msra.mxu0 0.0
      %2200 = vmatpush.msra.mxu0 0.0
      %2201 = vmatpush.msra.mxu0 0.0
      %2202 = vmatpush.msra.mxu0 0.0
      %2203 = vmatpush.msra.mxu0 0.0
      %2204 = vmatpush.msra.mxu0 0.0
      %2205 = vmatpush.msra.mxu0 0.0
      %2206 = vmatpush.msra.mxu0 0.0
      %2207 = vmatpush.msra.mxu0 0.0
      %2208 = vmatpush.msra.mxu0 0.0
      %2209 = vmatpush.msra.mxu0 0.0
      %2210 = vmatpush.msra.mxu0 0.0
      %2211 = vmatpush.msra.mxu0 0.0
      %2212 = vmatpush.msra.mxu0 0.0
      %2213 = vmatpush.msra.mxu0 %v1962
      %2214 = vmatmul.f32.gmra.mxu0 %v1986
      %v2215 = vpop.f32.mrf.mxu0
      %v2216 = vadd.f32 0.0, %v2215
      %2217 = vmatmul.f32.gmra.mxu0 %v1989
      %v2218 = vpop.f32.mrf.mxu0
      %v2219 = vadd.f32 0.0, %v2218
      %2220 = vdwg.mxu0
      %2221 = vmatpush.msra.mxu0 0.0
      %2222 = vmatpush.msra.mxu0 0.0
      %2223 = vmatpush.msra.mxu0 0.0
      %2224 = vmatpush.msra.mxu0 0.0
      %2225 = vmatpush.msra.mxu0 0.0
      %2226 = vmatpush.msra.mxu0 0.0
      %2227 = vmatpush.msra.mxu0 0.0
      %2228 = vmatpush.msra.mxu0 0.0
      %2229 = vmatpush.msra.mxu0 0.0
      %2230 = vmatpush.msra.mxu0 0.0
      %2231 = vmatpush.msra.mxu0 0.0
      %2232 = vmatpush.msra.mxu0 0.0
      %2233 = vmatpush.msra.mxu0 0.0
      %2234 = vmatpush.msra.mxu0 0.0
      %2235 = vmatpush.msra.mxu0 0.0
      %2236 = vmatpush.msra.mxu0 %v1965
      %2237 = vmatmul.f32.gmra.mxu0 %v1986
      %v2238 = vpop.f32.mrf.mxu0
      %v2239 = vadd.f32 0.0, %v2238
      %2240 = vmatmul.f32.gmra.mxu0 %v1989
      %v2241 = vpop.f32.mrf.mxu0
      %v2242 = vadd.f32 0.0, %v2241
      %2243 = vdwg.mxu0
      %2244 = vmatpush.msra.mxu0 0.0
      %2245 = vmatpush.msra.mxu0 0.0
      %2246 = vmatpush.msra.mxu0 0.0
      %2247 = vmatpush.msra.mxu0 0.0
      %2248 = vmatpush.msra.mxu0 0.0
      %2249 = vmatpush.msra.mxu0 0.0
      %2250 = vmatpush.msra.mxu0 0.0
      %2251 = vmatpush.msra.mxu0 0.0
      %2252 = vmatpush.msra.mxu0 0.0
      %2253 = vmatpush.msra.mxu0 0.0
      %2254 = vmatpush.msra.mxu0 0.0
      %2255 = vmatpush.msra.mxu0 0.0
      %2256 = vmatpush.msra.mxu0 0.0
      %2257 = vmatpush.msra.mxu0 0.0
      %2258 = vmatpush.msra.mxu0 0.0
      %2259 = vmatpush.msra.mxu0 %v1968
      %2260 = vmatmul.f32.gmra.mxu0 %v1986
      %v2261 = vpop.f32.mrf.mxu0
      %v2262 = vadd.f32 0.0, %v2261
      %2263 = vmatmul.f32.gmra.mxu0 %v1989
      %v2264 = vpop.f32.mrf.mxu0
      %v2265 = vadd.f32 0.0, %v2264
      %2266 = vdwg.mxu0
      %2267 = vmatpush.msra.mxu0 0.0
      %2268 = vmatpush.msra.mxu0 0.0
      %2269 = vmatpush.msra.mxu0 0.0
      %2270 = vmatpush.msra.mxu0 0.0
      %2271 = vmatpush.msra.mxu0 0.0
      %2272 = vmatpush.msra.mxu0 0.0
      %2273 = vmatpush.msra.mxu0 0.0
      %2274 = vmatpush.msra.mxu0 0.0
      %2275 = vmatpush.msra.mxu0 0.0
      %2276 = vmatpush.msra.mxu0 0.0
      %2277 = vmatpush.msra.mxu0 0.0
      %2278 = vmatpush.msra.mxu0 0.0
      %2279 = vmatpush.msra.mxu0 0.0
      %2280 = vmatpush.msra.mxu0 0.0
      %2281 = vmatpush.msra.mxu0 0.0
      %2282 = vmatpush.msra.mxu0 %v1971
      %2283 = vmatmul.f32.gmra.mxu0 %v1986
      %v2284 = vpop.f32.mrf.mxu0
      %v2285 = vadd.f32 0.0, %v2284
      %2286 = vmatmul.f32.gmra.mxu0 %v1989
      %v2287 = vpop.f32.mrf.mxu0
      %v2288 = vadd.f32 0.0, %v2287
      %2289 = vdwg.mxu0
      %2290 = vmatpush.msra.mxu0 0.0
      %2291 = vmatpush.msra.mxu0 0.0
      %2292 = vmatpush.msra.mxu0 0.0
      %2293 = vmatpush.msra.mxu0 0.0
      %2294 = vmatpush.msra.mxu0 0.0
      %2295 = vmatpush.msra.mxu0 0.0
      %2296 = vmatpush.msra.mxu0 0.0
      %2297 = vmatpush.msra.mxu0 0.0
      %2298 = vmatpush.msra.mxu0 0.0
      %2299 = vmatpush.msra.mxu0 0.0
      %2300 = vmatpush.msra.mxu0 0.0
      %2301 = vmatpush.msra.mxu0 0.0
      %2302 = vmatpush.msra.mxu0 0.0
      %2303 = vmatpush.msra.mxu0 0.0
      %2304 = vmatpush.msra.mxu0 0.0
      %2305 = vmatpush.msra.mxu0 %v1974
      %2306 = vmatmul.f32.gmra.mxu0 %v1986
      %v2307 = vpop.f32.mrf.mxu0
      %v2308 = vadd.f32 0.0, %v2307
      %2309 = vmatmul.f32.gmra.mxu0 %v1989
      %v2310 = vpop.f32.mrf.mxu0
      %v2311 = vadd.f32 0.0, %v2310
      %2312 = vdwg.mxu0
      %2313 = vmatpush.msra.mxu0 0.0
      %2314 = vmatpush.msra.mxu0 0.0
      %2315 = vmatpush.msra.mxu0 0.0
      %2316 = vmatpush.msra.mxu0 0.0
      %2317 = vmatpush.msra.mxu0 0.0
      %2318 = vmatpush.msra.mxu0 0.0
      %2319 = vmatpush.msra.mxu0 0.0
      %2320 = vmatpush.msra.mxu0 0.0
      %2321 = vmatpush.msra.mxu0 0.0
      %2322 = vmatpush.msra.mxu0 0.0
      %2323 = vmatpush.msra.mxu0 0.0
      %2324 = vmatpush.msra.mxu0 0.0
      %2325 = vmatpush.msra.mxu0 0.0
      %2326 = vmatpush.msra.mxu0 0.0
      %2327 = vmatpush.msra.mxu0 0.0
      %2328 = vmatpush.msra.mxu0 %v1977
      %2329 = vmatmul.f32.gmra.mxu0 %v1986
      %v2330 = vpop.f32.mrf.mxu0
      %v2331 = vadd.f32 0.0, %v2330
      %2332 = vmatmul.f32.gmra.mxu0 %v1989
      %v2333 = vpop.f32.mrf.mxu0
      %v2334 = vadd.f32 0.0, %v2333
      %2335 = vdwg.mxu0
      %2336 = vmatpush.msra.mxu0 0.0
      %2337 = vmatpush.msra.mxu0 0.0
      %2338 = vmatpush.msra.mxu0 0.0
      %2339 = vmatpush.msra.mxu0 0.0
      %2340 = vmatpush.msra.mxu0 0.0
      %2341 = vmatpush.msra.mxu0 0.0
      %2342 = vmatpush.msra.mxu0 0.0
      %2343 = vmatpush.msra.mxu0 0.0
      %2344 = vmatpush.msra.mxu0 0.0
      %2345 = vmatpush.msra.mxu0 0.0
      %2346 = vmatpush.msra.mxu0 0.0
      %2347 = vmatpush.msra.mxu0 0.0
      %2348 = vmatpush.msra.mxu0 0.0
      %2349 = vmatpush.msra.mxu0 0.0
      %2350 = vmatpush.msra.mxu0 0.0
      %2351 = vmatpush.msra.mxu0 %v1980
      %2352 = vmatmul.f32.gmra.mxu0 %v1986
      %v2353 = vpop.f32.mrf.mxu0
      %v2354 = vadd.f32 0.0, %v2353
      %2355 = vmatmul.f32.gmra.mxu0 %v1989
      %v2356 = vpop.f32.mrf.mxu0
      %v2357 = vadd.f32 0.0, %v2356
      %2358 = vdwg.mxu0
      %v2359 = vld [vmem:[%s4] sm:$0x1]
      %2360 = vst.msk [vmem:[#allocation2] sm:$0xf] %vm301, 0
      %2361 = vst.msk [vmem:[#allocation2 + $0x4] sm:$0xf] %vm301, 0
      %2362 = vst.msk [vmem:[#allocation2 + $0x8] sm:$0x1] %vm303, 0
      %2363 = vst.msk [vmem:[#allocation2 + $0xc] sm:$0xf] %vm301, 0
      %2364 = vst.msk [vmem:[#allocation2 + $0x10] sm:$0xf] %vm301, 0
      %2365 = vst.msk [vmem:[#allocation2 + $0x14] sm:$0x1] %vm303, 0
      %2366 = vst.msk [vmem:[#allocation2 + $0x18] sm:$0xf] %vm301, 0
      %2367 = vst.msk [vmem:[#allocation2 + $0x1c] sm:$0xf] %vm301, 0
      %2368 = vst.msk [vmem:[#allocation2 + $0x20] sm:$0x1] %vm303, 0
      %2369 = vst.msk [vmem:[#allocation2 + $0x24] sm:$0xf] %vm301, 0
      %2370 = vst.msk [vmem:[#allocation2 + $0x28] sm:$0xf] %vm301, 0
      %2371 = vst.msk [vmem:[#allocation2 + $0x2c] sm:$0x1] %vm303, 0
      %2372 = vst.msk [vmem:[#allocation2 + $0x30] sm:$0xf] %vm301, 0
      %2373 = vst.msk [vmem:[#allocation2 + $0x34] sm:$0xf] %vm301, 0
      %2374 = vst.msk [vmem:[#allocation2 + $0x38] sm:$0x1] %vm303, 0
      %2375 = vst.msk [vmem:[#allocation2 + $0x3c] sm:$0xf] %vm301, 0
      %2376 = vst.msk [vmem:[#allocation2 + $0x40] sm:$0xf] %vm301, 0
      %2377 = vst.msk [vmem:[#allocation2 + $0x44] sm:$0x1] %vm303, 0
      %2378 = vst.msk [vmem:[#allocation2 + $0x48] sm:$0xf] %vm301, 0
      %2379 = vst.msk [vmem:[#allocation2 + $0x4c] sm:$0xf] %vm301, 0
      %2380 = vst.msk [vmem:[#allocation2 + $0x50] sm:$0x1] %vm303, 0
      %2381 = vst.msk [vmem:[#allocation2 + $0x54] sm:$0xf] %vm301, 0
      %2382 = vst.msk [vmem:[#allocation2 + $0x58] sm:$0xf] %vm301, 0
      %2383 = vst.msk [vmem:[#allocation2 + $0x5c] sm:$0x1] %vm303, 0
      %2384 = vst.msk [vmem:[#allocation2 + $0x60] sm:$0xf] %vm301, 0
      %2385 = vst.msk [vmem:[#allocation2 + $0x64] sm:$0xf] %vm301, 0
      %2386 = vst.msk [vmem:[#allocation2 + $0x68] sm:$0x1] %vm303, 0
      %2387 = vst.msk [vmem:[#allocation2 + $0x6c] sm:$0xf] %vm301, 0
      %2388 = vst.msk [vmem:[#allocation2 + $0x70] sm:$0xf] %vm301, 0
      %2389 = vst.msk [vmem:[#allocation2 + $0x74] sm:$0x1] %vm303, 0
      %2390 = vst.msk [vmem:[#allocation2 + $0x78] sm:$0xf] %vm301, 0
      %2391 = vst.msk [vmem:[#allocation2 + $0x7c] sm:$0xf] %vm301, 0
      %2392 = vst.msk [vmem:[#allocation2 + $0x80] sm:$0x1] %vm303, 0
      %2393 = vst.msk [vmem:[#allocation2 + $0x84] sm:$0xf] %vm301, 0
      %2394 = vst.msk [vmem:[#allocation2 + $0x88] sm:$0xf] %vm301, 0
      %2395 = vst.msk [vmem:[#allocation2 + $0x8c] sm:$0x1] %vm303, 0
      %2396 = vst.msk [vmem:[#allocation2 + $0x90] sm:$0xf] %vm301, 0
      %2397 = vst.msk [vmem:[#allocation2 + $0x94] sm:$0xf] %vm301, 0
      %2398 = vst.msk [vmem:[#allocation2 + $0x98] sm:$0x1] %vm303, 0
      %2399 = vst.msk [vmem:[#allocation2 + $0x9c] sm:$0xf] %vm301, 0
      %2400 = vst.msk [vmem:[#allocation2 + $0xa0] sm:$0xf] %vm301, 0
      %2401 = vst.msk [vmem:[#allocation2 + $0xa4] sm:$0x1] %vm303, 0
      %2402 = vst.msk [vmem:[#allocation2 + $0xa8] sm:$0xf] %vm301, 0
      %2403 = vst.msk [vmem:[#allocation2 + $0xac] sm:$0xf] %vm301, 0
      %2404 = vst.msk [vmem:[#allocation2 + $0xb0] sm:$0x1] %vm303, 0
      %2405 = vst.msk [vmem:[#allocation2 + $0xb4] sm:$0xf] %vm301, 0
      %2406 = vst.msk [vmem:[#allocation2 + $0xb8] sm:$0xf] %vm301, 0
      %2407 = vst.msk [vmem:[#allocation2 + $0xbc] sm:$0x1] %vm303, 0
      %2408 = vst.msk [vmem:[#allocation2 + $0xc0] sm:$0xf] %vm301, 0
      %2409 = vst.msk [vmem:[#allocation2 + $0xc4] sm:$0xf] %vm301, 0
      %2410 = vst.msk [vmem:[#allocation2 + $0xc8] sm:$0x1] %vm303, 0
      %2411 = vst.msk [vmem:[#allocation2 + $0xcc] sm:$0xf] %vm301, 0
      %2412 = vst.msk [vmem:[#allocation2 + $0xd0] sm:$0xf] %vm301, 0
      %2413 = vst.msk [vmem:[#allocation2 + $0xd4] sm:$0x1] %vm303, 0
      %v2414 = vld [vmem:[%s288] sm:$0xf]
      %v2415 = vld [vmem:[%s288 + $0x4] sm:$0xf]
      %v2416 = vld [vmem:[%s288 + $0x8] sm:$0xf]
      %v2417 = vld [vmem:[%s288 + $0xc] sm:$0xf]
      %v2418 = vld [vmem:[%s288 + $0x10] sm:$0xf]
      %v2419 = vld [vmem:[%s288 + $0x14] sm:$0xf]
      %v2420 = vld [vmem:[%s288 + $0x18] sm:$0xf]
      %v2421 = vld [vmem:[%s288 + $0x1c] sm:$0xf]
      %v2422 = vld [vmem:[%s288 + $0x20] sm:$0xf]
      %v2423 = vld [vmem:[%s288 + $0x24] sm:$0xf]
      %v2424 = vld [vmem:[%s288 + $0x28] sm:$0xf]
      %v2425 = vld [vmem:[%s288 + $0x2c] sm:$0xf]
      %v2426 = vld [vmem:[%s288 + $0x30] sm:$0xf]
      %v2427 = vld [vmem:[%s288 + $0x34] sm:$0xf]
      %v2428 = vld [vmem:[%s288 + $0x38] sm:$0xf]
      %v2429 = vld [vmem:[%s288 + $0x3c] sm:$0xf]
      %v2430 = vld [vmem:[%s288 + $0x40] sm:$0xf]
      %v2431 = vld [vmem:[%s288 + $0x44] sm:$0xf]
      %v2432 = vld [vmem:[%s288 + $0x48] sm:$0xf]
      %v2433 = vld [vmem:[%s288 + $0x4c] sm:$0xf]
      %v2434 = vld [vmem:[%s288 + $0x50] sm:$0xf]
      %v2435 = vld [vmem:[%s288 + $0x54] sm:$0xf]
      %v2436 = vld [vmem:[%s288 + $0x58] sm:$0xf]
      %v2437 = vld [vmem:[%s288 + $0x5c] sm:$0xf]
      %v2438 = vld [vmem:[%s288 + $0x60] sm:$0xf]
      %v2439 = vld [vmem:[%s288 + $0x64] sm:$0xf]
      %v2440 = vld [vmem:[%s288 + $0x68] sm:$0xf]
      %v2441 = vld [vmem:[%s288 + $0x6c] sm:$0xf]
      %v2442 = vld [vmem:[%s288 + $0x70] sm:$0xf]
      %v2443 = vld [vmem:[%s288 + $0x74] sm:$0xf]
      %v2444 = vld [vmem:[%s288 + $0x78] sm:$0xf]
      %v2445 = vld [vmem:[%s288 + $0x7c] sm:$0xf]
      %vm2446 = vsmask.f32 4368
      %vm2447 = vmor %vm419, %vm2446
      %v2449 = vshrl.u32 %v2414, 16
      %v2451 = vrot.slane %v2449, 7
      %v2452 = vshll.u32 %v2414, 16
      %v2454 = vor.u32 %v2451, %v2452
      %v2455 = vrot.slane %v2451, 4
      %v2457 = vshrl.u32 %v2415, 16
      %v2459 = vrot.slane %v2457, 7
      %v2460 = vshll.u32 %v2415, 16
      %v2462 = vor.u32 %v2459, %v2460
      %v2463 = vsel %vm2447, %v2455, %v2462
      %v2464 = vrot.slane %v2459, 4
      %v2466 = vshrl.u32 %v2416, 16
      %v2468 = vrot.slane %v2466, 7
      %v2469 = vshll.u32 %v2416, 16
      %v2471 = vor.u32 %v2468, %v2469
      %v2472 = vrot.slane %v2468, 4
      %v2474 = vshrl.u32 %v2417, 16
      %v2476 = vrot.slane %v2474, 7
      %v2477 = vshll.u32 %v2417, 16
      %v2479 = vor.u32 %v2476, %v2477
      %v2480 = vsel %vm2447, %v2472, %v2479
      %v2481 = vrot.slane %v2476, 4
      %v2483 = vshrl.u32 %v2418, 16
      %v2485 = vrot.slane %v2483, 7
      %v2486 = vshll.u32 %v2418, 16
      %v2488 = vor.u32 %v2485, %v2486
      %v2489 = vrot.slane %v2485, 4
      %v2491 = vshrl.u32 %v2419, 16
      %v2493 = vrot.slane %v2491, 7
      %v2494 = vshll.u32 %v2419, 16
      %v2496 = vor.u32 %v2493, %v2494
      %v2497 = vsel %vm2447, %v2489, %v2496
      %v2498 = vrot.slane %v2493, 4
      %v2500 = vshrl.u32 %v2420, 16
      %v2502 = vrot.slane %v2500, 7
      %v2503 = vshll.u32 %v2420, 16
      %v2505 = vor.u32 %v2502, %v2503
      %v2506 = vrot.slane %v2502, 4
      %v2508 = vshrl.u32 %v2421, 16
      %v2510 = vrot.slane %v2508, 7
      %v2511 = vshll.u32 %v2421, 16
      %v2513 = vor.u32 %v2510, %v2511
      %v2514 = vsel %vm2447, %v2506, %v2513
      %v2515 = vrot.slane %v2510, 4
      %v2517 = vshrl.u32 %v2422, 16
      %v2519 = vrot.slane %v2517, 7
      %v2520 = vshll.u32 %v2422, 16
      %v2522 = vor.u32 %v2519, %v2520
      %v2523 = vrot.slane %v2519, 4
      %v2525 = vshrl.u32 %v2423, 16
      %v2527 = vrot.slane %v2525, 7
      %v2528 = vshll.u32 %v2423, 16
      %v2530 = vor.u32 %v2527, %v2528
      %v2531 = vsel %vm2447, %v2523, %v2530
      %v2532 = vrot.slane %v2527, 4
      %v2534 = vshrl.u32 %v2424, 16
      %v2536 = vrot.slane %v2534, 7
      %v2537 = vshll.u32 %v2424, 16
      %v2539 = vor.u32 %v2536, %v2537
      %v2540 = vrot.slane %v2536, 4
      %v2542 = vshrl.u32 %v2425, 16
      %v2544 = vrot.slane %v2542, 7
      %v2545 = vshll.u32 %v2425, 16
      %v2547 = vor.u32 %v2544, %v2545
      %v2548 = vsel %vm2447, %v2540, %v2547
      %v2549 = vrot.slane %v2544, 4
      %v2551 = vshrl.u32 %v2426, 16
      %v2553 = vrot.slane %v2551, 7
      %v2554 = vshll.u32 %v2426, 16
      %v2556 = vor.u32 %v2553, %v2554
      %v2557 = vrot.slane %v2553, 4
      %v2559 = vshrl.u32 %v2427, 16
      %v2561 = vrot.slane %v2559, 7
      %v2562 = vshll.u32 %v2427, 16
      %v2564 = vor.u32 %v2561, %v2562
      %v2565 = vsel %vm2447, %v2557, %v2564
      %v2566 = vrot.slane %v2561, 4
      %v2568 = vshrl.u32 %v2428, 16
      %v2570 = vrot.slane %v2568, 7
      %v2571 = vshll.u32 %v2428, 16
      %v2573 = vor.u32 %v2570, %v2571
      %v2574 = vrot.slane %v2570, 4
      %v2576 = vshrl.u32 %v2429, 16
      %v2578 = vrot.slane %v2576, 7
      %v2579 = vshll.u32 %v2429, 16
      %v2581 = vor.u32 %v2578, %v2579
      %v2582 = vsel %vm2447, %v2574, %v2581
      %v2583 = vrot.slane %v2578, 4
      %v2585 = vshrl.u32 %v2430, 16
      %v2587 = vrot.slane %v2585, 7
      %v2588 = vshll.u32 %v2430, 16
      %v2590 = vor.u32 %v2587, %v2588
      %v2591 = vrot.slane %v2587, 4
      %v2593 = vshrl.u32 %v2431, 16
      %v2595 = vrot.slane %v2593, 7
      %v2596 = vshll.u32 %v2431, 16
      %v2598 = vor.u32 %v2595, %v2596
      %v2599 = vsel %vm2447, %v2591, %v2598
      %v2600 = vrot.slane %v2595, 4
      %v2602 = vshrl.u32 %v2432, 16
      %v2604 = vrot.slane %v2602, 7
      %v2605 = vshll.u32 %v2432, 16
      %v2607 = vor.u32 %v2604, %v2605
      %v2608 = vrot.slane %v2604, 4
      %v2610 = vshrl.u32 %v2433, 16
      %v2612 = vrot.slane %v2610, 7
      %v2613 = vshll.u32 %v2433, 16
      %v2615 = vor.u32 %v2612, %v2613
      %v2616 = vsel %vm2447, %v2608, %v2615
      %v2617 = vrot.slane %v2612, 4
      %v2619 = vshrl.u32 %v2434, 16
      %v2621 = vrot.slane %v2619, 7
      %v2622 = vshll.u32 %v2434, 16
      %v2624 = vor.u32 %v2621, %v2622
      %v2625 = vrot.slane %v2621, 4
      %v2627 = vshrl.u32 %v2435, 16
      %v2629 = vrot.slane %v2627, 7
      %v2630 = vshll.u32 %v2435, 16
      %v2632 = vor.u32 %v2629, %v2630
      %v2633 = vsel %vm2447, %v2625, %v2632
      %v2634 = vrot.slane %v2629, 4
      %v2636 = vshrl.u32 %v2436, 16
      %v2638 = vrot.slane %v2636, 7
      %v2639 = vshll.u32 %v2436, 16
      %v2641 = vor.u32 %v2638, %v2639
      %v2642 = vrot.slane %v2638, 4
      %v2644 = vshrl.u32 %v2437, 16
      %v2646 = vrot.slane %v2644, 7
      %v2647 = vshll.u32 %v2437, 16
      %v2649 = vor.u32 %v2646, %v2647
      %v2650 = vsel %vm2447, %v2642, %v2649
      %v2651 = vrot.slane %v2646, 4
      %v2653 = vshrl.u32 %v2438, 16
      %v2655 = vrot.slane %v2653, 7
      %v2656 = vshll.u32 %v2438, 16
      %v2658 = vor.u32 %v2655, %v2656
      %v2659 = vrot.slane %v2655, 4
      %v2661 = vshrl.u32 %v2439, 16
      %v2663 = vrot.slane %v2661, 7
      %v2664 = vshll.u32 %v2439, 16
      %v2666 = vor.u32 %v2663, %v2664
      %v2667 = vsel %vm2447, %v2659, %v2666
      %v2668 = vrot.slane %v2663, 4
      %v2670 = vshrl.u32 %v2440, 16
      %v2672 = vrot.slane %v2670, 7
      %v2673 = vshll.u32 %v2440, 16
      %v2675 = vor.u32 %v2672, %v2673
      %v2676 = vrot.slane %v2672, 4
      %v2678 = vshrl.u32 %v2441, 16
      %v2680 = vrot.slane %v2678, 7
      %v2681 = vshll.u32 %v2441, 16
      %v2683 = vor.u32 %v2680, %v2681
      %v2684 = vsel %vm2447, %v2676, %v2683
      %v2685 = vrot.slane %v2680, 4
      %v2687 = vshrl.u32 %v2442, 16
      %v2689 = vrot.slane %v2687, 7
      %v2690 = vshll.u32 %v2442, 16
      %v2692 = vor.u32 %v2689, %v2690
      %v2693 = vrot.slane %v2689, 4
      %v2695 = vshrl.u32 %v2443, 16
      %v2697 = vrot.slane %v2695, 7
      %v2698 = vshll.u32 %v2443, 16
      %v2700 = vor.u32 %v2697, %v2698
      %v2701 = vsel %vm2447, %v2693, %v2700
      %v2702 = vrot.slane %v2697, 4
      %v2704 = vshrl.u32 %v2444, 16
      %v2706 = vrot.slane %v2704, 7
      %v2707 = vshll.u32 %v2444, 16
      %v2709 = vor.u32 %v2706, %v2707
      %v2710 = vrot.slane %v2706, 4
      %v2712 = vshrl.u32 %v2445, 16
      %v2714 = vrot.slane %v2712, 7
      %v2715 = vshll.u32 %v2445, 16
      %v2717 = vor.u32 %v2714, %v2715
      %v2718 = vsel %vm2447, %v2710, %v2717
      %v2719 = vrot.slane %v2714, 4
      %s2768 = scalar_lea.vmem [#allocation2], 12
      %v2769 = vld [vmem:[%s2768] sm:$0xf]
      %v2770 = vsel %vm414, %v2454, %v2769
      %2771 = vst [vmem:[%s2768] sm:$0xf] %v2770
      %2772 = vst.msk [vmem:[%s2768 + $0x4] sm:$0xf] %vm301, %v2463
      %v2773 = vld [vmem:[%s2768 + $0x8] sm:$0x1]
      %v2774 = vsel %vm420, %v2464, %v2773
      %2775 = vst [vmem:[%s2768 + $0x8] sm:$0x1] %v2774
      %v2776 = vld [vmem:[%s2768 + $0xc] sm:$0xf]
      %v2777 = vsel %vm414, %v2471, %v2776
      %2778 = vst [vmem:[%s2768 + $0xc] sm:$0xf] %v2777
      %2779 = vst.msk [vmem:[%s2768 + $0x10] sm:$0xf] %vm301, %v2480
      %v2780 = vld [vmem:[%s2768 + $0x14] sm:$0x1]
      %v2781 = vsel %vm420, %v2481, %v2780
      %2782 = vst [vmem:[%s2768 + $0x14] sm:$0x1] %v2781
      %v2783 = vld [vmem:[%s2768 + $0x18] sm:$0xf]
      %v2784 = vsel %vm414, %v2488, %v2783
      %2785 = vst [vmem:[%s2768 + $0x18] sm:$0xf] %v2784
      %2786 = vst.msk [vmem:[%s2768 + $0x1c] sm:$0xf] %vm301, %v2497
      %v2787 = vld [vmem:[%s2768 + $0x20] sm:$0x1]
      %v2788 = vsel %vm420, %v2498, %v2787
      %2789 = vst [vmem:[%s2768 + $0x20] sm:$0x1] %v2788
      %v2790 = vld [vmem:[%s2768 + $0x24] sm:$0xf]
      %v2791 = vsel %vm414, %v2505, %v2790
      %2792 = vst [vmem:[%s2768 + $0x24] sm:$0xf] %v2791
      %2793 = vst.msk [vmem:[%s2768 + $0x28] sm:$0xf] %vm301, %v2514
      %v2794 = vld [vmem:[%s2768 + $0x2c] sm:$0x1]
      %v2795 = vsel %vm420, %v2515, %v2794
      %2796 = vst [vmem:[%s2768 + $0x2c] sm:$0x1] %v2795
      %v2797 = vld [vmem:[%s2768 + $0x30] sm:$0xf]
      %v2798 = vsel %vm414, %v2522, %v2797
      %2799 = vst [vmem:[%s2768 + $0x30] sm:$0xf] %v2798
      %2800 = vst.msk [vmem:[%s2768 + $0x34] sm:$0xf] %vm301, %v2531
      %v2801 = vld [vmem:[%s2768 + $0x38] sm:$0x1]
      %v2802 = vsel %vm420, %v2532, %v2801
      %2803 = vst [vmem:[%s2768 + $0x38] sm:$0x1] %v2802
      %v2804 = vld [vmem:[%s2768 + $0x3c] sm:$0xf]
      %v2805 = vsel %vm414, %v2539, %v2804
      %2806 = vst [vmem:[%s2768 + $0x3c] sm:$0xf] %v2805
      %2807 = vst.msk [vmem:[%s2768 + $0x40] sm:$0xf] %vm301, %v2548
      %v2808 = vld [vmem:[%s2768 + $0x44] sm:$0x1]
      %v2809 = vsel %vm420, %v2549, %v2808
      %2810 = vst [vmem:[%s2768 + $0x44] sm:$0x1] %v2809
      %v2811 = vld [vmem:[%s2768 + $0x48] sm:$0xf]
      %v2812 = vsel %vm414, %v2556, %v2811
      %2813 = vst [vmem:[%s2768 + $0x48] sm:$0xf] %v2812
      %2814 = vst.msk [vmem:[%s2768 + $0x4c] sm:$0xf] %vm301, %v2565
      %v2815 = vld [vmem:[%s2768 + $0x50] sm:$0x1]
      %v2816 = vsel %vm420, %v2566, %v2815
      %2817 = vst [vmem:[%s2768 + $0x50] sm:$0x1] %v2816
      %v2818 = vld [vmem:[%s2768 + $0x54] sm:$0xf]
      %v2819 = vsel %vm414, %v2573, %v2818
      %2820 = vst [vmem:[%s2768 + $0x54] sm:$0xf] %v2819
      %2821 = vst.msk [vmem:[%s2768 + $0x58] sm:$0xf] %vm301, %v2582
      %v2822 = vld [vmem:[%s2768 + $0x5c] sm:$0x1]
      %v2823 = vsel %vm420, %v2583, %v2822
      %2824 = vst [vmem:[%s2768 + $0x5c] sm:$0x1] %v2823
      %v2825 = vld [vmem:[%s2768 + $0x60] sm:$0xf]
      %v2826 = vsel %vm414, %v2590, %v2825
      %2827 = vst [vmem:[%s2768 + $0x60] sm:$0xf] %v2826
      %2828 = vst.msk [vmem:[%s2768 + $0x64] sm:$0xf] %vm301, %v2599
      %v2829 = vld [vmem:[%s2768 + $0x68] sm:$0x1]
      %v2830 = vsel %vm420, %v2600, %v2829
      %2831 = vst [vmem:[%s2768 + $0x68] sm:$0x1] %v2830
      %v2832 = vld [vmem:[%s2768 + $0x6c] sm:$0xf]
      %v2833 = vsel %vm414, %v2607, %v2832
      %2834 = vst [vmem:[%s2768 + $0x6c] sm:$0xf] %v2833
      %2835 = vst.msk [vmem:[%s2768 + $0x70] sm:$0xf] %vm301, %v2616
      %v2836 = vld [vmem:[%s2768 + $0x74] sm:$0x1]
      %v2837 = vsel %vm420, %v2617, %v2836
      %2838 = vst [vmem:[%s2768 + $0x74] sm:$0x1] %v2837
      %v2839 = vld [vmem:[%s2768 + $0x78] sm:$0xf]
      %v2840 = vsel %vm414, %v2624, %v2839
      %2841 = vst [vmem:[%s2768 + $0x78] sm:$0xf] %v2840
      %2842 = vst.msk [vmem:[%s2768 + $0x7c] sm:$0xf] %vm301, %v2633
      %v2843 = vld [vmem:[%s2768 + $0x80] sm:$0x1]
      %v2844 = vsel %vm420, %v2634, %v2843
      %2845 = vst [vmem:[%s2768 + $0x80] sm:$0x1] %v2844
      %v2846 = vld [vmem:[%s2768 + $0x84] sm:$0xf]
      %v2847 = vsel %vm414, %v2641, %v2846
      %2848 = vst [vmem:[%s2768 + $0x84] sm:$0xf] %v2847
      %2849 = vst.msk [vmem:[%s2768 + $0x88] sm:$0xf] %vm301, %v2650
      %v2850 = vld [vmem:[%s2768 + $0x8c] sm:$0x1]
      %v2851 = vsel %vm420, %v2651, %v2850
      %2852 = vst [vmem:[%s2768 + $0x8c] sm:$0x1] %v2851
      %v2853 = vld [vmem:[%s2768 + $0x90] sm:$0xf]
      %v2854 = vsel %vm414, %v2658, %v2853
      %2855 = vst [vmem:[%s2768 + $0x90] sm:$0xf] %v2854
      %2856 = vst.msk [vmem:[%s2768 + $0x94] sm:$0xf] %vm301, %v2667
      %v2857 = vld [vmem:[%s2768 + $0x98] sm:$0x1]
      %v2858 = vsel %vm420, %v2668, %v2857
      %2859 = vst [vmem:[%s2768 + $0x98] sm:$0x1] %v2858
      %v2860 = vld [vmem:[%s2768 + $0x9c] sm:$0xf]
      %v2861 = vsel %vm414, %v2675, %v2860
      %2862 = vst [vmem:[%s2768 + $0x9c] sm:$0xf] %v2861
      %2863 = vst.msk [vmem:[%s2768 + $0xa0] sm:$0xf] %vm301, %v2684
      %v2864 = vld [vmem:[%s2768 + $0xa4] sm:$0x1]
      %v2865 = vsel %vm420, %v2685, %v2864
      %2866 = vst [vmem:[%s2768 + $0xa4] sm:$0x1] %v2865
      %v2867 = vld [vmem:[%s2768 + $0xa8] sm:$0xf]
      %v2868 = vsel %vm414, %v2692, %v2867
      %2869 = vst [vmem:[%s2768 + $0xa8] sm:$0xf] %v2868
      %2870 = vst.msk [vmem:[%s2768 + $0xac] sm:$0xf] %vm301, %v2701
      %v2871 = vld [vmem:[%s2768 + $0xb0] sm:$0x1]
      %v2872 = vsel %vm420, %v2702, %v2871
      %2873 = vst [vmem:[%s2768 + $0xb0] sm:$0x1] %v2872
      %v2874 = vld [vmem:[%s2768 + $0xb4] sm:$0xf]
      %v2875 = vsel %vm414, %v2709, %v2874
      %2876 = vst [vmem:[%s2768 + $0xb4] sm:$0xf] %v2875
      %2877 = vst.msk [vmem:[%s2768 + $0xb8] sm:$0xf] %vm301, %v2718
      %v2878 = vld [vmem:[%s2768 + $0xbc] sm:$0x1]
      %v2879 = vsel %vm420, %v2719, %v2878
      %2880 = vst [vmem:[%s2768 + $0xbc] sm:$0x1] %v2879
      %v2881 = vld [vmem:[#allocation2] sm:$0xf]
      %v2882 = vld [vmem:[#allocation2 + $0x4] sm:$0xf]
      %v2883 = vld [vmem:[#allocation2 + $0xc] sm:$0xf]
      %v2884 = vld [vmem:[#allocation2 + $0x10] sm:$0xf]
      %v2885 = vld [vmem:[#allocation2 + $0x18] sm:$0xf]
      %v2886 = vld [vmem:[#allocation2 + $0x1c] sm:$0xf]
      %v2887 = vld [vmem:[#allocation2 + $0x24] sm:$0xf]
      %v2888 = vld [vmem:[#allocation2 + $0x28] sm:$0xf]
      %v2889 = vld [vmem:[#allocation2 + $0x30] sm:$0xf]
      %v2890 = vld [vmem:[#allocation2 + $0x34] sm:$0xf]
      %v2891 = vld [vmem:[#allocation2 + $0x3c] sm:$0xf]
      %v2892 = vld [vmem:[#allocation2 + $0x40] sm:$0xf]
      %v2893 = vld [vmem:[#allocation2 + $0x48] sm:$0xf]
      %v2894 = vld [vmem:[#allocation2 + $0x4c] sm:$0xf]
      %v2895 = vld [vmem:[#allocation2 + $0x54] sm:$0xf]
      %v2896 = vld [vmem:[#allocation2 + $0x58] sm:$0xf]
      %v2897 = vld [vmem:[#allocation2 + $0x60] sm:$0xf]
      %v2898 = vld [vmem:[#allocation2 + $0x64] sm:$0xf]
      %v2899 = vld [vmem:[#allocation2 + $0x6c] sm:$0xf]
      %v2900 = vld [vmem:[#allocation2 + $0x70] sm:$0xf]
      %v2901 = vld [vmem:[#allocation2 + $0x78] sm:$0xf]
      %v2902 = vld [vmem:[#allocation2 + $0x7c] sm:$0xf]
      %v2903 = vld [vmem:[#allocation2 + $0x84] sm:$0xf]
      %v2904 = vld [vmem:[#allocation2 + $0x88] sm:$0xf]
      %v2905 = vld [vmem:[#allocation2 + $0x90] sm:$0xf]
      %v2906 = vld [vmem:[#allocation2 + $0x94] sm:$0xf]
      %v2907 = vld [vmem:[#allocation2 + $0x9c] sm:$0xf]
      %v2908 = vld [vmem:[#allocation2 + $0xa0] sm:$0xf]
      %v2909 = vld [vmem:[#allocation2 + $0xa8] sm:$0xf]
      %v2910 = vld [vmem:[#allocation2 + $0xac] sm:$0xf]
      %v2911 = vld [vmem:[#allocation2 + $0xb4] sm:$0xf]
      %v2912 = vld [vmem:[#allocation2 + $0xb8] sm:$0xf]
      %2913 = vst.msk [vmem:[#allocation4] sm:$0xf] %vm301, %v2881
      %2914 = vst.msk [vmem:[#allocation4 + $0x14] sm:$0xf] %vm301, %v2882
      %2915 = vst.msk [vmem:[#allocation4 + $0x28] sm:$0xf] %vm301, %v2883
      %2916 = vst.msk [vmem:[#allocation4 + $0x3c] sm:$0xf] %vm301, %v2884
      %2917 = vst.msk [vmem:[#allocation4 + $0x50] sm:$0xf] %vm301, %v2885
      %2918 = vst.msk [vmem:[#allocation4 + $0x64] sm:$0xf] %vm301, %v2886
      %2919 = vst.msk [vmem:[#allocation4 + $0x78] sm:$0xf] %vm301, %v2887
      %2920 = vst.msk [vmem:[#allocation4 + $0x8c] sm:$0xf] %vm301, %v2888
      %2921 = vst.msk [vmem:[#allocation4 + $0xa0] sm:$0xf] %vm301, %v2889
      %2922 = vst.msk [vmem:[#allocation4 + $0xb4] sm:$0xf] %vm301, %v2890
      %2923 = vst.msk [vmem:[#allocation4 + $0xc8] sm:$0xf] %vm301, %v2891
      %2924 = vst.msk [vmem:[#allocation4 + $0xdc] sm:$0xf] %vm301, %v2892
      %2925 = vst.msk [vmem:[#allocation4 + $0xf0] sm:$0xf] %vm301, %v2893
      %2926 = vst.msk [vmem:[#allocation4 + $0x104] sm:$0xf] %vm301, %v2894
      %2927 = vst.msk [vmem:[#allocation4 + $0x118] sm:$0xf] %vm301, %v2895
      %2928 = vst.msk [vmem:[#allocation4 + $0x12c] sm:$0xf] %vm301, %v2896
      %2929 = vst.msk [vmem:[#allocation4 + $0x140] sm:$0xf] %vm301, %v2897
      %2930 = vst.msk [vmem:[#allocation4 + $0x154] sm:$0xf] %vm301, %v2898
      %2931 = vst.msk [vmem:[#allocation4 + $0x168] sm:$0xf] %vm301, %v2899
      %2932 = vst.msk [vmem:[#allocation4 + $0x17c] sm:$0xf] %vm301, %v2900
      %2933 = vst.msk [vmem:[#allocation4 + $0x190] sm:$0xf] %vm301, %v2901
      %2934 = vst.msk [vmem:[#allocation4 + $0x1a4] sm:$0xf] %vm301, %v2902
      %2935 = vst.msk [vmem:[#allocation4 + $0x1b8] sm:$0xf] %vm301, %v2903
      %2936 = vst.msk [vmem:[#allocation4 + $0x1cc] sm:$0xf] %vm301, %v2904
      %2937 = vst.msk [vmem:[#allocation4 + $0x1e0] sm:$0xf] %vm301, %v2905
      %2938 = vst.msk [vmem:[#allocation4 + $0x1f4] sm:$0xf] %vm301, %v2906
      %2939 = vst.msk [vmem:[#allocation4 + $0x208] sm:$0xf] %vm301, %v2907
      %2940 = vst.msk [vmem:[#allocation4 + $0x21c] sm:$0xf] %vm301, %v2908
      %2941 = vst.msk [vmem:[#allocation4 + $0x230] sm:$0xf] %vm301, %v2909
      %2942 = vst.msk [vmem:[#allocation4 + $0x244] sm:$0xf] %vm301, %v2910
      %2943 = vst.msk [vmem:[#allocation4 + $0x258] sm:$0xf] %vm301, %v2911
      %2944 = vst.msk [vmem:[#allocation4 + $0x26c] sm:$0xf] %vm301, %v2912
      %v2945 = vld [vmem:[#allocation2] sm:$0xf]
      %v2946 = vld [vmem:[#allocation2 + $0x4] sm:$0xf]
      %v2947 = vld [vmem:[#allocation2 + $0x8] sm:$0x1]
      %v2948 = vld [vmem:[#allocation2 + $0xc] sm:$0xf]
      %v2949 = vld [vmem:[#allocation2 + $0x10] sm:$0xf]
      %v2950 = vld [vmem:[#allocation2 + $0x14] sm:$0x1]
      %v2951 = vld [vmem:[#allocation2 + $0x18] sm:$0xf]
      %v2952 = vld [vmem:[#allocation2 + $0x1c] sm:$0xf]
      %v2953 = vld [vmem:[#allocation2 + $0x20] sm:$0x1]
      %v2954 = vld [vmem:[#allocation2 + $0x24] sm:$0xf]
      %v2955 = vld [vmem:[#allocation2 + $0x28] sm:$0xf]
      %v2956 = vld [vmem:[#allocation2 + $0x2c] sm:$0x1]
      %v2957 = vld [vmem:[#allocation2 + $0x30] sm:$0xf]
      %v2958 = vld [vmem:[#allocation2 + $0x34] sm:$0xf]
      %v2959 = vld [vmem:[#allocation2 + $0x38] sm:$0x1]
      %v2960 = vld [vmem:[#allocation2 + $0x3c] sm:$0xf]
      %v2961 = vld [vmem:[#allocation2 + $0x40] sm:$0xf]
      %v2962 = vld [vmem:[#allocation2 + $0x44] sm:$0x1]
      %v2963 = vld [vmem:[#allocation2 + $0x48] sm:$0xf]
      %v2964 = vld [vmem:[#allocation2 + $0x4c] sm:$0xf]
      %v2965 = vld [vmem:[#allocation2 + $0x50] sm:$0x1]
      %v2966 = vld [vmem:[#allocation2 + $0x54] sm:$0xf]
      %v2967 = vld [vmem:[#allocation2 + $0x58] sm:$0xf]
      %v2968 = vld [vmem:[#allocation2 + $0x5c] sm:$0x1]
      %v2969 = vld [vmem:[#allocation2 + $0x60] sm:$0xf]
      %v2970 = vld [vmem:[#allocation2 + $0x64] sm:$0xf]
      %v2971 = vld [vmem:[#allocation2 + $0x68] sm:$0x1]
      %v2972 = vld [vmem:[#allocation2 + $0x6c] sm:$0xf]
      %v2973 = vld [vmem:[#allocation2 + $0x70] sm:$0xf]
      %v2974 = vld [vmem:[#allocation2 + $0x74] sm:$0x1]
      %v2975 = vld [vmem:[#allocation2 + $0x78] sm:$0xf]
      %v2976 = vld [vmem:[#allocation2 + $0x7c] sm:$0xf]
      %v2977 = vld [vmem:[#allocation2 + $0x80] sm:$0x1]
      %v2978 = vld [vmem:[#allocation2 + $0x84] sm:$0xf]
      %v2979 = vld [vmem:[#allocation2 + $0x88] sm:$0xf]
      %v2980 = vld [vmem:[#allocation2 + $0x8c] sm:$0x1]
      %v2981 = vld [vmem:[#allocation2 + $0x90] sm:$0xf]
      %v2982 = vld [vmem:[#allocation2 + $0x94] sm:$0xf]
      %v2983 = vld [vmem:[#allocation2 + $0x98] sm:$0x1]
      %v2984 = vld [vmem:[#allocation2 + $0x9c] sm:$0xf]
      %v2985 = vld [vmem:[#allocation2 + $0xa0] sm:$0xf]
      %v2986 = vld [vmem:[#allocation2 + $0xa4] sm:$0x1]
      %v2987 = vld [vmem:[#allocation2 + $0xa8] sm:$0xf]
      %v2988 = vld [vmem:[#allocation2 + $0xac] sm:$0xf]
      %v2989 = vld [vmem:[#allocation2 + $0xb0] sm:$0x1]
      %v2990 = vld [vmem:[#allocation2 + $0xb4] sm:$0xf]
      %v2991 = vld [vmem:[#allocation2 + $0xb8] sm:$0xf]
      %v2992 = vld [vmem:[#allocation2 + $0xbc] sm:$0x1]
      %v2994 = vshrl.u32 %v2945, 16
      %v2996 = vrot.slane %v2994, 4
      %v2997 = vshll.u32 %v2945, 16
      %v2999 = vrot.slane %v2997, 5
      %v3000 = vor.u32 %v2996, %v2999
      %v3001 = vrot.slane %v3000, 4
      %v3003 = vshll.u32 %v2946, 16
      %v3005 = vrot.slane %v3003, 5
      %v3006 = vsel %vm500, %v3001, %v3005
      %v3007 = vshrl.u32 %v2946, 16
      %v3009 = vrot.slane %v3007, 4
      %v3010 = vor.u32 %v3009, %v3005
      %v3011 = vrot.slane %v3010, 4
      %v3013 = vshll.u32 %v2947, 16
      %v3015 = vrot.slane %v3013, 5
      %v3016 = vsel %vm500, %v3011, %v3015
      %v3018 = vshrl.u32 %v2948, 16
      %v3020 = vrot.slane %v3018, 4
      %v3021 = vshll.u32 %v2948, 16
      %v3023 = vrot.slane %v3021, 5
      %v3024 = vor.u32 %v3020, %v3023
      %v3025 = vrot.slane %v3024, 4
      %v3027 = vshll.u32 %v2949, 16
      %v3029 = vrot.slane %v3027, 5
      %v3030 = vsel %vm500, %v3025, %v3029
      %v3031 = vshrl.u32 %v2949, 16
      %v3033 = vrot.slane %v3031, 4
      %v3034 = vor.u32 %v3033, %v3029
      %v3035 = vrot.slane %v3034, 4
      %v3037 = vshll.u32 %v2950, 16
      %v3039 = vrot.slane %v3037, 5
      %v3040 = vsel %vm500, %v3035, %v3039
      %v3042 = vshrl.u32 %v2951, 16
      %v3044 = vrot.slane %v3042, 4
      %v3045 = vshll.u32 %v2951, 16
      %v3047 = vrot.slane %v3045, 5
      %v3048 = vor.u32 %v3044, %v3047
      %v3049 = vrot.slane %v3048, 4
      %v3051 = vshll.u32 %v2952, 16
      %v3053 = vrot.slane %v3051, 5
      %v3054 = vsel %vm500, %v3049, %v3053
      %v3055 = vshrl.u32 %v2952, 16
      %v3057 = vrot.slane %v3055, 4
      %v3058 = vor.u32 %v3057, %v3053
      %v3059 = vrot.slane %v3058, 4
      %v3061 = vshll.u32 %v2953, 16
      %v3063 = vrot.slane %v3061, 5
      %v3064 = vsel %vm500, %v3059, %v3063
      %v3066 = vshrl.u32 %v2954, 16
      %v3068 = vrot.slane %v3066, 4
      %v3069 = vshll.u32 %v2954, 16
      %v3071 = vrot.slane %v3069, 5
      %v3072 = vor.u32 %v3068, %v3071
      %v3073 = vrot.slane %v3072, 4
      %v3075 = vshll.u32 %v2955, 16
      %v3077 = vrot.slane %v3075, 5
      %v3078 = vsel %vm500, %v3073, %v3077
      %v3079 = vshrl.u32 %v2955, 16
      %v3081 = vrot.slane %v3079, 4
      %v3082 = vor.u32 %v3081, %v3077
      %v3083 = vrot.slane %v3082, 4
      %v3085 = vshll.u32 %v2956, 16
      %v3087 = vrot.slane %v3085, 5
      %v3088 = vsel %vm500, %v3083, %v3087
      %v3090 = vshrl.u32 %v2957, 16
      %v3092 = vrot.slane %v3090, 4
      %v3093 = vshll.u32 %v2957, 16
      %v3095 = vrot.slane %v3093, 5
      %v3096 = vor.u32 %v3092, %v3095
      %v3097 = vrot.slane %v3096, 4
      %v3099 = vshll.u32 %v2958, 16
      %v3101 = vrot.slane %v3099, 5
      %v3102 = vsel %vm500, %v3097, %v3101
      %v3103 = vshrl.u32 %v2958, 16
      %v3105 = vrot.slane %v3103, 4
      %v3106 = vor.u32 %v3105, %v3101
      %v3107 = vrot.slane %v3106, 4
      %v3109 = vshll.u32 %v2959, 16
      %v3111 = vrot.slane %v3109, 5
      %v3112 = vsel %vm500, %v3107, %v3111
      %v3114 = vshrl.u32 %v2960, 16
      %v3116 = vrot.slane %v3114, 4
      %v3117 = vshll.u32 %v2960, 16
      %v3119 = vrot.slane %v3117, 5
      %v3120 = vor.u32 %v3116, %v3119
      %v3121 = vrot.slane %v3120, 4
      %v3123 = vshll.u32 %v2961, 16
      %v3125 = vrot.slane %v3123, 5
      %v3126 = vsel %vm500, %v3121, %v3125
      %v3127 = vshrl.u32 %v2961, 16
      %v3129 = vrot.slane %v3127, 4
      %v3130 = vor.u32 %v3129, %v3125
      %v3131 = vrot.slane %v3130, 4
      %v3133 = vshll.u32 %v2962, 16
      %v3135 = vrot.slane %v3133, 5
      %v3136 = vsel %vm500, %v3131, %v3135
      %v3138 = vshrl.u32 %v2963, 16
      %v3140 = vrot.slane %v3138, 4
      %v3141 = vshll.u32 %v2963, 16
      %v3143 = vrot.slane %v3141, 5
      %v3144 = vor.u32 %v3140, %v3143
      %v3145 = vrot.slane %v3144, 4
      %v3147 = vshll.u32 %v2964, 16
      %v3149 = vrot.slane %v3147, 5
      %v3150 = vsel %vm500, %v3145, %v3149
      %v3151 = vshrl.u32 %v2964, 16
      %v3153 = vrot.slane %v3151, 4
      %v3154 = vor.u32 %v3153, %v3149
      %v3155 = vrot.slane %v3154, 4
      %v3157 = vshll.u32 %v2965, 16
      %v3159 = vrot.slane %v3157, 5
      %v3160 = vsel %vm500, %v3155, %v3159
      %v3162 = vshrl.u32 %v2966, 16
      %v3164 = vrot.slane %v3162, 4
      %v3165 = vshll.u32 %v2966, 16
      %v3167 = vrot.slane %v3165, 5
      %v3168 = vor.u32 %v3164, %v3167
      %v3169 = vrot.slane %v3168, 4
      %v3171 = vshll.u32 %v2967, 16
      %v3173 = vrot.slane %v3171, 5
      %v3174 = vsel %vm500, %v3169, %v3173
      %v3175 = vshrl.u32 %v2967, 16
      %v3177 = vrot.slane %v3175, 4
      %v3178 = vor.u32 %v3177, %v3173
      %v3179 = vrot.slane %v3178, 4
      %v3181 = vshll.u32 %v2968, 16
      %v3183 = vrot.slane %v3181, 5
      %v3184 = vsel %vm500, %v3179, %v3183
      %v3186 = vshrl.u32 %v2969, 16
      %v3188 = vrot.slane %v3186, 4
      %v3189 = vshll.u32 %v2969, 16
      %v3191 = vrot.slane %v3189, 5
      %v3192 = vor.u32 %v3188, %v3191
      %v3193 = vrot.slane %v3192, 4
      %v3195 = vshll.u32 %v2970, 16
      %v3197 = vrot.slane %v3195, 5
      %v3198 = vsel %vm500, %v3193, %v3197
      %v3199 = vshrl.u32 %v2970, 16
      %v3201 = vrot.slane %v3199, 4
      %v3202 = vor.u32 %v3201, %v3197
      %v3203 = vrot.slane %v3202, 4
      %v3205 = vshll.u32 %v2971, 16
      %v3207 = vrot.slane %v3205, 5
      %v3208 = vsel %vm500, %v3203, %v3207
      %v3210 = vshrl.u32 %v2972, 16
      %v3212 = vrot.slane %v3210, 4
      %v3213 = vshll.u32 %v2972, 16
      %v3215 = vrot.slane %v3213, 5
      %v3216 = vor.u32 %v3212, %v3215
      %v3217 = vrot.slane %v3216, 4
      %v3219 = vshll.u32 %v2973, 16
      %v3221 = vrot.slane %v3219, 5
      %v3222 = vsel %vm500, %v3217, %v3221
      %v3223 = vshrl.u32 %v2973, 16
      %v3225 = vrot.slane %v3223, 4
      %v3226 = vor.u32 %v3225, %v3221
      %v3227 = vrot.slane %v3226, 4
      %v3229 = vshll.u32 %v2974, 16
      %v3231 = vrot.slane %v3229, 5
      %v3232 = vsel %vm500, %v3227, %v3231
      %v3234 = vshrl.u32 %v2975, 16
      %v3236 = vrot.slane %v3234, 4
      %v3237 = vshll.u32 %v2975, 16
      %v3239 = vrot.slane %v3237, 5
      %v3240 = vor.u32 %v3236, %v3239
      %v3241 = vrot.slane %v3240, 4
      %v3243 = vshll.u32 %v2976, 16
      %v3245 = vrot.slane %v3243, 5
      %v3246 = vsel %vm500, %v3241, %v3245
      %v3247 = vshrl.u32 %v2976, 16
      %v3249 = vrot.slane %v3247, 4
      %v3250 = vor.u32 %v3249, %v3245
      %v3251 = vrot.slane %v3250, 4
      %v3253 = vshll.u32 %v2977, 16
      %v3255 = vrot.slane %v3253, 5
      %v3256 = vsel %vm500, %v3251, %v3255
      %v3258 = vshrl.u32 %v2978, 16
      %v3260 = vrot.slane %v3258, 4
      %v3261 = vshll.u32 %v2978, 16
      %v3263 = vrot.slane %v3261, 5
      %v3264 = vor.u32 %v3260, %v3263
      %v3265 = vrot.slane %v3264, 4
      %v3267 = vshll.u32 %v2979, 16
      %v3269 = vrot.slane %v3267, 5
      %v3270 = vsel %vm500, %v3265, %v3269
      %v3271 = vshrl.u32 %v2979, 16
      %v3273 = vrot.slane %v3271, 4
      %v3274 = vor.u32 %v3273, %v3269
      %v3275 = vrot.slane %v3274, 4
      %v3277 = vshll.u32 %v2980, 16
      %v3279 = vrot.slane %v3277, 5
      %v3280 = vsel %vm500, %v3275, %v3279
      %v3282 = vshrl.u32 %v2981, 16
      %v3284 = vrot.slane %v3282, 4
      %v3285 = vshll.u32 %v2981, 16
      %v3287 = vrot.slane %v3285, 5
      %v3288 = vor.u32 %v3284, %v3287
      %v3289 = vrot.slane %v3288, 4
      %v3291 = vshll.u32 %v2982, 16
      %v3293 = vrot.slane %v3291, 5
      %v3294 = vsel %vm500, %v3289, %v3293
      %v3295 = vshrl.u32 %v2982, 16
      %v3297 = vrot.slane %v3295, 4
      %v3298 = vor.u32 %v3297, %v3293
      %v3299 = vrot.slane %v3298, 4
      %v3301 = vshll.u32 %v2983, 16
      %v3303 = vrot.slane %v3301, 5
      %v3304 = vsel %vm500, %v3299, %v3303
      %v3306 = vshrl.u32 %v2984, 16
      %v3308 = vrot.slane %v3306, 4
      %v3309 = vshll.u32 %v2984, 16
      %v3311 = vrot.slane %v3309, 5
      %v3312 = vor.u32 %v3308, %v3311
      %v3313 = vrot.slane %v3312, 4
      %v3315 = vshll.u32 %v2985, 16
      %v3317 = vrot.slane %v3315, 5
      %v3318 = vsel %vm500, %v3313, %v3317
      %v3319 = vshrl.u32 %v2985, 16
      %v3321 = vrot.slane %v3319, 4
      %v3322 = vor.u32 %v3321, %v3317
      %v3323 = vrot.slane %v3322, 4
      %v3325 = vshll.u32 %v2986, 16
      %v3327 = vrot.slane %v3325, 5
      %v3328 = vsel %vm500, %v3323, %v3327
      %v3330 = vshrl.u32 %v2987, 16
      %v3332 = vrot.slane %v3330, 4
      %v3333 = vshll.u32 %v2987, 16
      %v3335 = vrot.slane %v3333, 5
      %v3336 = vor.u32 %v3332, %v3335
      %v3337 = vrot.slane %v3336, 4
      %v3339 = vshll.u32 %v2988, 16
      %v3341 = vrot.slane %v3339, 5
      %v3342 = vsel %vm500, %v3337, %v3341
      %v3343 = vshrl.u32 %v2988, 16
      %v3345 = vrot.slane %v3343, 4
      %v3346 = vor.u32 %v3345, %v3341
      %v3347 = vrot.slane %v3346, 4
      %v3349 = vshll.u32 %v2989, 16
      %v3351 = vrot.slane %v3349, 5
      %v3352 = vsel %vm500, %v3347, %v3351
      %v3354 = vshrl.u32 %v2990, 16
      %v3356 = vrot.slane %v3354, 4
      %v3357 = vshll.u32 %v2990, 16
      %v3359 = vrot.slane %v3357, 5
      %v3360 = vor.u32 %v3356, %v3359
      %v3361 = vrot.slane %v3360, 4
      %v3363 = vshll.u32 %v2991, 16
      %v3365 = vrot.slane %v3363, 5
      %v3366 = vsel %vm500, %v3361, %v3365
      %v3367 = vshrl.u32 %v2991, 16
      %v3369 = vrot.slane %v3367, 4
      %v3370 = vor.u32 %v3369, %v3365
      %v3371 = vrot.slane %v3370, 4
      %v3373 = vshll.u32 %v2992, 16
      %v3375 = vrot.slane %v3373, 5
      %v3376 = vsel %vm500, %v3371, %v3375
      %3377 = vrot.lane.b32.xlu0 %v3006, 64
      %v3378 = vpop.permute.xlu0 %3377
      %3379 = vrot.lane.b32.xlu0 %v3016, 64
      %v3380 = vpop.permute.xlu0 %3379
      %3381 = vrot.lane.b32.xlu0 %v3030, 64
      %v3382 = vpop.permute.xlu0 %3381
      %3383 = vrot.lane.b32.xlu0 %v3040, 64
      %v3384 = vpop.permute.xlu0 %3383
      %3385 = vrot.lane.b32.xlu0 %v3054, 64
      %v3386 = vpop.permute.xlu0 %3385
      %3387 = vrot.lane.b32.xlu0 %v3064, 64
      %v3388 = vpop.permute.xlu0 %3387
      %3389 = vrot.lane.b32.xlu0 %v3078, 64
      %v3390 = vpop.permute.xlu0 %3389
      %3391 = vrot.lane.b32.xlu0 %v3088, 64
      %v3392 = vpop.permute.xlu0 %3391
      %3393 = vrot.lane.b32.xlu0 %v3102, 64
      %v3394 = vpop.permute.xlu0 %3393
      %3395 = vrot.lane.b32.xlu0 %v3112, 64
      %v3396 = vpop.permute.xlu0 %3395
      %3397 = vrot.lane.b32.xlu0 %v3126, 64
      %v3398 = vpop.permute.xlu0 %3397
      %3399 = vrot.lane.b32.xlu0 %v3136, 64
      %v3400 = vpop.permute.xlu0 %3399
      %3401 = vrot.lane.b32.xlu0 %v3150, 64
      %v3402 = vpop.permute.xlu0 %3401
      %3403 = vrot.lane.b32.xlu0 %v3160, 64
      %v3404 = vpop.permute.xlu0 %3403
      %3405 = vrot.lane.b32.xlu0 %v3174, 64
      %v3406 = vpop.permute.xlu0 %3405
      %3407 = vrot.lane.b32.xlu0 %v3184, 64
      %v3408 = vpop.permute.xlu0 %3407
      %3409 = vrot.lane.b32.xlu0 %v3198, 64
      %v3410 = vpop.permute.xlu0 %3409
      %3411 = vrot.lane.b32.xlu0 %v3208, 64
      %v3412 = vpop.permute.xlu0 %3411
      %3413 = vrot.lane.b32.xlu0 %v3222, 64
      %v3414 = vpop.permute.xlu0 %3413
      %3415 = vrot.lane.b32.xlu0 %v3232, 64
      %v3416 = vpop.permute.xlu0 %3415
      %3417 = vrot.lane.b32.xlu0 %v3246, 64
      %v3418 = vpop.permute.xlu0 %3417
      %3419 = vrot.lane.b32.xlu0 %v3256, 64
      %v3420 = vpop.permute.xlu0 %3419
      %3421 = vrot.lane.b32.xlu0 %v3270, 64
      %v3422 = vpop.permute.xlu0 %3421
      %3423 = vrot.lane.b32.xlu0 %v3280, 64
      %v3424 = vpop.permute.xlu0 %3423
      %3425 = vrot.lane.b32.xlu0 %v3294, 64
      %v3426 = vpop.permute.xlu0 %3425
      %3427 = vrot.lane.b32.xlu0 %v3304, 64
      %v3428 = vpop.permute.xlu0 %3427
      %3429 = vrot.lane.b32.xlu0 %v3318, 64
      %v3430 = vpop.permute.xlu0 %3429
      %3431 = vrot.lane.b32.xlu0 %v3328, 64
      %v3432 = vpop.permute.xlu0 %3431
      %3433 = vrot.lane.b32.xlu0 %v3342, 64
      %v3434 = vpop.permute.xlu0 %3433
      %3435 = vrot.lane.b32.xlu0 %v3352, 64
      %v3436 = vpop.permute.xlu0 %3435
      %3437 = vrot.lane.b32.xlu0 %v3366, 64
      %v3438 = vpop.permute.xlu0 %3437
      %3439 = vrot.lane.b32.xlu0 %v3376, 64
      %v3440 = vpop.permute.xlu0 %3439
      %3473 = vst.msk [vmem:[#allocation4] sm:$0xf] %vm637, %v3378
      %3474 = vst.msk [vmem:[#allocation4 + $0x14] sm:$0xf] %vm637, %v3380
      %3475 = vst.msk [vmem:[#allocation4 + $0x28] sm:$0xf] %vm637, %v3382
      %3476 = vst.msk [vmem:[#allocation4 + $0x3c] sm:$0xf] %vm637, %v3384
      %3477 = vst.msk [vmem:[#allocation4 + $0x50] sm:$0xf] %vm637, %v3386
      %3478 = vst.msk [vmem:[#allocation4 + $0x64] sm:$0xf] %vm637, %v3388
      %3479 = vst.msk [vmem:[#allocation4 + $0x78] sm:$0xf] %vm637, %v3390
      %3480 = vst.msk [vmem:[#allocation4 + $0x8c] sm:$0xf] %vm637, %v3392
      %3481 = vst.msk [vmem:[#allocation4 + $0xa0] sm:$0xf] %vm637, %v3394
      %3482 = vst.msk [vmem:[#allocation4 + $0xb4] sm:$0xf] %vm637, %v3396
      %3483 = vst.msk [vmem:[#allocation4 + $0xc8] sm:$0xf] %vm637, %v3398
      %3484 = vst.msk [vmem:[#allocation4 + $0xdc] sm:$0xf] %vm637, %v3400
      %3485 = vst.msk [vmem:[#allocation4 + $0xf0] sm:$0xf] %vm637, %v3402
      %3486 = vst.msk [vmem:[#allocation4 + $0x104] sm:$0xf] %vm637, %v3404
      %3487 = vst.msk [vmem:[#allocation4 + $0x118] sm:$0xf] %vm637, %v3406
      %3488 = vst.msk [vmem:[#allocation4 + $0x12c] sm:$0xf] %vm637, %v3408
      %3489 = vst.msk [vmem:[#allocation4 + $0x140] sm:$0xf] %vm637, %v3410
      %3490 = vst.msk [vmem:[#allocation4 + $0x154] sm:$0xf] %vm637, %v3412
      %3491 = vst.msk [vmem:[#allocation4 + $0x168] sm:$0xf] %vm637, %v3414
      %3492 = vst.msk [vmem:[#allocation4 + $0x17c] sm:$0xf] %vm637, %v3416
      %3493 = vst.msk [vmem:[#allocation4 + $0x190] sm:$0xf] %vm637, %v3418
      %3494 = vst.msk [vmem:[#allocation4 + $0x1a4] sm:$0xf] %vm637, %v3420
      %3495 = vst.msk [vmem:[#allocation4 + $0x1b8] sm:$0xf] %vm637, %v3422
      %3496 = vst.msk [vmem:[#allocation4 + $0x1cc] sm:$0xf] %vm637, %v3424
      %3497 = vst.msk [vmem:[#allocation4 + $0x1e0] sm:$0xf] %vm637, %v3426
      %3498 = vst.msk [vmem:[#allocation4 + $0x1f4] sm:$0xf] %vm637, %v3428
      %3499 = vst.msk [vmem:[#allocation4 + $0x208] sm:$0xf] %vm637, %v3430
      %3500 = vst.msk [vmem:[#allocation4 + $0x21c] sm:$0xf] %vm637, %v3432
      %3501 = vst.msk [vmem:[#allocation4 + $0x230] sm:$0xf] %vm637, %v3434
      %3502 = vst.msk [vmem:[#allocation4 + $0x244] sm:$0xf] %vm637, %v3436
      %3503 = vst.msk [vmem:[#allocation4 + $0x258] sm:$0xf] %vm637, %v3438
      %3504 = vst.msk [vmem:[#allocation4 + $0x26c] sm:$0xf] %vm637, %v3440
      %v3505 = vld [vmem:[#allocation2] sm:$0xe]
      %v3506 = vld [vmem:[#allocation2 + $0x4] sm:$0xf]
      %v3507 = vld [vmem:[#allocation2 + $0x8] sm:$0x1]
      %v3508 = vld [vmem:[#allocation2 + $0xc] sm:$0xe]
      %v3509 = vld [vmem:[#allocation2 + $0x10] sm:$0xf]
      %v3510 = vld [vmem:[#allocation2 + $0x14] sm:$0x1]
      %v3511 = vld [vmem:[#allocation2 + $0x18] sm:$0xe]
      %v3512 = vld [vmem:[#allocation2 + $0x1c] sm:$0xf]
      %v3513 = vld [vmem:[#allocation2 + $0x20] sm:$0x1]
      %v3514 = vld [vmem:[#allocation2 + $0x24] sm:$0xe]
      %v3515 = vld [vmem:[#allocation2 + $0x28] sm:$0xf]
      %v3516 = vld [vmem:[#allocation2 + $0x2c] sm:$0x1]
      %v3517 = vld [vmem:[#allocation2 + $0x30] sm:$0xe]
      %v3518 = vld [vmem:[#allocation2 + $0x34] sm:$0xf]
      %v3519 = vld [vmem:[#allocation2 + $0x38] sm:$0x1]
      %v3520 = vld [vmem:[#allocation2 + $0x3c] sm:$0xe]
      %v3521 = vld [vmem:[#allocation2 + $0x40] sm:$0xf]
      %v3522 = vld [vmem:[#allocation2 + $0x44] sm:$0x1]
      %v3523 = vld [vmem:[#allocation2 + $0x48] sm:$0xe]
      %v3524 = vld [vmem:[#allocation2 + $0x4c] sm:$0xf]
      %v3525 = vld [vmem:[#allocation2 + $0x50] sm:$0x1]
      %v3526 = vld [vmem:[#allocation2 + $0x54] sm:$0xe]
      %v3527 = vld [vmem:[#allocation2 + $0x58] sm:$0xf]
      %v3528 = vld [vmem:[#allocation2 + $0x5c] sm:$0x1]
      %v3529 = vld [vmem:[#allocation2 + $0x60] sm:$0xe]
      %v3530 = vld [vmem:[#allocation2 + $0x64] sm:$0xf]
      %v3531 = vld [vmem:[#allocation2 + $0x68] sm:$0x1]
      %v3532 = vld [vmem:[#allocation2 + $0x6c] sm:$0xe]
      %v3533 = vld [vmem:[#allocation2 + $0x70] sm:$0xf]
      %v3534 = vld [vmem:[#allocation2 + $0x74] sm:$0x1]
      %v3535 = vld [vmem:[#allocation2 + $0x78] sm:$0xe]
      %v3536 = vld [vmem:[#allocation2 + $0x7c] sm:$0xf]
      %v3537 = vld [vmem:[#allocation2 + $0x80] sm:$0x1]
      %v3538 = vld [vmem:[#allocation2 + $0x84] sm:$0xe]
      %v3539 = vld [vmem:[#allocation2 + $0x88] sm:$0xf]
      %v3540 = vld [vmem:[#allocation2 + $0x8c] sm:$0x1]
      %v3541 = vld [vmem:[#allocation2 + $0x90] sm:$0xe]
      %v3542 = vld [vmem:[#allocation2 + $0x94] sm:$0xf]
      %v3543 = vld [vmem:[#allocation2 + $0x98] sm:$0x1]
      %v3544 = vld [vmem:[#allocation2 + $0x9c] sm:$0xe]
      %v3545 = vld [vmem:[#allocation2 + $0xa0] sm:$0xf]
      %v3546 = vld [vmem:[#allocation2 + $0xa4] sm:$0x1]
      %v3547 = vld [vmem:[#allocation2 + $0xa8] sm:$0xe]
      %v3548 = vld [vmem:[#allocation2 + $0xac] sm:$0xf]
      %v3549 = vld [vmem:[#allocation2 + $0xb0] sm:$0x1]
      %v3550 = vld [vmem:[#allocation2 + $0xb4] sm:$0xe]
      %v3551 = vld [vmem:[#allocation2 + $0xb8] sm:$0xf]
      %v3552 = vld [vmem:[#allocation2 + $0xbc] sm:$0x1]
      %v3601 = vrot.slane %v3505, 5
      %v3602 = vrot.slane %v3601, 4
      %v3603 = vrot.slane %v3506, 5
      %v3604 = vsel %vm680, %v3602, %v3603
      %v3605 = vrot.slane %v3603, 4
      %v3606 = vrot.slane %v3507, 5
      %v3607 = vsel %vm680, %v3605, %v3606
      %v3608 = vrot.slane %v3508, 5
      %v3609 = vrot.slane %v3608, 4
      %v3610 = vrot.slane %v3509, 5
      %v3611 = vsel %vm680, %v3609, %v3610
      %v3612 = vrot.slane %v3610, 4
      %v3613 = vrot.slane %v3510, 5
      %v3614 = vsel %vm680, %v3612, %v3613
      %v3615 = vrot.slane %v3511, 5
      %v3616 = vrot.slane %v3615, 4
      %v3617 = vrot.slane %v3512, 5
      %v3618 = vsel %vm680, %v3616, %v3617
      %v3619 = vrot.slane %v3617, 4
      %v3620 = vrot.slane %v3513, 5
      %v3621 = vsel %vm680, %v3619, %v3620
      %v3622 = vrot.slane %v3514, 5
      %v3623 = vrot.slane %v3622, 4
      %v3624 = vrot.slane %v3515, 5
      %v3625 = vsel %vm680, %v3623, %v3624
      %v3626 = vrot.slane %v3624, 4
      %v3627 = vrot.slane %v3516, 5
      %v3628 = vsel %vm680, %v3626, %v3627
      %v3629 = vrot.slane %v3517, 5
      %v3630 = vrot.slane %v3629, 4
      %v3631 = vrot.slane %v3518, 5
      %v3632 = vsel %vm680, %v3630, %v3631
      %v3633 = vrot.slane %v3631, 4
      %v3634 = vrot.slane %v3519, 5
      %v3635 = vsel %vm680, %v3633, %v3634
      %v3636 = vrot.slane %v3520, 5
      %v3637 = vrot.slane %v3636, 4
      %v3638 = vrot.slane %v3521, 5
      %v3639 = vsel %vm680, %v3637, %v3638
      %v3640 = vrot.slane %v3638, 4
      %v3641 = vrot.slane %v3522, 5
      %v3642 = vsel %vm680, %v3640, %v3641
      %v3643 = vrot.slane %v3523, 5
      %v3644 = vrot.slane %v3643, 4
      %v3645 = vrot.slane %v3524, 5
      %v3646 = vsel %vm680, %v3644, %v3645
      %v3647 = vrot.slane %v3645, 4
      %v3648 = vrot.slane %v3525, 5
      %v3649 = vsel %vm680, %v3647, %v3648
      %v3650 = vrot.slane %v3526, 5
      %v3651 = vrot.slane %v3650, 4
      %v3652 = vrot.slane %v3527, 5
      %v3653 = vsel %vm680, %v3651, %v3652
      %v3654 = vrot.slane %v3652, 4
      %v3655 = vrot.slane %v3528, 5
      %v3656 = vsel %vm680, %v3654, %v3655
      %v3657 = vrot.slane %v3529, 5
      %v3658 = vrot.slane %v3657, 4
      %v3659 = vrot.slane %v3530, 5
      %v3660 = vsel %vm680, %v3658, %v3659
      %v3661 = vrot.slane %v3659, 4
      %v3662 = vrot.slane %v3531, 5
      %v3663 = vsel %vm680, %v3661, %v3662
      %v3664 = vrot.slane %v3532, 5
      %v3665 = vrot.slane %v3664, 4
      %v3666 = vrot.slane %v3533, 5
      %v3667 = vsel %vm680, %v3665, %v3666
      %v3668 = vrot.slane %v3666, 4
      %v3669 = vrot.slane %v3534, 5
      %v3670 = vsel %vm680, %v3668, %v3669
      %v3671 = vrot.slane %v3535, 5
      %v3672 = vrot.slane %v3671, 4
      %v3673 = vrot.slane %v3536, 5
      %v3674 = vsel %vm680, %v3672, %v3673
      %v3675 = vrot.slane %v3673, 4
      %v3676 = vrot.slane %v3537, 5
      %v3677 = vsel %vm680, %v3675, %v3676
      %v3678 = vrot.slane %v3538, 5
      %v3679 = vrot.slane %v3678, 4
      %v3680 = vrot.slane %v3539, 5
      %v3681 = vsel %vm680, %v3679, %v3680
      %v3682 = vrot.slane %v3680, 4
      %v3683 = vrot.slane %v3540, 5
      %v3684 = vsel %vm680, %v3682, %v3683
      %v3685 = vrot.slane %v3541, 5
      %v3686 = vrot.slane %v3685, 4
      %v3687 = vrot.slane %v3542, 5
      %v3688 = vsel %vm680, %v3686, %v3687
      %v3689 = vrot.slane %v3687, 4
      %v3690 = vrot.slane %v3543, 5
      %v3691 = vsel %vm680, %v3689, %v3690
      %v3692 = vrot.slane %v3544, 5
      %v3693 = vrot.slane %v3692, 4
      %v3694 = vrot.slane %v3545, 5
      %v3695 = vsel %vm680, %v3693, %v3694
      %v3696 = vrot.slane %v3694, 4
      %v3697 = vrot.slane %v3546, 5
      %v3698 = vsel %vm680, %v3696, %v3697
      %v3699 = vrot.slane %v3547, 5
      %v3700 = vrot.slane %v3699, 4
      %v3701 = vrot.slane %v3548, 5
      %v3702 = vsel %vm680, %v3700, %v3701
      %v3703 = vrot.slane %v3701, 4
      %v3704 = vrot.slane %v3549, 5
      %v3705 = vsel %vm680, %v3703, %v3704
      %v3706 = vrot.slane %v3550, 5
      %v3707 = vrot.slane %v3706, 4
      %v3708 = vrot.slane %v3551, 5
      %v3709 = vsel %vm680, %v3707, %v3708
      %v3710 = vrot.slane %v3708, 4
      %v3711 = vrot.slane %v3552, 5
      %v3712 = vsel %vm680, %v3710, %v3711
      %3745 = vst.msk [vmem:[#allocation4 + $0x4] sm:$0xf] %vm301, %v3604
      %3746 = vst.msk [vmem:[#allocation4 + $0x18] sm:$0xf] %vm301, %v3607
      %3747 = vst.msk [vmem:[#allocation4 + $0x2c] sm:$0xf] %vm301, %v3611
      %3748 = vst.msk [vmem:[#allocation4 + $0x40] sm:$0xf] %vm301, %v3614
      %3749 = vst.msk [vmem:[#allocation4 + $0x54] sm:$0xf] %vm301, %v3618
      %3750 = vst.msk [vmem:[#allocation4 + $0x68] sm:$0xf] %vm301, %v3621
      %3751 = vst.msk [vmem:[#allocation4 + $0x7c] sm:$0xf] %vm301, %v3625
      %3752 = vst.msk [vmem:[#allocation4 + $0x90] sm:$0xf] %vm301, %v3628
      %3753 = vst.msk [vmem:[#allocation4 + $0xa4] sm:$0xf] %vm301, %v3632
      %3754 = vst.msk [vmem:[#allocation4 + $0xb8] sm:$0xf] %vm301, %v3635
      %3755 = vst.msk [vmem:[#allocation4 + $0xcc] sm:$0xf] %vm301, %v3639
      %3756 = vst.msk [vmem:[#allocation4 + $0xe0] sm:$0xf] %vm301, %v3642
      %3757 = vst.msk [vmem:[#allocation4 + $0xf4] sm:$0xf] %vm301, %v3646
      %3758 = vst.msk [vmem:[#allocation4 + $0x108] sm:$0xf] %vm301, %v3649
      %3759 = vst.msk [vmem:[#allocation4 + $0x11c] sm:$0xf] %vm301, %v3653
      %3760 = vst.msk [vmem:[#allocation4 + $0x130] sm:$0xf] %vm301, %v3656
      %3761 = vst.msk [vmem:[#allocation4 + $0x144] sm:$0xf] %vm301, %v3660
      %3762 = vst.msk [vmem:[#allocation4 + $0x158] sm:$0xf] %vm301, %v3663
      %3763 = vst.msk [vmem:[#allocation4 + $0x16c] sm:$0xf] %vm301, %v3667
      %3764 = vst.msk [vmem:[#allocation4 + $0x180] sm:$0xf] %vm301, %v3670
      %3765 = vst.msk [vmem:[#allocation4 + $0x194] sm:$0xf] %vm301, %v3674
      %3766 = vst.msk [vmem:[#allocation4 + $0x1a8] sm:$0xf] %vm301, %v3677
      %3767 = vst.msk [vmem:[#allocation4 + $0x1bc] sm:$0xf] %vm301, %v3681
      %3768 = vst.msk [vmem:[#allocation4 + $0x1d0] sm:$0xf] %vm301, %v3684
      %3769 = vst.msk [vmem:[#allocation4 + $0x1e4] sm:$0xf] %vm301, %v3688
      %3770 = vst.msk [vmem:[#allocation4 + $0x1f8] sm:$0xf] %vm301, %v3691
      %3771 = vst.msk [vmem:[#allocation4 + $0x20c] sm:$0xf] %vm301, %v3695
      %3772 = vst.msk [vmem:[#allocation4 + $0x220] sm:$0xf] %vm301, %v3698
      %3773 = vst.msk [vmem:[#allocation4 + $0x234] sm:$0xf] %vm301, %v3702
      %3774 = vst.msk [vmem:[#allocation4 + $0x248] sm:$0xf] %vm301, %v3705
      %3775 = vst.msk [vmem:[#allocation4 + $0x25c] sm:$0xf] %vm301, %v3709
      %3776 = vst.msk [vmem:[#allocation4 + $0x270] sm:$0xf] %vm301, %v3712
      %v3777 = vld [vmem:[%s2768] sm:$0xf]
      %v3778 = vld [vmem:[%s2768 + $0x4] sm:$0xf]
      %v3779 = vld [vmem:[%s2768 + $0xc] sm:$0xf]
      %v3780 = vld [vmem:[%s2768 + $0x10] sm:$0xf]
      %v3781 = vld [vmem:[%s2768 + $0x18] sm:$0xf]
      %v3782 = vld [vmem:[%s2768 + $0x1c] sm:$0xf]
      %v3783 = vld [vmem:[%s2768 + $0x24] sm:$0xf]
      %v3784 = vld [vmem:[%s2768 + $0x28] sm:$0xf]
      %v3785 = vld [vmem:[%s2768 + $0x30] sm:$0xf]
      %v3786 = vld [vmem:[%s2768 + $0x34] sm:$0xf]
      %v3787 = vld [vmem:[%s2768 + $0x3c] sm:$0xf]
      %v3788 = vld [vmem:[%s2768 + $0x40] sm:$0xf]
      %v3789 = vld [vmem:[%s2768 + $0x48] sm:$0xf]
      %v3790 = vld [vmem:[%s2768 + $0x4c] sm:$0xf]
      %v3791 = vld [vmem:[%s2768 + $0x54] sm:$0xf]
      %v3792 = vld [vmem:[%s2768 + $0x58] sm:$0xf]
      %v3793 = vld [vmem:[%s2768 + $0x60] sm:$0xf]
      %v3794 = vld [vmem:[%s2768 + $0x64] sm:$0xf]
      %v3795 = vld [vmem:[%s2768 + $0x6c] sm:$0xf]
      %v3796 = vld [vmem:[%s2768 + $0x70] sm:$0xf]
      %v3797 = vld [vmem:[%s2768 + $0x78] sm:$0xf]
      %v3798 = vld [vmem:[%s2768 + $0x7c] sm:$0xf]
      %v3799 = vld [vmem:[%s2768 + $0x84] sm:$0xf]
      %v3800 = vld [vmem:[%s2768 + $0x88] sm:$0xf]
      %v3801 = vld [vmem:[%s2768 + $0x90] sm:$0xf]
      %v3802 = vld [vmem:[%s2768 + $0x94] sm:$0xf]
      %v3803 = vld [vmem:[%s2768 + $0x9c] sm:$0xf]
      %v3804 = vld [vmem:[%s2768 + $0xa0] sm:$0xf]
      %v3805 = vld [vmem:[%s2768 + $0xa8] sm:$0xf]
      %v3806 = vld [vmem:[%s2768 + $0xac] sm:$0xf]
      %v3807 = vld [vmem:[%s2768 + $0xb4] sm:$0xf]
      %v3808 = vld [vmem:[%s2768 + $0xb8] sm:$0xf]
      %3841 = vrot.lane.b32.xlu0 %v3777, 64
      %v3842 = vpop.permute.xlu0 %3841
      %3843 = vrot.lane.b32.xlu0 %v3778, 64
      %v3844 = vpop.permute.xlu0 %3843
      %3845 = vrot.lane.b32.xlu0 %v3779, 64
      %v3846 = vpop.permute.xlu0 %3845
      %3847 = vrot.lane.b32.xlu0 %v3780, 64
      %v3848 = vpop.permute.xlu0 %3847
      %3849 = vrot.lane.b32.xlu0 %v3781, 64
      %v3850 = vpop.permute.xlu0 %3849
      %3851 = vrot.lane.b32.xlu0 %v3782, 64
      %v3852 = vpop.permute.xlu0 %3851
      %3853 = vrot.lane.b32.xlu0 %v3783, 64
      %v3854 = vpop.permute.xlu0 %3853
      %3855 = vrot.lane.b32.xlu0 %v3784, 64
      %v3856 = vpop.permute.xlu0 %3855
      %3857 = vrot.lane.b32.xlu0 %v3785, 64
      %v3858 = vpop.permute.xlu0 %3857
      %3859 = vrot.lane.b32.xlu0 %v3786, 64
      %v3860 = vpop.permute.xlu0 %3859
      %3861 = vrot.lane.b32.xlu0 %v3787, 64
      %v3862 = vpop.permute.xlu0 %3861
      %3863 = vrot.lane.b32.xlu0 %v3788, 64
      %v3864 = vpop.permute.xlu0 %3863
      %3865 = vrot.lane.b32.xlu0 %v3789, 64
      %v3866 = vpop.permute.xlu0 %3865
      %3867 = vrot.lane.b32.xlu0 %v3790, 64
      %v3868 = vpop.permute.xlu0 %3867
      %3869 = vrot.lane.b32.xlu0 %v3791, 64
      %v3870 = vpop.permute.xlu0 %3869
      %3871 = vrot.lane.b32.xlu0 %v3792, 64
      %v3872 = vpop.permute.xlu0 %3871
      %3873 = vrot.lane.b32.xlu0 %v3793, 64
      %v3874 = vpop.permute.xlu0 %3873
      %3875 = vrot.lane.b32.xlu0 %v3794, 64
      %v3876 = vpop.permute.xlu0 %3875
      %3877 = vrot.lane.b32.xlu0 %v3795, 64
      %v3878 = vpop.permute.xlu0 %3877
      %3879 = vrot.lane.b32.xlu0 %v3796, 64
      %v3880 = vpop.permute.xlu0 %3879
      %3881 = vrot.lane.b32.xlu0 %v3797, 64
      %v3882 = vpop.permute.xlu0 %3881
      %3883 = vrot.lane.b32.xlu0 %v3798, 64
      %v3884 = vpop.permute.xlu0 %3883
      %3885 = vrot.lane.b32.xlu0 %v3799, 64
      %v3886 = vpop.permute.xlu0 %3885
      %3887 = vrot.lane.b32.xlu0 %v3800, 64
      %v3888 = vpop.permute.xlu0 %3887
      %3889 = vrot.lane.b32.xlu0 %v3801, 64
      %v3890 = vpop.permute.xlu0 %3889
      %3891 = vrot.lane.b32.xlu0 %v3802, 64
      %v3892 = vpop.permute.xlu0 %3891
      %3893 = vrot.lane.b32.xlu0 %v3803, 64
      %v3894 = vpop.permute.xlu0 %3893
      %3895 = vrot.lane.b32.xlu0 %v3804, 64
      %v3896 = vpop.permute.xlu0 %3895
      %3897 = vrot.lane.b32.xlu0 %v3805, 64
      %v3898 = vpop.permute.xlu0 %3897
      %3899 = vrot.lane.b32.xlu0 %v3806, 64
      %v3900 = vpop.permute.xlu0 %3899
      %3901 = vrot.lane.b32.xlu0 %v3807, 64
      %v3902 = vpop.permute.xlu0 %3901
      %3903 = vrot.lane.b32.xlu0 %v3808, 64
      %v3904 = vpop.permute.xlu0 %3903
      %3937 = vst.msk [vmem:[#allocation4 + $0x4] sm:$0xf] %vm637, %v3842
      %3938 = vst.msk [vmem:[#allocation4 + $0x18] sm:$0xf] %vm637, %v3844
      %3939 = vst.msk [vmem:[#allocation4 + $0x2c] sm:$0xf] %vm637, %v3846
      %3940 = vst.msk [vmem:[#allocation4 + $0x40] sm:$0xf] %vm637, %v3848
      %3941 = vst.msk [vmem:[#allocation4 + $0x54] sm:$0xf] %vm637, %v3850
      %3942 = vst.msk [vmem:[#allocation4 + $0x68] sm:$0xf] %vm637, %v3852
      %3943 = vst.msk [vmem:[#allocation4 + $0x7c] sm:$0xf] %vm637, %v3854
      %3944 = vst.msk [vmem:[#allocation4 + $0x90] sm:$0xf] %vm637, %v3856
      %3945 = vst.msk [vmem:[#allocation4 + $0xa4] sm:$0xf] %vm637, %v3858
      %3946 = vst.msk [vmem:[#allocation4 + $0xb8] sm:$0xf] %vm637, %v3860
      %3947 = vst.msk [vmem:[#allocation4 + $0xcc] sm:$0xf] %vm637, %v3862
      %3948 = vst.msk [vmem:[#allocation4 + $0xe0] sm:$0xf] %vm637, %v3864
      %3949 = vst.msk [vmem:[#allocation4 + $0xf4] sm:$0xf] %vm637, %v3866
      %3950 = vst.msk [vmem:[#allocation4 + $0x108] sm:$0xf] %vm637, %v3868
      %3951 = vst.msk [vmem:[#allocation4 + $0x11c] sm:$0xf] %vm637, %v3870
      %3952 = vst.msk [vmem:[#allocation4 + $0x130] sm:$0xf] %vm637, %v3872
      %3953 = vst.msk [vmem:[#allocation4 + $0x144] sm:$0xf] %vm637, %v3874
      %3954 = vst.msk [vmem:[#allocation4 + $0x158] sm:$0xf] %vm637, %v3876
      %3955 = vst.msk [vmem:[#allocation4 + $0x16c] sm:$0xf] %vm637, %v3878
      %3956 = vst.msk [vmem:[#allocation4 + $0x180] sm:$0xf] %vm637, %v3880
      %3957 = vst.msk [vmem:[#allocation4 + $0x194] sm:$0xf] %vm637, %v3882
      %3958 = vst.msk [vmem:[#allocation4 + $0x1a8] sm:$0xf] %vm637, %v3884
      %3959 = vst.msk [vmem:[#allocation4 + $0x1bc] sm:$0xf] %vm637, %v3886
      %3960 = vst.msk [vmem:[#allocation4 + $0x1d0] sm:$0xf] %vm637, %v3888
      %3961 = vst.msk [vmem:[#allocation4 + $0x1e4] sm:$0xf] %vm637, %v3890
      %3962 = vst.msk [vmem:[#allocation4 + $0x1f8] sm:$0xf] %vm637, %v3892
      %3963 = vst.msk [vmem:[#allocation4 + $0x20c] sm:$0xf] %vm637, %v3894
      %3964 = vst.msk [vmem:[#allocation4 + $0x220] sm:$0xf] %vm637, %v3896
      %3965 = vst.msk [vmem:[#allocation4 + $0x234] sm:$0xf] %vm637, %v3898
      %3966 = vst.msk [vmem:[#allocation4 + $0x248] sm:$0xf] %vm637, %v3900
      %3967 = vst.msk [vmem:[#allocation4 + $0x25c] sm:$0xf] %vm637, %v3902
      %3968 = vst.msk [vmem:[#allocation4 + $0x270] sm:$0xf] %vm637, %v3904
      %v3969 = vld [vmem:[%s2768] sm:$0xf]
      %v3970 = vld [vmem:[%s2768 + $0x4] sm:$0xf]
      %v3971 = vld [vmem:[%s2768 + $0x8] sm:$0x1]
      %v3972 = vld [vmem:[%s2768 + $0xc] sm:$0xf]
      %v3973 = vld [vmem:[%s2768 + $0x10] sm:$0xf]
      %v3974 = vld [vmem:[%s2768 + $0x14] sm:$0x1]
      %v3975 = vld [vmem:[%s2768 + $0x18] sm:$0xf]
      %v3976 = vld [vmem:[%s2768 + $0x1c] sm:$0xf]
      %v3977 = vld [vmem:[%s2768 + $0x20] sm:$0x1]
      %v3978 = vld [vmem:[%s2768 + $0x24] sm:$0xf]
      %v3979 = vld [vmem:[%s2768 + $0x28] sm:$0xf]
      %v3980 = vld [vmem:[%s2768 + $0x2c] sm:$0x1]
      %v3981 = vld [vmem:[%s2768 + $0x30] sm:$0xf]
      %v3982 = vld [vmem:[%s2768 + $0x34] sm:$0xf]
      %v3983 = vld [vmem:[%s2768 + $0x38] sm:$0x1]
      %v3984 = vld [vmem:[%s2768 + $0x3c] sm:$0xf]
      %v3985 = vld [vmem:[%s2768 + $0x40] sm:$0xf]
      %v3986 = vld [vmem:[%s2768 + $0x44] sm:$0x1]
      %v3987 = vld [vmem:[%s2768 + $0x48] sm:$0xf]
      %v3988 = vld [vmem:[%s2768 + $0x4c] sm:$0xf]
      %v3989 = vld [vmem:[%s2768 + $0x50] sm:$0x1]
      %v3990 = vld [vmem:[%s2768 + $0x54] sm:$0xf]
      %v3991 = vld [vmem:[%s2768 + $0x58] sm:$0xf]
      %v3992 = vld [vmem:[%s2768 + $0x5c] sm:$0x1]
      %v3993 = vld [vmem:[%s2768 + $0x60] sm:$0xf]
      %v3994 = vld [vmem:[%s2768 + $0x64] sm:$0xf]
      %v3995 = vld [vmem:[%s2768 + $0x68] sm:$0x1]
      %v3996 = vld [vmem:[%s2768 + $0x6c] sm:$0xf]
      %v3997 = vld [vmem:[%s2768 + $0x70] sm:$0xf]
      %v3998 = vld [vmem:[%s2768 + $0x74] sm:$0x1]
      %v3999 = vld [vmem:[%s2768 + $0x78] sm:$0xf]
      %v4000 = vld [vmem:[%s2768 + $0x7c] sm:$0xf]
      %v4001 = vld [vmem:[%s2768 + $0x80] sm:$0x1]
      %v4002 = vld [vmem:[%s2768 + $0x84] sm:$0xf]
      %v4003 = vld [vmem:[%s2768 + $0x88] sm:$0xf]
      %v4004 = vld [vmem:[%s2768 + $0x8c] sm:$0x1]
      %v4005 = vld [vmem:[%s2768 + $0x90] sm:$0xf]
      %v4006 = vld [vmem:[%s2768 + $0x94] sm:$0xf]
      %v4007 = vld [vmem:[%s2768 + $0x98] sm:$0x1]
      %v4008 = vld [vmem:[%s2768 + $0x9c] sm:$0xf]
      %v4009 = vld [vmem:[%s2768 + $0xa0] sm:$0xf]
      %v4010 = vld [vmem:[%s2768 + $0xa4] sm:$0x1]
      %v4011 = vld [vmem:[%s2768 + $0xa8] sm:$0xf]
      %v4012 = vld [vmem:[%s2768 + $0xac] sm:$0xf]
      %v4013 = vld [vmem:[%s2768 + $0xb0] sm:$0x1]
      %v4014 = vld [vmem:[%s2768 + $0xb4] sm:$0xf]
      %v4015 = vld [vmem:[%s2768 + $0xb8] sm:$0xf]
      %v4016 = vld [vmem:[%s2768 + $0xbc] sm:$0x1]
      %v4018 = vshrl.u32 %v3969, 16
      %v4020 = vrot.slane %v4018, 4
      %v4021 = vshll.u32 %v3969, 16
      %v4023 = vrot.slane %v4021, 5
      %v4024 = vor.u32 %v4020, %v4023
      %v4025 = vrot.slane %v4024, 4
      %v4027 = vshll.u32 %v3970, 16
      %v4029 = vrot.slane %v4027, 5
      %v4030 = vsel %vm500, %v4025, %v4029
      %v4031 = vshrl.u32 %v3970, 16
      %v4033 = vrot.slane %v4031, 4
      %v4034 = vor.u32 %v4033, %v4029
      %v4035 = vrot.slane %v4034, 4
      %v4037 = vshll.u32 %v3971, 16
      %v4039 = vrot.slane %v4037, 5
      %v4040 = vsel %vm500, %v4035, %v4039
      %v4042 = vshrl.u32 %v3972, 16
      %v4044 = vrot.slane %v4042, 4
      %v4045 = vshll.u32 %v3972, 16
      %v4047 = vrot.slane %v4045, 5
      %v4048 = vor.u32 %v4044, %v4047
      %v4049 = vrot.slane %v4048, 4
      %v4051 = vshll.u32 %v3973, 16
      %v4053 = vrot.slane %v4051, 5
      %v4054 = vsel %vm500, %v4049, %v4053
      %v4055 = vshrl.u32 %v3973, 16
      %v4057 = vrot.slane %v4055, 4
      %v4058 = vor.u32 %v4057, %v4053
      %v4059 = vrot.slane %v4058, 4
      %v4061 = vshll.u32 %v3974, 16
      %v4063 = vrot.slane %v4061, 5
      %v4064 = vsel %vm500, %v4059, %v4063
      %v4066 = vshrl.u32 %v3975, 16
      %v4068 = vrot.slane %v4066, 4
      %v4069 = vshll.u32 %v3975, 16
      %v4071 = vrot.slane %v4069, 5
      %v4072 = vor.u32 %v4068, %v4071
      %v4073 = vrot.slane %v4072, 4
      %v4075 = vshll.u32 %v3976, 16
      %v4077 = vrot.slane %v4075, 5
      %v4078 = vsel %vm500, %v4073, %v4077
      %v4079 = vshrl.u32 %v3976, 16
      %v4081 = vrot.slane %v4079, 4
      %v4082 = vor.u32 %v4081, %v4077
      %v4083 = vrot.slane %v4082, 4
      %v4085 = vshll.u32 %v3977, 16
      %v4087 = vrot.slane %v4085, 5
      %v4088 = vsel %vm500, %v4083, %v4087
      %v4090 = vshrl.u32 %v3978, 16
      %v4092 = vrot.slane %v4090, 4
      %v4093 = vshll.u32 %v3978, 16
      %v4095 = vrot.slane %v4093, 5
      %v4096 = vor.u32 %v4092, %v4095
      %v4097 = vrot.slane %v4096, 4
      %v4099 = vshll.u32 %v3979, 16
      %v4101 = vrot.slane %v4099, 5
      %v4102 = vsel %vm500, %v4097, %v4101
      %v4103 = vshrl.u32 %v3979, 16
      %v4105 = vrot.slane %v4103, 4
      %v4106 = vor.u32 %v4105, %v4101
      %v4107 = vrot.slane %v4106, 4
      %v4109 = vshll.u32 %v3980, 16
      %v4111 = vrot.slane %v4109, 5
      %v4112 = vsel %vm500, %v4107, %v4111
      %v4114 = vshrl.u32 %v3981, 16
      %v4116 = vrot.slane %v4114, 4
      %v4117 = vshll.u32 %v3981, 16
      %v4119 = vrot.slane %v4117, 5
      %v4120 = vor.u32 %v4116, %v4119
      %v4121 = vrot.slane %v4120, 4
      %v4123 = vshll.u32 %v3982, 16
      %v4125 = vrot.slane %v4123, 5
      %v4126 = vsel %vm500, %v4121, %v4125
      %v4127 = vshrl.u32 %v3982, 16
      %v4129 = vrot.slane %v4127, 4
      %v4130 = vor.u32 %v4129, %v4125
      %v4131 = vrot.slane %v4130, 4
      %v4133 = vshll.u32 %v3983, 16
      %v4135 = vrot.slane %v4133, 5
      %v4136 = vsel %vm500, %v4131, %v4135
      %v4138 = vshrl.u32 %v3984, 16
      %v4140 = vrot.slane %v4138, 4
      %v4141 = vshll.u32 %v3984, 16
      %v4143 = vrot.slane %v4141, 5
      %v4144 = vor.u32 %v4140, %v4143
      %v4145 = vrot.slane %v4144, 4
      %v4147 = vshll.u32 %v3985, 16
      %v4149 = vrot.slane %v4147, 5
      %v4150 = vsel %vm500, %v4145, %v4149
      %v4151 = vshrl.u32 %v3985, 16
      %v4153 = vrot.slane %v4151, 4
      %v4154 = vor.u32 %v4153, %v4149
      %v4155 = vrot.slane %v4154, 4
      %v4157 = vshll.u32 %v3986, 16
      %v4159 = vrot.slane %v4157, 5
      %v4160 = vsel %vm500, %v4155, %v4159
      %v4162 = vshrl.u32 %v3987, 16
      %v4164 = vrot.slane %v4162, 4
      %v4165 = vshll.u32 %v3987, 16
      %v4167 = vrot.slane %v4165, 5
      %v4168 = vor.u32 %v4164, %v4167
      %v4169 = vrot.slane %v4168, 4
      %v4171 = vshll.u32 %v3988, 16
      %v4173 = vrot.slane %v4171, 5
      %v4174 = vsel %vm500, %v4169, %v4173
      %v4175 = vshrl.u32 %v3988, 16
      %v4177 = vrot.slane %v4175, 4
      %v4178 = vor.u32 %v4177, %v4173
      %v4179 = vrot.slane %v4178, 4
      %v4181 = vshll.u32 %v3989, 16
      %v4183 = vrot.slane %v4181, 5
      %v4184 = vsel %vm500, %v4179, %v4183
      %v4186 = vshrl.u32 %v3990, 16
      %v4188 = vrot.slane %v4186, 4
      %v4189 = vshll.u32 %v3990, 16
      %v4191 = vrot.slane %v4189, 5
      %v4192 = vor.u32 %v4188, %v4191
      %v4193 = vrot.slane %v4192, 4
      %v4195 = vshll.u32 %v3991, 16
      %v4197 = vrot.slane %v4195, 5
      %v4198 = vsel %vm500, %v4193, %v4197
      %v4199 = vshrl.u32 %v3991, 16
      %v4201 = vrot.slane %v4199, 4
      %v4202 = vor.u32 %v4201, %v4197
      %v4203 = vrot.slane %v4202, 4
      %v4205 = vshll.u32 %v3992, 16
      %v4207 = vrot.slane %v4205, 5
      %v4208 = vsel %vm500, %v4203, %v4207
      %v4210 = vshrl.u32 %v3993, 16
      %v4212 = vrot.slane %v4210, 4
      %v4213 = vshll.u32 %v3993, 16
      %v4215 = vrot.slane %v4213, 5
      %v4216 = vor.u32 %v4212, %v4215
      %v4217 = vrot.slane %v4216, 4
      %v4219 = vshll.u32 %v3994, 16
      %v4221 = vrot.slane %v4219, 5
      %v4222 = vsel %vm500, %v4217, %v4221
      %v4223 = vshrl.u32 %v3994, 16
      %v4225 = vrot.slane %v4223, 4
      %v4226 = vor.u32 %v4225, %v4221
      %v4227 = vrot.slane %v4226, 4
      %v4229 = vshll.u32 %v3995, 16
      %v4231 = vrot.slane %v4229, 5
      %v4232 = vsel %vm500, %v4227, %v4231
      %v4234 = vshrl.u32 %v3996, 16
      %v4236 = vrot.slane %v4234, 4
      %v4237 = vshll.u32 %v3996, 16
      %v4239 = vrot.slane %v4237, 5
      %v4240 = vor.u32 %v4236, %v4239
      %v4241 = vrot.slane %v4240, 4
      %v4243 = vshll.u32 %v3997, 16
      %v4245 = vrot.slane %v4243, 5
      %v4246 = vsel %vm500, %v4241, %v4245
      %v4247 = vshrl.u32 %v3997, 16
      %v4249 = vrot.slane %v4247, 4
      %v4250 = vor.u32 %v4249, %v4245
      %v4251 = vrot.slane %v4250, 4
      %v4253 = vshll.u32 %v3998, 16
      %v4255 = vrot.slane %v4253, 5
      %v4256 = vsel %vm500, %v4251, %v4255
      %v4258 = vshrl.u32 %v3999, 16
      %v4260 = vrot.slane %v4258, 4
      %v4261 = vshll.u32 %v3999, 16
      %v4263 = vrot.slane %v4261, 5
      %v4264 = vor.u32 %v4260, %v4263
      %v4265 = vrot.slane %v4264, 4
      %v4267 = vshll.u32 %v4000, 16
      %v4269 = vrot.slane %v4267, 5
      %v4270 = vsel %vm500, %v4265, %v4269
      %v4271 = vshrl.u32 %v4000, 16
      %v4273 = vrot.slane %v4271, 4
      %v4274 = vor.u32 %v4273, %v4269
      %v4275 = vrot.slane %v4274, 4
      %v4277 = vshll.u32 %v4001, 16
      %v4279 = vrot.slane %v4277, 5
      %v4280 = vsel %vm500, %v4275, %v4279
      %v4282 = vshrl.u32 %v4002, 16
      %v4284 = vrot.slane %v4282, 4
      %v4285 = vshll.u32 %v4002, 16
      %v4287 = vrot.slane %v4285, 5
      %v4288 = vor.u32 %v4284, %v4287
      %v4289 = vrot.slane %v4288, 4
      %v4291 = vshll.u32 %v4003, 16
      %v4293 = vrot.slane %v4291, 5
      %v4294 = vsel %vm500, %v4289, %v4293
      %v4295 = vshrl.u32 %v4003, 16
      %v4297 = vrot.slane %v4295, 4
      %v4298 = vor.u32 %v4297, %v4293
      %v4299 = vrot.slane %v4298, 4
      %v4301 = vshll.u32 %v4004, 16
      %v4303 = vrot.slane %v4301, 5
      %v4304 = vsel %vm500, %v4299, %v4303
      %v4306 = vshrl.u32 %v4005, 16
      %v4308 = vrot.slane %v4306, 4
      %v4309 = vshll.u32 %v4005, 16
      %v4311 = vrot.slane %v4309, 5
      %v4312 = vor.u32 %v4308, %v4311
      %v4313 = vrot.slane %v4312, 4
      %v4315 = vshll.u32 %v4006, 16
      %v4317 = vrot.slane %v4315, 5
      %v4318 = vsel %vm500, %v4313, %v4317
      %v4319 = vshrl.u32 %v4006, 16
      %v4321 = vrot.slane %v4319, 4
      %v4322 = vor.u32 %v4321, %v4317
      %v4323 = vrot.slane %v4322, 4
      %v4325 = vshll.u32 %v4007, 16
      %v4327 = vrot.slane %v4325, 5
      %v4328 = vsel %vm500, %v4323, %v4327
      %v4330 = vshrl.u32 %v4008, 16
      %v4332 = vrot.slane %v4330, 4
      %v4333 = vshll.u32 %v4008, 16
      %v4335 = vrot.slane %v4333, 5
      %v4336 = vor.u32 %v4332, %v4335
      %v4337 = vrot.slane %v4336, 4
      %v4339 = vshll.u32 %v4009, 16
      %v4341 = vrot.slane %v4339, 5
      %v4342 = vsel %vm500, %v4337, %v4341
      %v4343 = vshrl.u32 %v4009, 16
      %v4345 = vrot.slane %v4343, 4
      %v4346 = vor.u32 %v4345, %v4341
      %v4347 = vrot.slane %v4346, 4
      %v4349 = vshll.u32 %v4010, 16
      %v4351 = vrot.slane %v4349, 5
      %v4352 = vsel %vm500, %v4347, %v4351
      %v4354 = vshrl.u32 %v4011, 16
      %v4356 = vrot.slane %v4354, 4
      %v4357 = vshll.u32 %v4011, 16
      %v4359 = vrot.slane %v4357, 5
      %v4360 = vor.u32 %v4356, %v4359
      %v4361 = vrot.slane %v4360, 4
      %v4363 = vshll.u32 %v4012, 16
      %v4365 = vrot.slane %v4363, 5
      %v4366 = vsel %vm500, %v4361, %v4365
      %v4367 = vshrl.u32 %v4012, 16
      %v4369 = vrot.slane %v4367, 4
      %v4370 = vor.u32 %v4369, %v4365
      %v4371 = vrot.slane %v4370, 4
      %v4373 = vshll.u32 %v4013, 16
      %v4375 = vrot.slane %v4373, 5
      %v4376 = vsel %vm500, %v4371, %v4375
      %v4378 = vshrl.u32 %v4014, 16
      %v4380 = vrot.slane %v4378, 4
      %v4381 = vshll.u32 %v4014, 16
      %v4383 = vrot.slane %v4381, 5
      %v4384 = vor.u32 %v4380, %v4383
      %v4385 = vrot.slane %v4384, 4
      %v4387 = vshll.u32 %v4015, 16
      %v4389 = vrot.slane %v4387, 5
      %v4390 = vsel %vm500, %v4385, %v4389
      %v4391 = vshrl.u32 %v4015, 16
      %v4393 = vrot.slane %v4391, 4
      %v4394 = vor.u32 %v4393, %v4389
      %v4395 = vrot.slane %v4394, 4
      %v4397 = vshll.u32 %v4016, 16
      %v4399 = vrot.slane %v4397, 5
      %v4400 = vsel %vm500, %v4395, %v4399
      %4433 = vst.msk [vmem:[#allocation4 + $0x8] sm:$0xf] %vm301, %v4030
      %4434 = vst.msk [vmem:[#allocation4 + $0x1c] sm:$0xf] %vm301, %v4040
      %4435 = vst.msk [vmem:[#allocation4 + $0x30] sm:$0xf] %vm301, %v4054
      %4436 = vst.msk [vmem:[#allocation4 + $0x44] sm:$0xf] %vm301, %v4064
      %4437 = vst.msk [vmem:[#allocation4 + $0x58] sm:$0xf] %vm301, %v4078
      %4438 = vst.msk [vmem:[#allocation4 + $0x6c] sm:$0xf] %vm301, %v4088
      %4439 = vst.msk [vmem:[#allocation4 + $0x80] sm:$0xf] %vm301, %v4102
      %4440 = vst.msk [vmem:[#allocation4 + $0x94] sm:$0xf] %vm301, %v4112
      %4441 = vst.msk [vmem:[#allocation4 + $0xa8] sm:$0xf] %vm301, %v4126
      %4442 = vst.msk [vmem:[#allocation4 + $0xbc] sm:$0xf] %vm301, %v4136
      %4443 = vst.msk [vmem:[#allocation4 + $0xd0] sm:$0xf] %vm301, %v4150
      %4444 = vst.msk [vmem:[#allocation4 + $0xe4] sm:$0xf] %vm301, %v4160
      %4445 = vst.msk [vmem:[#allocation4 + $0xf8] sm:$0xf] %vm301, %v4174
      %4446 = vst.msk [vmem:[#allocation4 + $0x10c] sm:$0xf] %vm301, %v4184
      %4447 = vst.msk [vmem:[#allocation4 + $0x120] sm:$0xf] %vm301, %v4198
      %4448 = vst.msk [vmem:[#allocation4 + $0x134] sm:$0xf] %vm301, %v4208
      %4449 = vst.msk [vmem:[#allocation4 + $0x148] sm:$0xf] %vm301, %v4222
      %4450 = vst.msk [vmem:[#allocation4 + $0x15c] sm:$0xf] %vm301, %v4232
      %4451 = vst.msk [vmem:[#allocation4 + $0x170] sm:$0xf] %vm301, %v4246
      %4452 = vst.msk [vmem:[#allocation4 + $0x184] sm:$0xf] %vm301, %v4256
      %4453 = vst.msk [vmem:[#allocation4 + $0x198] sm:$0xf] %vm301, %v4270
      %4454 = vst.msk [vmem:[#allocation4 + $0x1ac] sm:$0xf] %vm301, %v4280
      %4455 = vst.msk [vmem:[#allocation4 + $0x1c0] sm:$0xf] %vm301, %v4294
      %4456 = vst.msk [vmem:[#allocation4 + $0x1d4] sm:$0xf] %vm301, %v4304
      %4457 = vst.msk [vmem:[#allocation4 + $0x1e8] sm:$0xf] %vm301, %v4318
      %4458 = vst.msk [vmem:[#allocation4 + $0x1fc] sm:$0xf] %vm301, %v4328
      %4459 = vst.msk [vmem:[#allocation4 + $0x210] sm:$0xf] %vm301, %v4342
      %4460 = vst.msk [vmem:[#allocation4 + $0x224] sm:$0xf] %vm301, %v4352
      %4461 = vst.msk [vmem:[#allocation4 + $0x238] sm:$0xf] %vm301, %v4366
      %4462 = vst.msk [vmem:[#allocation4 + $0x24c] sm:$0xf] %vm301, %v4376
      %4463 = vst.msk [vmem:[#allocation4 + $0x260] sm:$0xf] %vm301, %v4390
      %4464 = vst.msk [vmem:[#allocation4 + $0x274] sm:$0xf] %vm301, %v4400
      %v4465 = vld [vmem:[%s2768] sm:$0xe]
      %v4466 = vld [vmem:[%s2768 + $0x4] sm:$0xf]
      %v4467 = vld [vmem:[%s2768 + $0x8] sm:$0x1]
      %v4468 = vld [vmem:[%s2768 + $0xc] sm:$0xe]
      %v4469 = vld [vmem:[%s2768 + $0x10] sm:$0xf]
      %v4470 = vld [vmem:[%s2768 + $0x14] sm:$0x1]
      %v4471 = vld [vmem:[%s2768 + $0x18] sm:$0xe]
      %v4472 = vld [vmem:[%s2768 + $0x1c] sm:$0xf]
      %v4473 = vld [vmem:[%s2768 + $0x20] sm:$0x1]
      %v4474 = vld [vmem:[%s2768 + $0x24] sm:$0xe]
      %v4475 = vld [vmem:[%s2768 + $0x28] sm:$0xf]
      %v4476 = vld [vmem:[%s2768 + $0x2c] sm:$0x1]
      %v4477 = vld [vmem:[%s2768 + $0x30] sm:$0xe]
      %v4478 = vld [vmem:[%s2768 + $0x34] sm:$0xf]
      %v4479 = vld [vmem:[%s2768 + $0x38] sm:$0x1]
      %v4480 = vld [vmem:[%s2768 + $0x3c] sm:$0xe]
      %v4481 = vld [vmem:[%s2768 + $0x40] sm:$0xf]
      %v4482 = vld [vmem:[%s2768 + $0x44] sm:$0x1]
      %v4483 = vld [vmem:[%s2768 + $0x48] sm:$0xe]
      %v4484 = vld [vmem:[%s2768 + $0x4c] sm:$0xf]
      %v4485 = vld [vmem:[%s2768 + $0x50] sm:$0x1]
      %v4486 = vld [vmem:[%s2768 + $0x54] sm:$0xe]
      %v4487 = vld [vmem:[%s2768 + $0x58] sm:$0xf]
      %v4488 = vld [vmem:[%s2768 + $0x5c] sm:$0x1]
      %v4489 = vld [vmem:[%s2768 + $0x60] sm:$0xe]
      %v4490 = vld [vmem:[%s2768 + $0x64] sm:$0xf]
      %v4491 = vld [vmem:[%s2768 + $0x68] sm:$0x1]
      %v4492 = vld [vmem:[%s2768 + $0x6c] sm:$0xe]
      %v4493 = vld [vmem:[%s2768 + $0x70] sm:$0xf]
      %v4494 = vld [vmem:[%s2768 + $0x74] sm:$0x1]
      %v4495 = vld [vmem:[%s2768 + $0x78] sm:$0xe]
      %v4496 = vld [vmem:[%s2768 + $0x7c] sm:$0xf]
      %v4497 = vld [vmem:[%s2768 + $0x80] sm:$0x1]
      %v4498 = vld [vmem:[%s2768 + $0x84] sm:$0xe]
      %v4499 = vld [vmem:[%s2768 + $0x88] sm:$0xf]
      %v4500 = vld [vmem:[%s2768 + $0x8c] sm:$0x1]
      %v4501 = vld [vmem:[%s2768 + $0x90] sm:$0xe]
      %v4502 = vld [vmem:[%s2768 + $0x94] sm:$0xf]
      %v4503 = vld [vmem:[%s2768 + $0x98] sm:$0x1]
      %v4504 = vld [vmem:[%s2768 + $0x9c] sm:$0xe]
      %v4505 = vld [vmem:[%s2768 + $0xa0] sm:$0xf]
      %v4506 = vld [vmem:[%s2768 + $0xa4] sm:$0x1]
      %v4507 = vld [vmem:[%s2768 + $0xa8] sm:$0xe]
      %v4508 = vld [vmem:[%s2768 + $0xac] sm:$0xf]
      %v4509 = vld [vmem:[%s2768 + $0xb0] sm:$0x1]
      %v4510 = vld [vmem:[%s2768 + $0xb4] sm:$0xe]
      %v4511 = vld [vmem:[%s2768 + $0xb8] sm:$0xf]
      %v4512 = vld [vmem:[%s2768 + $0xbc] sm:$0x1]
      %v4561 = vrot.slane %v4465, 5
      %v4562 = vrot.slane %v4561, 4
      %v4563 = vrot.slane %v4466, 5
      %v4564 = vsel %vm680, %v4562, %v4563
      %v4565 = vrot.slane %v4563, 4
      %v4566 = vrot.slane %v4467, 5
      %v4567 = vsel %vm680, %v4565, %v4566
      %v4568 = vrot.slane %v4468, 5
      %v4569 = vrot.slane %v4568, 4
      %v4570 = vrot.slane %v4469, 5
      %v4571 = vsel %vm680, %v4569, %v4570
      %v4572 = vrot.slane %v4570, 4
      %v4573 = vrot.slane %v4470, 5
      %v4574 = vsel %vm680, %v4572, %v4573
      %v4575 = vrot.slane %v4471, 5
      %v4576 = vrot.slane %v4575, 4
      %v4577 = vrot.slane %v4472, 5
      %v4578 = vsel %vm680, %v4576, %v4577
      %v4579 = vrot.slane %v4577, 4
      %v4580 = vrot.slane %v4473, 5
      %v4581 = vsel %vm680, %v4579, %v4580
      %v4582 = vrot.slane %v4474, 5
      %v4583 = vrot.slane %v4582, 4
      %v4584 = vrot.slane %v4475, 5
      %v4585 = vsel %vm680, %v4583, %v4584
      %v4586 = vrot.slane %v4584, 4
      %v4587 = vrot.slane %v4476, 5
      %v4588 = vsel %vm680, %v4586, %v4587
      %v4589 = vrot.slane %v4477, 5
      %v4590 = vrot.slane %v4589, 4
      %v4591 = vrot.slane %v4478, 5
      %v4592 = vsel %vm680, %v4590, %v4591
      %v4593 = vrot.slane %v4591, 4
      %v4594 = vrot.slane %v4479, 5
      %v4595 = vsel %vm680, %v4593, %v4594
      %v4596 = vrot.slane %v4480, 5
      %v4597 = vrot.slane %v4596, 4
      %v4598 = vrot.slane %v4481, 5
      %v4599 = vsel %vm680, %v4597, %v4598
      %v4600 = vrot.slane %v4598, 4
      %v4601 = vrot.slane %v4482, 5
      %v4602 = vsel %vm680, %v4600, %v4601
      %v4603 = vrot.slane %v4483, 5
      %v4604 = vrot.slane %v4603, 4
      %v4605 = vrot.slane %v4484, 5
      %v4606 = vsel %vm680, %v4604, %v4605
      %v4607 = vrot.slane %v4605, 4
      %v4608 = vrot.slane %v4485, 5
      %v4609 = vsel %vm680, %v4607, %v4608
      %v4610 = vrot.slane %v4486, 5
      %v4611 = vrot.slane %v4610, 4
      %v4612 = vrot.slane %v4487, 5
      %v4613 = vsel %vm680, %v4611, %v4612
      %v4614 = vrot.slane %v4612, 4
      %v4615 = vrot.slane %v4488, 5
      %v4616 = vsel %vm680, %v4614, %v4615
      %v4617 = vrot.slane %v4489, 5
      %v4618 = vrot.slane %v4617, 4
      %v4619 = vrot.slane %v4490, 5
      %v4620 = vsel %vm680, %v4618, %v4619
      %v4621 = vrot.slane %v4619, 4
      %v4622 = vrot.slane %v4491, 5
      %v4623 = vsel %vm680, %v4621, %v4622
      %v4624 = vrot.slane %v4492, 5
      %v4625 = vrot.slane %v4624, 4
      %v4626 = vrot.slane %v4493, 5
      %v4627 = vsel %vm680, %v4625, %v4626
      %v4628 = vrot.slane %v4626, 4
      %v4629 = vrot.slane %v4494, 5
      %v4630 = vsel %vm680, %v4628, %v4629
      %v4631 = vrot.slane %v4495, 5
      %v4632 = vrot.slane %v4631, 4
      %v4633 = vrot.slane %v4496, 5
      %v4634 = vsel %vm680, %v4632, %v4633
      %v4635 = vrot.slane %v4633, 4
      %v4636 = vrot.slane %v4497, 5
      %v4637 = vsel %vm680, %v4635, %v4636
      %v4638 = vrot.slane %v4498, 5
      %v4639 = vrot.slane %v4638, 4
      %v4640 = vrot.slane %v4499, 5
      %v4641 = vsel %vm680, %v4639, %v4640
      %v4642 = vrot.slane %v4640, 4
      %v4643 = vrot.slane %v4500, 5
      %v4644 = vsel %vm680, %v4642, %v4643
      %v4645 = vrot.slane %v4501, 5
      %v4646 = vrot.slane %v4645, 4
      %v4647 = vrot.slane %v4502, 5
      %v4648 = vsel %vm680, %v4646, %v4647
      %v4649 = vrot.slane %v4647, 4
      %v4650 = vrot.slane %v4503, 5
      %v4651 = vsel %vm680, %v4649, %v4650
      %v4652 = vrot.slane %v4504, 5
      %v4653 = vrot.slane %v4652, 4
      %v4654 = vrot.slane %v4505, 5
      %v4655 = vsel %vm680, %v4653, %v4654
      %v4656 = vrot.slane %v4654, 4
      %v4657 = vrot.slane %v4506, 5
      %v4658 = vsel %vm680, %v4656, %v4657
      %v4659 = vrot.slane %v4507, 5
      %v4660 = vrot.slane %v4659, 4
      %v4661 = vrot.slane %v4508, 5
      %v4662 = vsel %vm680, %v4660, %v4661
      %v4663 = vrot.slane %v4661, 4
      %v4664 = vrot.slane %v4509, 5
      %v4665 = vsel %vm680, %v4663, %v4664
      %v4666 = vrot.slane %v4510, 5
      %v4667 = vrot.slane %v4666, 4
      %v4668 = vrot.slane %v4511, 5
      %v4669 = vsel %vm680, %v4667, %v4668
      %v4670 = vrot.slane %v4668, 4
      %v4671 = vrot.slane %v4512, 5
      %v4672 = vsel %vm680, %v4670, %v4671
      %4673 = vrot.lane.b32.xlu0 %v4564, 64
      %v4674 = vpop.permute.xlu0 %4673
      %4675 = vrot.lane.b32.xlu0 %v4567, 64
      %v4676 = vpop.permute.xlu0 %4675
      %4677 = vrot.lane.b32.xlu0 %v4571, 64
      %v4678 = vpop.permute.xlu0 %4677
      %4679 = vrot.lane.b32.xlu0 %v4574, 64
      %v4680 = vpop.permute.xlu0 %4679
      %4681 = vrot.lane.b32.xlu0 %v4578, 64
      %v4682 = vpop.permute.xlu0 %4681
      %4683 = vrot.lane.b32.xlu0 %v4581, 64
      %v4684 = vpop.permute.xlu0 %4683
      %4685 = vrot.lane.b32.xlu0 %v4585, 64
      %v4686 = vpop.permute.xlu0 %4685
      %4687 = vrot.lane.b32.xlu0 %v4588, 64
      %v4688 = vpop.permute.xlu0 %4687
      %4689 = vrot.lane.b32.xlu0 %v4592, 64
      %v4690 = vpop.permute.xlu0 %4689
      %4691 = vrot.lane.b32.xlu0 %v4595, 64
      %v4692 = vpop.permute.xlu0 %4691
      %4693 = vrot.lane.b32.xlu0 %v4599, 64
      %v4694 = vpop.permute.xlu0 %4693
      %4695 = vrot.lane.b32.xlu0 %v4602, 64
      %v4696 = vpop.permute.xlu0 %4695
      %4697 = vrot.lane.b32.xlu0 %v4606, 64
      %v4698 = vpop.permute.xlu0 %4697
      %4699 = vrot.lane.b32.xlu0 %v4609, 64
      %v4700 = vpop.permute.xlu0 %4699
      %4701 = vrot.lane.b32.xlu0 %v4613, 64
      %v4702 = vpop.permute.xlu0 %4701
      %4703 = vrot.lane.b32.xlu0 %v4616, 64
      %v4704 = vpop.permute.xlu0 %4703
      %4705 = vrot.lane.b32.xlu0 %v4620, 64
      %v4706 = vpop.permute.xlu0 %4705
      %4707 = vrot.lane.b32.xlu0 %v4623, 64
      %v4708 = vpop.permute.xlu0 %4707
      %4709 = vrot.lane.b32.xlu0 %v4627, 64
      %v4710 = vpop.permute.xlu0 %4709
      %4711 = vrot.lane.b32.xlu0 %v4630, 64
      %v4712 = vpop.permute.xlu0 %4711
      %4713 = vrot.lane.b32.xlu0 %v4634, 64
      %v4714 = vpop.permute.xlu0 %4713
      %4715 = vrot.lane.b32.xlu0 %v4637, 64
      %v4716 = vpop.permute.xlu0 %4715
      %4717 = vrot.lane.b32.xlu0 %v4641, 64
      %v4718 = vpop.permute.xlu0 %4717
      %4719 = vrot.lane.b32.xlu0 %v4644, 64
      %v4720 = vpop.permute.xlu0 %4719
      %4721 = vrot.lane.b32.xlu0 %v4648, 64
      %v4722 = vpop.permute.xlu0 %4721
      %4723 = vrot.lane.b32.xlu0 %v4651, 64
      %v4724 = vpop.permute.xlu0 %4723
      %4725 = vrot.lane.b32.xlu0 %v4655, 64
      %v4726 = vpop.permute.xlu0 %4725
      %4727 = vrot.lane.b32.xlu0 %v4658, 64
      %v4728 = vpop.permute.xlu0 %4727
      %4729 = vrot.lane.b32.xlu0 %v4662, 64
      %v4730 = vpop.permute.xlu0 %4729
      %4731 = vrot.lane.b32.xlu0 %v4665, 64
      %v4732 = vpop.permute.xlu0 %4731
      %4733 = vrot.lane.b32.xlu0 %v4669, 64
      %v4734 = vpop.permute.xlu0 %4733
      %4735 = vrot.lane.b32.xlu0 %v4672, 64
      %v4736 = vpop.permute.xlu0 %4735
      %4769 = vst.msk [vmem:[#allocation4 + $0x8] sm:$0xf] %vm637, %v4674
      %4770 = vst.msk [vmem:[#allocation4 + $0x1c] sm:$0xf] %vm637, %v4676
      %4771 = vst.msk [vmem:[#allocation4 + $0x30] sm:$0xf] %vm637, %v4678
      %4772 = vst.msk [vmem:[#allocation4 + $0x44] sm:$0xf] %vm637, %v4680
      %4773 = vst.msk [vmem:[#allocation4 + $0x58] sm:$0xf] %vm637, %v4682
      %4774 = vst.msk [vmem:[#allocation4 + $0x6c] sm:$0xf] %vm637, %v4684
      %4775 = vst.msk [vmem:[#allocation4 + $0x80] sm:$0xf] %vm637, %v4686
      %4776 = vst.msk [vmem:[#allocation4 + $0x94] sm:$0xf] %vm637, %v4688
      %4777 = vst.msk [vmem:[#allocation4 + $0xa8] sm:$0xf] %vm637, %v4690
      %4778 = vst.msk [vmem:[#allocation4 + $0xbc] sm:$0xf] %vm637, %v4692
      %4779 = vst.msk [vmem:[#allocation4 + $0xd0] sm:$0xf] %vm637, %v4694
      %4780 = vst.msk [vmem:[#allocation4 + $0xe4] sm:$0xf] %vm637, %v4696
      %4781 = vst.msk [vmem:[#allocation4 + $0xf8] sm:$0xf] %vm637, %v4698
      %4782 = vst.msk [vmem:[#allocation4 + $0x10c] sm:$0xf] %vm637, %v4700
      %4783 = vst.msk [vmem:[#allocation4 + $0x120] sm:$0xf] %vm637, %v4702
      %4784 = vst.msk [vmem:[#allocation4 + $0x134] sm:$0xf] %vm637, %v4704
      %4785 = vst.msk [vmem:[#allocation4 + $0x148] sm:$0xf] %vm637, %v4706
      %4786 = vst.msk [vmem:[#allocation4 + $0x15c] sm:$0xf] %vm637, %v4708
      %4787 = vst.msk [vmem:[#allocation4 + $0x170] sm:$0xf] %vm637, %v4710
      %4788 = vst.msk [vmem:[#allocation4 + $0x184] sm:$0xf] %vm637, %v4712
      %4789 = vst.msk [vmem:[#allocation4 + $0x198] sm:$0xf] %vm637, %v4714
      %4790 = vst.msk [vmem:[#allocation4 + $0x1ac] sm:$0xf] %vm637, %v4716
      %4791 = vst.msk [vmem:[#allocation4 + $0x1c0] sm:$0xf] %vm637, %v4718
      %4792 = vst.msk [vmem:[#allocation4 + $0x1d4] sm:$0xf] %vm637, %v4720
      %4793 = vst.msk [vmem:[#allocation4 + $0x1e8] sm:$0xf] %vm637, %v4722
      %4794 = vst.msk [vmem:[#allocation4 + $0x1fc] sm:$0xf] %vm637, %v4724
      %4795 = vst.msk [vmem:[#allocation4 + $0x210] sm:$0xf] %vm637, %v4726
      %4796 = vst.msk [vmem:[#allocation4 + $0x224] sm:$0xf] %vm637, %v4728
      %4797 = vst.msk [vmem:[#allocation4 + $0x238] sm:$0xf] %vm637, %v4730
      %4798 = vst.msk [vmem:[#allocation4 + $0x24c] sm:$0xf] %vm637, %v4732
      %4799 = vst.msk [vmem:[#allocation4 + $0x260] sm:$0xf] %vm637, %v4734
      %4800 = vst.msk [vmem:[#allocation4 + $0x274] sm:$0xf] %vm637, %v4736
      %s4801 = scalar_lea.vmem [#allocation2], 24
      %v4802 = vld [vmem:[%s4801] sm:$0xf]
      %v4803 = vld [vmem:[%s4801 + $0x4] sm:$0xf]
      %v4804 = vld [vmem:[%s4801 + $0xc] sm:$0xf]
      %v4805 = vld [vmem:[%s4801 + $0x10] sm:$0xf]
      %v4806 = vld [vmem:[%s4801 + $0x18] sm:$0xf]
      %v4807 = vld [vmem:[%s4801 + $0x1c] sm:$0xf]
      %v4808 = vld [vmem:[%s4801 + $0x24] sm:$0xf]
      %v4809 = vld [vmem:[%s4801 + $0x28] sm:$0xf]
      %v4810 = vld [vmem:[%s4801 + $0x30] sm:$0xf]
      %v4811 = vld [vmem:[%s4801 + $0x34] sm:$0xf]
      %v4812 = vld [vmem:[%s4801 + $0x3c] sm:$0xf]
      %v4813 = vld [vmem:[%s4801 + $0x40] sm:$0xf]
      %v4814 = vld [vmem:[%s4801 + $0x48] sm:$0xf]
      %v4815 = vld [vmem:[%s4801 + $0x4c] sm:$0xf]
      %v4816 = vld [vmem:[%s4801 + $0x54] sm:$0xf]
      %v4817 = vld [vmem:[%s4801 + $0x58] sm:$0xf]
      %v4818 = vld [vmem:[%s4801 + $0x60] sm:$0xf]
      %v4819 = vld [vmem:[%s4801 + $0x64] sm:$0xf]
      %v4820 = vld [vmem:[%s4801 + $0x6c] sm:$0xf]
      %v4821 = vld [vmem:[%s4801 + $0x70] sm:$0xf]
      %v4822 = vld [vmem:[%s4801 + $0x78] sm:$0xf]
      %v4823 = vld [vmem:[%s4801 + $0x7c] sm:$0xf]
      %v4824 = vld [vmem:[%s4801 + $0x84] sm:$0xf]
      %v4825 = vld [vmem:[%s4801 + $0x88] sm:$0xf]
      %v4826 = vld [vmem:[%s4801 + $0x90] sm:$0xf]
      %v4827 = vld [vmem:[%s4801 + $0x94] sm:$0xf]
      %v4828 = vld [vmem:[%s4801 + $0x9c] sm:$0xf]
      %v4829 = vld [vmem:[%s4801 + $0xa0] sm:$0xf]
      %v4830 = vld [vmem:[%s4801 + $0xa8] sm:$0xf]
      %v4831 = vld [vmem:[%s4801 + $0xac] sm:$0xf]
      %v4832 = vld [vmem:[%s4801 + $0xb4] sm:$0xf]
      %v4833 = vld [vmem:[%s4801 + $0xb8] sm:$0xf]
      %4834 = vst.msk [vmem:[#allocation4 + $0xc] sm:$0xf] %vm301, %v4802
      %4835 = vst.msk [vmem:[#allocation4 + $0x20] sm:$0xf] %vm301, %v4803
      %4836 = vst.msk [vmem:[#allocation4 + $0x34] sm:$0xf] %vm301, %v4804
      %4837 = vst.msk [vmem:[#allocation4 + $0x48] sm:$0xf] %vm301, %v4805
      %4838 = vst.msk [vmem:[#allocation4 + $0x5c] sm:$0xf] %vm301, %v4806
      %4839 = vst.msk [vmem:[#allocation4 + $0x70] sm:$0xf] %vm301, %v4807
      %4840 = vst.msk [vmem:[#allocation4 + $0x84] sm:$0xf] %vm301, %v4808
      %4841 = vst.msk [vmem:[#allocation4 + $0x98] sm:$0xf] %vm301, %v4809
      %4842 = vst.msk [vmem:[#allocation4 + $0xac] sm:$0xf] %vm301, %v4810
      %4843 = vst.msk [vmem:[#allocation4 + $0xc0] sm:$0xf] %vm301, %v4811
      %4844 = vst.msk [vmem:[#allocation4 + $0xd4] sm:$0xf] %vm301, %v4812
      %4845 = vst.msk [vmem:[#allocation4 + $0xe8] sm:$0xf] %vm301, %v4813
      %4846 = vst.msk [vmem:[#allocation4 + $0xfc] sm:$0xf] %vm301, %v4814
      %4847 = vst.msk [vmem:[#allocation4 + $0x110] sm:$0xf] %vm301, %v4815
      %4848 = vst.msk [vmem:[#allocation4 + $0x124] sm:$0xf] %vm301, %v4816
      %4849 = vst.msk [vmem:[#allocation4 + $0x138] sm:$0xf] %vm301, %v4817
      %4850 = vst.msk [vmem:[#allocation4 + $0x14c] sm:$0xf] %vm301, %v4818
      %4851 = vst.msk [vmem:[#allocation4 + $0x160] sm:$0xf] %vm301, %v4819
      %4852 = vst.msk [vmem:[#allocation4 + $0x174] sm:$0xf] %vm301, %v4820
      %4853 = vst.msk [vmem:[#allocation4 + $0x188] sm:$0xf] %vm301, %v4821
      %4854 = vst.msk [vmem:[#allocation4 + $0x19c] sm:$0xf] %vm301, %v4822
      %4855 = vst.msk [vmem:[#allocation4 + $0x1b0] sm:$0xf] %vm301, %v4823
      %4856 = vst.msk [vmem:[#allocation4 + $0x1c4] sm:$0xf] %vm301, %v4824
      %4857 = vst.msk [vmem:[#allocation4 + $0x1d8] sm:$0xf] %vm301, %v4825
      %4858 = vst.msk [vmem:[#allocation4 + $0x1ec] sm:$0xf] %vm301, %v4826
      %4859 = vst.msk [vmem:[#allocation4 + $0x200] sm:$0xf] %vm301, %v4827
      %4860 = vst.msk [vmem:[#allocation4 + $0x214] sm:$0xf] %vm301, %v4828
      %4861 = vst.msk [vmem:[#allocation4 + $0x228] sm:$0xf] %vm301, %v4829
      %4862 = vst.msk [vmem:[#allocation4 + $0x23c] sm:$0xf] %vm301, %v4830
      %4863 = vst.msk [vmem:[#allocation4 + $0x250] sm:$0xf] %vm301, %v4831
      %4864 = vst.msk [vmem:[#allocation4 + $0x264] sm:$0xf] %vm301, %v4832
      %4865 = vst.msk [vmem:[#allocation4 + $0x278] sm:$0xf] %vm301, %v4833
      %v4866 = vld [vmem:[%s4801] sm:$0xf]
      %v4867 = vld [vmem:[%s4801 + $0x4] sm:$0xf]
      %v4868 = vld [vmem:[%s4801 + $0x8] sm:$0x1]
      %v4869 = vld [vmem:[%s4801 + $0xc] sm:$0xf]
      %v4870 = vld [vmem:[%s4801 + $0x10] sm:$0xf]
      %v4871 = vld [vmem:[%s4801 + $0x14] sm:$0x1]
      %v4872 = vld [vmem:[%s4801 + $0x18] sm:$0xf]
      %v4873 = vld [vmem:[%s4801 + $0x1c] sm:$0xf]
      %v4874 = vld [vmem:[%s4801 + $0x20] sm:$0x1]
      %v4875 = vld [vmem:[%s4801 + $0x24] sm:$0xf]
      %v4876 = vld [vmem:[%s4801 + $0x28] sm:$0xf]
      %v4877 = vld [vmem:[%s4801 + $0x2c] sm:$0x1]
      %v4878 = vld [vmem:[%s4801 + $0x30] sm:$0xf]
      %v4879 = vld [vmem:[%s4801 + $0x34] sm:$0xf]
      %v4880 = vld [vmem:[%s4801 + $0x38] sm:$0x1]
      %v4881 = vld [vmem:[%s4801 + $0x3c] sm:$0xf]
      %v4882 = vld [vmem:[%s4801 + $0x40] sm:$0xf]
      %v4883 = vld [vmem:[%s4801 + $0x44] sm:$0x1]
      %v4884 = vld [vmem:[%s4801 + $0x48] sm:$0xf]
      %v4885 = vld [vmem:[%s4801 + $0x4c] sm:$0xf]
      %v4886 = vld [vmem:[%s4801 + $0x50] sm:$0x1]
      %v4887 = vld [vmem:[%s4801 + $0x54] sm:$0xf]
      %v4888 = vld [vmem:[%s4801 + $0x58] sm:$0xf]
      %v4889 = vld [vmem:[%s4801 + $0x5c] sm:$0x1]
      %v4890 = vld [vmem:[%s4801 + $0x60] sm:$0xf]
      %v4891 = vld [vmem:[%s4801 + $0x64] sm:$0xf]
      %v4892 = vld [vmem:[%s4801 + $0x68] sm:$0x1]
      %v4893 = vld [vmem:[%s4801 + $0x6c] sm:$0xf]
      %v4894 = vld [vmem:[%s4801 + $0x70] sm:$0xf]
      %v4895 = vld [vmem:[%s4801 + $0x74] sm:$0x1]
      %v4896 = vld [vmem:[%s4801 + $0x78] sm:$0xf]
      %v4897 = vld [vmem:[%s4801 + $0x7c] sm:$0xf]
      %v4898 = vld [vmem:[%s4801 + $0x80] sm:$0x1]
      %v4899 = vld [vmem:[%s4801 + $0x84] sm:$0xf]
      %v4900 = vld [vmem:[%s4801 + $0x88] sm:$0xf]
      %v4901 = vld [vmem:[%s4801 + $0x8c] sm:$0x1]
      %v4902 = vld [vmem:[%s4801 + $0x90] sm:$0xf]
      %v4903 = vld [vmem:[%s4801 + $0x94] sm:$0xf]
      %v4904 = vld [vmem:[%s4801 + $0x98] sm:$0x1]
      %v4905 = vld [vmem:[%s4801 + $0x9c] sm:$0xf]
      %v4906 = vld [vmem:[%s4801 + $0xa0] sm:$0xf]
      %v4907 = vld [vmem:[%s4801 + $0xa4] sm:$0x1]
      %v4908 = vld [vmem:[%s4801 + $0xa8] sm:$0xf]
      %v4909 = vld [vmem:[%s4801 + $0xac] sm:$0xf]
      %v4910 = vld [vmem:[%s4801 + $0xb0] sm:$0x1]
      %v4911 = vld [vmem:[%s4801 + $0xb4] sm:$0xf]
      %v4912 = vld [vmem:[%s4801 + $0xb8] sm:$0xf]
      %v4913 = vld [vmem:[%s4801 + $0xbc] sm:$0x1]
      %v4915 = vshrl.u32 %v4866, 16
      %v4917 = vrot.slane %v4915, 4
      %v4918 = vshll.u32 %v4866, 16
      %v4920 = vrot.slane %v4918, 5
      %v4921 = vor.u32 %v4917, %v4920
      %v4922 = vrot.slane %v4921, 4
      %v4924 = vshll.u32 %v4867, 16
      %v4926 = vrot.slane %v4924, 5
      %v4927 = vsel %vm500, %v4922, %v4926
      %v4928 = vshrl.u32 %v4867, 16
      %v4930 = vrot.slane %v4928, 4
      %v4931 = vor.u32 %v4930, %v4926
      %v4932 = vrot.slane %v4931, 4
      %v4934 = vshll.u32 %v4868, 16
      %v4936 = vrot.slane %v4934, 5
      %v4937 = vsel %vm500, %v4932, %v4936
      %v4939 = vshrl.u32 %v4869, 16
      %v4941 = vrot.slane %v4939, 4
      %v4942 = vshll.u32 %v4869, 16
      %v4944 = vrot.slane %v4942, 5
      %v4945 = vor.u32 %v4941, %v4944
      %v4946 = vrot.slane %v4945, 4
      %v4948 = vshll.u32 %v4870, 16
      %v4950 = vrot.slane %v4948, 5
      %v4951 = vsel %vm500, %v4946, %v4950
      %v4952 = vshrl.u32 %v4870, 16
      %v4954 = vrot.slane %v4952, 4
      %v4955 = vor.u32 %v4954, %v4950
      %v4956 = vrot.slane %v4955, 4
      %v4958 = vshll.u32 %v4871, 16
      %v4960 = vrot.slane %v4958, 5
      %v4961 = vsel %vm500, %v4956, %v4960
      %v4963 = vshrl.u32 %v4872, 16
      %v4965 = vrot.slane %v4963, 4
      %v4966 = vshll.u32 %v4872, 16
      %v4968 = vrot.slane %v4966, 5
      %v4969 = vor.u32 %v4965, %v4968
      %v4970 = vrot.slane %v4969, 4
      %v4972 = vshll.u32 %v4873, 16
      %v4974 = vrot.slane %v4972, 5
      %v4975 = vsel %vm500, %v4970, %v4974
      %v4976 = vshrl.u32 %v4873, 16
      %v4978 = vrot.slane %v4976, 4
      %v4979 = vor.u32 %v4978, %v4974
      %v4980 = vrot.slane %v4979, 4
      %v4982 = vshll.u32 %v4874, 16
      %v4984 = vrot.slane %v4982, 5
      %v4985 = vsel %vm500, %v4980, %v4984
      %v4987 = vshrl.u32 %v4875, 16
      %v4989 = vrot.slane %v4987, 4
      %v4990 = vshll.u32 %v4875, 16
      %v4992 = vrot.slane %v4990, 5
      %v4993 = vor.u32 %v4989, %v4992
      %v4994 = vrot.slane %v4993, 4
      %v4996 = vshll.u32 %v4876, 16
      %v4998 = vrot.slane %v4996, 5
      %v4999 = vsel %vm500, %v4994, %v4998
      %v5000 = vshrl.u32 %v4876, 16
      %v5002 = vrot.slane %v5000, 4
      %v5003 = vor.u32 %v5002, %v4998
      %v5004 = vrot.slane %v5003, 4
      %v5006 = vshll.u32 %v4877, 16
      %v5008 = vrot.slane %v5006, 5
      %v5009 = vsel %vm500, %v5004, %v5008
      %v5011 = vshrl.u32 %v4878, 16
      %v5013 = vrot.slane %v5011, 4
      %v5014 = vshll.u32 %v4878, 16
      %v5016 = vrot.slane %v5014, 5
      %v5017 = vor.u32 %v5013, %v5016
      %v5018 = vrot.slane %v5017, 4
      %v5020 = vshll.u32 %v4879, 16
      %v5022 = vrot.slane %v5020, 5
      %v5023 = vsel %vm500, %v5018, %v5022
      %v5024 = vshrl.u32 %v4879, 16
      %v5026 = vrot.slane %v5024, 4
      %v5027 = vor.u32 %v5026, %v5022
      %v5028 = vrot.slane %v5027, 4
      %v5030 = vshll.u32 %v4880, 16
      %v5032 = vrot.slane %v5030, 5
      %v5033 = vsel %vm500, %v5028, %v5032
      %v5035 = vshrl.u32 %v4881, 16
      %v5037 = vrot.slane %v5035, 4
      %v5038 = vshll.u32 %v4881, 16
      %v5040 = vrot.slane %v5038, 5
      %v5041 = vor.u32 %v5037, %v5040
      %v5042 = vrot.slane %v5041, 4
      %v5044 = vshll.u32 %v4882, 16
      %v5046 = vrot.slane %v5044, 5
      %v5047 = vsel %vm500, %v5042, %v5046
      %v5048 = vshrl.u32 %v4882, 16
      %v5050 = vrot.slane %v5048, 4
      %v5051 = vor.u32 %v5050, %v5046
      %v5052 = vrot.slane %v5051, 4
      %v5054 = vshll.u32 %v4883, 16
      %v5056 = vrot.slane %v5054, 5
      %v5057 = vsel %vm500, %v5052, %v5056
      %v5059 = vshrl.u32 %v4884, 16
      %v5061 = vrot.slane %v5059, 4
      %v5062 = vshll.u32 %v4884, 16
      %v5064 = vrot.slane %v5062, 5
      %v5065 = vor.u32 %v5061, %v5064
      %v5066 = vrot.slane %v5065, 4
      %v5068 = vshll.u32 %v4885, 16
      %v5070 = vrot.slane %v5068, 5
      %v5071 = vsel %vm500, %v5066, %v5070
      %v5072 = vshrl.u32 %v4885, 16
      %v5074 = vrot.slane %v5072, 4
      %v5075 = vor.u32 %v5074, %v5070
      %v5076 = vrot.slane %v5075, 4
      %v5078 = vshll.u32 %v4886, 16
      %v5080 = vrot.slane %v5078, 5
      %v5081 = vsel %vm500, %v5076, %v5080
      %v5083 = vshrl.u32 %v4887, 16
      %v5085 = vrot.slane %v5083, 4
      %v5086 = vshll.u32 %v4887, 16
      %v5088 = vrot.slane %v5086, 5
      %v5089 = vor.u32 %v5085, %v5088
      %v5090 = vrot.slane %v5089, 4
      %v5092 = vshll.u32 %v4888, 16
      %v5094 = vrot.slane %v5092, 5
      %v5095 = vsel %vm500, %v5090, %v5094
      %v5096 = vshrl.u32 %v4888, 16
      %v5098 = vrot.slane %v5096, 4
      %v5099 = vor.u32 %v5098, %v5094
      %v5100 = vrot.slane %v5099, 4
      %v5102 = vshll.u32 %v4889, 16
      %v5104 = vrot.slane %v5102, 5
      %v5105 = vsel %vm500, %v5100, %v5104
      %v5107 = vshrl.u32 %v4890, 16
      %v5109 = vrot.slane %v5107, 4
      %v5110 = vshll.u32 %v4890, 16
      %v5112 = vrot.slane %v5110, 5
      %v5113 = vor.u32 %v5109, %v5112
      %v5114 = vrot.slane %v5113, 4
      %v5116 = vshll.u32 %v4891, 16
      %v5118 = vrot.slane %v5116, 5
      %v5119 = vsel %vm500, %v5114, %v5118
      %v5120 = vshrl.u32 %v4891, 16
      %v5122 = vrot.slane %v5120, 4
      %v5123 = vor.u32 %v5122, %v5118
      %v5124 = vrot.slane %v5123, 4
      %v5126 = vshll.u32 %v4892, 16
      %v5128 = vrot.slane %v5126, 5
      %v5129 = vsel %vm500, %v5124, %v5128
      %v5131 = vshrl.u32 %v4893, 16
      %v5133 = vrot.slane %v5131, 4
      %v5134 = vshll.u32 %v4893, 16
      %v5136 = vrot.slane %v5134, 5
      %v5137 = vor.u32 %v5133, %v5136
      %v5138 = vrot.slane %v5137, 4
      %v5140 = vshll.u32 %v4894, 16
      %v5142 = vrot.slane %v5140, 5
      %v5143 = vsel %vm500, %v5138, %v5142
      %v5144 = vshrl.u32 %v4894, 16
      %v5146 = vrot.slane %v5144, 4
      %v5147 = vor.u32 %v5146, %v5142
      %v5148 = vrot.slane %v5147, 4
      %v5150 = vshll.u32 %v4895, 16
      %v5152 = vrot.slane %v5150, 5
      %v5153 = vsel %vm500, %v5148, %v5152
      %v5155 = vshrl.u32 %v4896, 16
      %v5157 = vrot.slane %v5155, 4
      %v5158 = vshll.u32 %v4896, 16
      %v5160 = vrot.slane %v5158, 5
      %v5161 = vor.u32 %v5157, %v5160
      %v5162 = vrot.slane %v5161, 4
      %v5164 = vshll.u32 %v4897, 16
      %v5166 = vrot.slane %v5164, 5
      %v5167 = vsel %vm500, %v5162, %v5166
      %v5168 = vshrl.u32 %v4897, 16
      %v5170 = vrot.slane %v5168, 4
      %v5171 = vor.u32 %v5170, %v5166
      %v5172 = vrot.slane %v5171, 4
      %v5174 = vshll.u32 %v4898, 16
      %v5176 = vrot.slane %v5174, 5
      %v5177 = vsel %vm500, %v5172, %v5176
      %v5179 = vshrl.u32 %v4899, 16
      %v5181 = vrot.slane %v5179, 4
      %v5182 = vshll.u32 %v4899, 16
      %v5184 = vrot.slane %v5182, 5
      %v5185 = vor.u32 %v5181, %v5184
      %v5186 = vrot.slane %v5185, 4
      %v5188 = vshll.u32 %v4900, 16
      %v5190 = vrot.slane %v5188, 5
      %v5191 = vsel %vm500, %v5186, %v5190
      %v5192 = vshrl.u32 %v4900, 16
      %v5194 = vrot.slane %v5192, 4
      %v5195 = vor.u32 %v5194, %v5190
      %v5196 = vrot.slane %v5195, 4
      %v5198 = vshll.u32 %v4901, 16
      %v5200 = vrot.slane %v5198, 5
      %v5201 = vsel %vm500, %v5196, %v5200
      %v5203 = vshrl.u32 %v4902, 16
      %v5205 = vrot.slane %v5203, 4
      %v5206 = vshll.u32 %v4902, 16
      %v5208 = vrot.slane %v5206, 5
      %v5209 = vor.u32 %v5205, %v5208
      %v5210 = vrot.slane %v5209, 4
      %v5212 = vshll.u32 %v4903, 16
      %v5214 = vrot.slane %v5212, 5
      %v5215 = vsel %vm500, %v5210, %v5214
      %v5216 = vshrl.u32 %v4903, 16
      %v5218 = vrot.slane %v5216, 4
      %v5219 = vor.u32 %v5218, %v5214
      %v5220 = vrot.slane %v5219, 4
      %v5222 = vshll.u32 %v4904, 16
      %v5224 = vrot.slane %v5222, 5
      %v5225 = vsel %vm500, %v5220, %v5224
      %v5227 = vshrl.u32 %v4905, 16
      %v5229 = vrot.slane %v5227, 4
      %v5230 = vshll.u32 %v4905, 16
      %v5232 = vrot.slane %v5230, 5
      %v5233 = vor.u32 %v5229, %v5232
      %v5234 = vrot.slane %v5233, 4
      %v5236 = vshll.u32 %v4906, 16
      %v5238 = vrot.slane %v5236, 5
      %v5239 = vsel %vm500, %v5234, %v5238
      %v5240 = vshrl.u32 %v4906, 16
      %v5242 = vrot.slane %v5240, 4
      %v5243 = vor.u32 %v5242, %v5238
      %v5244 = vrot.slane %v5243, 4
      %v5246 = vshll.u32 %v4907, 16
      %v5248 = vrot.slane %v5246, 5
      %v5249 = vsel %vm500, %v5244, %v5248
      %v5251 = vshrl.u32 %v4908, 16
      %v5253 = vrot.slane %v5251, 4
      %v5254 = vshll.u32 %v4908, 16
      %v5256 = vrot.slane %v5254, 5
      %v5257 = vor.u32 %v5253, %v5256
      %v5258 = vrot.slane %v5257, 4
      %v5260 = vshll.u32 %v4909, 16
      %v5262 = vrot.slane %v5260, 5
      %v5263 = vsel %vm500, %v5258, %v5262
      %v5264 = vshrl.u32 %v4909, 16
      %v5266 = vrot.slane %v5264, 4
      %v5267 = vor.u32 %v5266, %v5262
      %v5268 = vrot.slane %v5267, 4
      %v5270 = vshll.u32 %v4910, 16
      %v5272 = vrot.slane %v5270, 5
      %v5273 = vsel %vm500, %v5268, %v5272
      %v5275 = vshrl.u32 %v4911, 16
      %v5277 = vrot.slane %v5275, 4
      %v5278 = vshll.u32 %v4911, 16
      %v5280 = vrot.slane %v5278, 5
      %v5281 = vor.u32 %v5277, %v5280
      %v5282 = vrot.slane %v5281, 4
      %v5284 = vshll.u32 %v4912, 16
      %v5286 = vrot.slane %v5284, 5
      %v5287 = vsel %vm500, %v5282, %v5286
      %v5288 = vshrl.u32 %v4912, 16
      %v5290 = vrot.slane %v5288, 4
      %v5291 = vor.u32 %v5290, %v5286
      %v5292 = vrot.slane %v5291, 4
      %v5294 = vshll.u32 %v4913, 16
      %v5296 = vrot.slane %v5294, 5
      %v5297 = vsel %vm500, %v5292, %v5296
      %5298 = vrot.lane.b32.xlu0 %v4927, 64
      %v5299 = vpop.permute.xlu0 %5298
      %5300 = vrot.lane.b32.xlu0 %v4937, 64
      %v5301 = vpop.permute.xlu0 %5300
      %5302 = vrot.lane.b32.xlu0 %v4951, 64
      %v5303 = vpop.permute.xlu0 %5302
      %5304 = vrot.lane.b32.xlu0 %v4961, 64
      %v5305 = vpop.permute.xlu0 %5304
      %5306 = vrot.lane.b32.xlu0 %v4975, 64
      %v5307 = vpop.permute.xlu0 %5306
      %5308 = vrot.lane.b32.xlu0 %v4985, 64
      %v5309 = vpop.permute.xlu0 %5308
      %5310 = vrot.lane.b32.xlu0 %v4999, 64
      %v5311 = vpop.permute.xlu0 %5310
      %5312 = vrot.lane.b32.xlu0 %v5009, 64
      %v5313 = vpop.permute.xlu0 %5312
      %5314 = vrot.lane.b32.xlu0 %v5023, 64
      %v5315 = vpop.permute.xlu0 %5314
      %5316 = vrot.lane.b32.xlu0 %v5033, 64
      %v5317 = vpop.permute.xlu0 %5316
      %5318 = vrot.lane.b32.xlu0 %v5047, 64
      %v5319 = vpop.permute.xlu0 %5318
      %5320 = vrot.lane.b32.xlu0 %v5057, 64
      %v5321 = vpop.permute.xlu0 %5320
      %5322 = vrot.lane.b32.xlu0 %v5071, 64
      %v5323 = vpop.permute.xlu0 %5322
      %5324 = vrot.lane.b32.xlu0 %v5081, 64
      %v5325 = vpop.permute.xlu0 %5324
      %5326 = vrot.lane.b32.xlu0 %v5095, 64
      %v5327 = vpop.permute.xlu0 %5326
      %5328 = vrot.lane.b32.xlu0 %v5105, 64
      %v5329 = vpop.permute.xlu0 %5328
      %5330 = vrot.lane.b32.xlu0 %v5119, 64
      %v5331 = vpop.permute.xlu0 %5330
      %5332 = vrot.lane.b32.xlu0 %v5129, 64
      %v5333 = vpop.permute.xlu0 %5332
      %5334 = vrot.lane.b32.xlu0 %v5143, 64
      %v5335 = vpop.permute.xlu0 %5334
      %5336 = vrot.lane.b32.xlu0 %v5153, 64
      %v5337 = vpop.permute.xlu0 %5336
      %5338 = vrot.lane.b32.xlu0 %v5167, 64
      %v5339 = vpop.permute.xlu0 %5338
      %5340 = vrot.lane.b32.xlu0 %v5177, 64
      %v5341 = vpop.permute.xlu0 %5340
      %5342 = vrot.lane.b32.xlu0 %v5191, 64
      %v5343 = vpop.permute.xlu0 %5342
      %5344 = vrot.lane.b32.xlu0 %v5201, 64
      %v5345 = vpop.permute.xlu0 %5344
      %5346 = vrot.lane.b32.xlu0 %v5215, 64
      %v5347 = vpop.permute.xlu0 %5346
      %5348 = vrot.lane.b32.xlu0 %v5225, 64
      %v5349 = vpop.permute.xlu0 %5348
      %5350 = vrot.lane.b32.xlu0 %v5239, 64
      %v5351 = vpop.permute.xlu0 %5350
      %5352 = vrot.lane.b32.xlu0 %v5249, 64
      %v5353 = vpop.permute.xlu0 %5352
      %5354 = vrot.lane.b32.xlu0 %v5263, 64
      %v5355 = vpop.permute.xlu0 %5354
      %5356 = vrot.lane.b32.xlu0 %v5273, 64
      %v5357 = vpop.permute.xlu0 %5356
      %5358 = vrot.lane.b32.xlu0 %v5287, 64
      %v5359 = vpop.permute.xlu0 %5358
      %5360 = vrot.lane.b32.xlu0 %v5297, 64
      %v5361 = vpop.permute.xlu0 %5360
      %5394 = vst.msk [vmem:[#allocation4 + $0xc] sm:$0xf] %vm637, %v5299
      %5395 = vst.msk [vmem:[#allocation4 + $0x20] sm:$0xf] %vm637, %v5301
      %5396 = vst.msk [vmem:[#allocation4 + $0x34] sm:$0xf] %vm637, %v5303
      %5397 = vst.msk [vmem:[#allocation4 + $0x48] sm:$0xf] %vm637, %v5305
      %5398 = vst.msk [vmem:[#allocation4 + $0x5c] sm:$0xf] %vm637, %v5307
      %5399 = vst.msk [vmem:[#allocation4 + $0x70] sm:$0xf] %vm637, %v5309
      %5400 = vst.msk [vmem:[#allocation4 + $0x84] sm:$0xf] %vm637, %v5311
      %5401 = vst.msk [vmem:[#allocation4 + $0x98] sm:$0xf] %vm637, %v5313
      %5402 = vst.msk [vmem:[#allocation4 + $0xac] sm:$0xf] %vm637, %v5315
      %5403 = vst.msk [vmem:[#allocation4 + $0xc0] sm:$0xf] %vm637, %v5317
      %5404 = vst.msk [vmem:[#allocation4 + $0xd4] sm:$0xf] %vm637, %v5319
      %5405 = vst.msk [vmem:[#allocation4 + $0xe8] sm:$0xf] %vm637, %v5321
      %5406 = vst.msk [vmem:[#allocation4 + $0xfc] sm:$0xf] %vm637, %v5323
      %5407 = vst.msk [vmem:[#allocation4 + $0x110] sm:$0xf] %vm637, %v5325
      %5408 = vst.msk [vmem:[#allocation4 + $0x124] sm:$0xf] %vm637, %v5327
      %5409 = vst.msk [vmem:[#allocation4 + $0x138] sm:$0xf] %vm637, %v5329
      %5410 = vst.msk [vmem:[#allocation4 + $0x14c] sm:$0xf] %vm637, %v5331
      %5411 = vst.msk [vmem:[#allocation4 + $0x160] sm:$0xf] %vm637, %v5333
      %5412 = vst.msk [vmem:[#allocation4 + $0x174] sm:$0xf] %vm637, %v5335
      %5413 = vst.msk [vmem:[#allocation4 + $0x188] sm:$0xf] %vm637, %v5337
      %5414 = vst.msk [vmem:[#allocation4 + $0x19c] sm:$0xf] %vm637, %v5339
      %5415 = vst.msk [vmem:[#allocation4 + $0x1b0] sm:$0xf] %vm637, %v5341
      %5416 = vst.msk [vmem:[#allocation4 + $0x1c4] sm:$0xf] %vm637, %v5343
      %5417 = vst.msk [vmem:[#allocation4 + $0x1d8] sm:$0xf] %vm637, %v5345
      %5418 = vst.msk [vmem:[#allocation4 + $0x1ec] sm:$0xf] %vm637, %v5347
      %5419 = vst.msk [vmem:[#allocation4 + $0x200] sm:$0xf] %vm637, %v5349
      %5420 = vst.msk [vmem:[#allocation4 + $0x214] sm:$0xf] %vm637, %v5351
      %5421 = vst.msk [vmem:[#allocation4 + $0x228] sm:$0xf] %vm637, %v5353
      %5422 = vst.msk [vmem:[#allocation4 + $0x23c] sm:$0xf] %vm637, %v5355
      %5423 = vst.msk [vmem:[#allocation4 + $0x250] sm:$0xf] %vm637, %v5357
      %5424 = vst.msk [vmem:[#allocation4 + $0x264] sm:$0xf] %vm637, %v5359
      %5425 = vst.msk [vmem:[#allocation4 + $0x278] sm:$0xf] %vm637, %v5361
      %v5426 = vld [vmem:[%s4801] sm:$0xe]
      %v5427 = vld [vmem:[%s4801 + $0x4] sm:$0xf]
      %v5428 = vld [vmem:[%s4801 + $0x8] sm:$0x1]
      %v5429 = vld [vmem:[%s4801 + $0xc] sm:$0xe]
      %v5430 = vld [vmem:[%s4801 + $0x10] sm:$0xf]
      %v5431 = vld [vmem:[%s4801 + $0x14] sm:$0x1]
      %v5432 = vld [vmem:[%s4801 + $0x18] sm:$0xe]
      %v5433 = vld [vmem:[%s4801 + $0x1c] sm:$0xf]
      %v5434 = vld [vmem:[%s4801 + $0x20] sm:$0x1]
      %v5435 = vld [vmem:[%s4801 + $0x24] sm:$0xe]
      %v5436 = vld [vmem:[%s4801 + $0x28] sm:$0xf]
      %v5437 = vld [vmem:[%s4801 + $0x2c] sm:$0x1]
      %v5438 = vld [vmem:[%s4801 + $0x30] sm:$0xe]
      %v5439 = vld [vmem:[%s4801 + $0x34] sm:$0xf]
      %v5440 = vld [vmem:[%s4801 + $0x38] sm:$0x1]
      %v5441 = vld [vmem:[%s4801 + $0x3c] sm:$0xe]
      %v5442 = vld [vmem:[%s4801 + $0x40] sm:$0xf]
      %v5443 = vld [vmem:[%s4801 + $0x44] sm:$0x1]
      %v5444 = vld [vmem:[%s4801 + $0x48] sm:$0xe]
      %v5445 = vld [vmem:[%s4801 + $0x4c] sm:$0xf]
      %v5446 = vld [vmem:[%s4801 + $0x50] sm:$0x1]
      %v5447 = vld [vmem:[%s4801 + $0x54] sm:$0xe]
      %v5448 = vld [vmem:[%s4801 + $0x58] sm:$0xf]
      %v5449 = vld [vmem:[%s4801 + $0x5c] sm:$0x1]
      %v5450 = vld [vmem:[%s4801 + $0x60] sm:$0xe]
      %v5451 = vld [vmem:[%s4801 + $0x64] sm:$0xf]
      %v5452 = vld [vmem:[%s4801 + $0x68] sm:$0x1]
      %v5453 = vld [vmem:[%s4801 + $0x6c] sm:$0xe]
      %v5454 = vld [vmem:[%s4801 + $0x70] sm:$0xf]
      %v5455 = vld [vmem:[%s4801 + $0x74] sm:$0x1]
      %v5456 = vld [vmem:[%s4801 + $0x78] sm:$0xe]
      %v5457 = vld [vmem:[%s4801 + $0x7c] sm:$0xf]
      %v5458 = vld [vmem:[%s4801 + $0x80] sm:$0x1]
      %v5459 = vld [vmem:[%s4801 + $0x84] sm:$0xe]
      %v5460 = vld [vmem:[%s4801 + $0x88] sm:$0xf]
      %v5461 = vld [vmem:[%s4801 + $0x8c] sm:$0x1]
      %v5462 = vld [vmem:[%s4801 + $0x90] sm:$0xe]
      %v5463 = vld [vmem:[%s4801 + $0x94] sm:$0xf]
      %v5464 = vld [vmem:[%s4801 + $0x98] sm:$0x1]
      %v5465 = vld [vmem:[%s4801 + $0x9c] sm:$0xe]
      %v5466 = vld [vmem:[%s4801 + $0xa0] sm:$0xf]
      %v5467 = vld [vmem:[%s4801 + $0xa4] sm:$0x1]
      %v5468 = vld [vmem:[%s4801 + $0xa8] sm:$0xe]
      %v5469 = vld [vmem:[%s4801 + $0xac] sm:$0xf]
      %v5470 = vld [vmem:[%s4801 + $0xb0] sm:$0x1]
      %v5471 = vld [vmem:[%s4801 + $0xb4] sm:$0xe]
      %v5472 = vld [vmem:[%s4801 + $0xb8] sm:$0xf]
      %v5473 = vld [vmem:[%s4801 + $0xbc] sm:$0x1]
      %v5522 = vrot.slane %v5426, 5
      %v5523 = vrot.slane %v5522, 4
      %v5524 = vrot.slane %v5427, 5
      %v5525 = vsel %vm680, %v5523, %v5524
      %v5526 = vrot.slane %v5524, 4
      %v5527 = vrot.slane %v5428, 5
      %v5528 = vsel %vm680, %v5526, %v5527
      %v5529 = vrot.slane %v5429, 5
      %v5530 = vrot.slane %v5529, 4
      %v5531 = vrot.slane %v5430, 5
      %v5532 = vsel %vm680, %v5530, %v5531
      %v5533 = vrot.slane %v5531, 4
      %v5534 = vrot.slane %v5431, 5
      %v5535 = vsel %vm680, %v5533, %v5534
      %v5536 = vrot.slane %v5432, 5
      %v5537 = vrot.slane %v5536, 4
      %v5538 = vrot.slane %v5433, 5
      %v5539 = vsel %vm680, %v5537, %v5538
      %v5540 = vrot.slane %v5538, 4
      %v5541 = vrot.slane %v5434, 5
      %v5542 = vsel %vm680, %v5540, %v5541
      %v5543 = vrot.slane %v5435, 5
      %v5544 = vrot.slane %v5543, 4
      %v5545 = vrot.slane %v5436, 5
      %v5546 = vsel %vm680, %v5544, %v5545
      %v5547 = vrot.slane %v5545, 4
      %v5548 = vrot.slane %v5437, 5
      %v5549 = vsel %vm680, %v5547, %v5548
      %v5550 = vrot.slane %v5438, 5
      %v5551 = vrot.slane %v5550, 4
      %v5552 = vrot.slane %v5439, 5
      %v5553 = vsel %vm680, %v5551, %v5552
      %v5554 = vrot.slane %v5552, 4
      %v5555 = vrot.slane %v5440, 5
      %v5556 = vsel %vm680, %v5554, %v5555
      %v5557 = vrot.slane %v5441, 5
      %v5558 = vrot.slane %v5557, 4
      %v5559 = vrot.slane %v5442, 5
      %v5560 = vsel %vm680, %v5558, %v5559
      %v5561 = vrot.slane %v5559, 4
      %v5562 = vrot.slane %v5443, 5
      %v5563 = vsel %vm680, %v5561, %v5562
      %v5564 = vrot.slane %v5444, 5
      %v5565 = vrot.slane %v5564, 4
      %v5566 = vrot.slane %v5445, 5
      %v5567 = vsel %vm680, %v5565, %v5566
      %v5568 = vrot.slane %v5566, 4
      %v5569 = vrot.slane %v5446, 5
      %v5570 = vsel %vm680, %v5568, %v5569
      %v5571 = vrot.slane %v5447, 5
      %v5572 = vrot.slane %v5571, 4
      %v5573 = vrot.slane %v5448, 5
      %v5574 = vsel %vm680, %v5572, %v5573
      %v5575 = vrot.slane %v5573, 4
      %v5576 = vrot.slane %v5449, 5
      %v5577 = vsel %vm680, %v5575, %v5576
      %v5578 = vrot.slane %v5450, 5
      %v5579 = vrot.slane %v5578, 4
      %v5580 = vrot.slane %v5451, 5
      %v5581 = vsel %vm680, %v5579, %v5580
      %v5582 = vrot.slane %v5580, 4
      %v5583 = vrot.slane %v5452, 5
      %v5584 = vsel %vm680, %v5582, %v5583
      %v5585 = vrot.slane %v5453, 5
      %v5586 = vrot.slane %v5585, 4
      %v5587 = vrot.slane %v5454, 5
      %v5588 = vsel %vm680, %v5586, %v5587
      %v5589 = vrot.slane %v5587, 4
      %v5590 = vrot.slane %v5455, 5
      %v5591 = vsel %vm680, %v5589, %v5590
      %v5592 = vrot.slane %v5456, 5
      %v5593 = vrot.slane %v5592, 4
      %v5594 = vrot.slane %v5457, 5
      %v5595 = vsel %vm680, %v5593, %v5594
      %v5596 = vrot.slane %v5594, 4
      %v5597 = vrot.slane %v5458, 5
      %v5598 = vsel %vm680, %v5596, %v5597
      %v5599 = vrot.slane %v5459, 5
      %v5600 = vrot.slane %v5599, 4
      %v5601 = vrot.slane %v5460, 5
      %v5602 = vsel %vm680, %v5600, %v5601
      %v5603 = vrot.slane %v5601, 4
      %v5604 = vrot.slane %v5461, 5
      %v5605 = vsel %vm680, %v5603, %v5604
      %v5606 = vrot.slane %v5462, 5
      %v5607 = vrot.slane %v5606, 4
      %v5608 = vrot.slane %v5463, 5
      %v5609 = vsel %vm680, %v5607, %v5608
      %v5610 = vrot.slane %v5608, 4
      %v5611 = vrot.slane %v5464, 5
      %v5612 = vsel %vm680, %v5610, %v5611
      %v5613 = vrot.slane %v5465, 5
      %v5614 = vrot.slane %v5613, 4
      %v5615 = vrot.slane %v5466, 5
      %v5616 = vsel %vm680, %v5614, %v5615
      %v5617 = vrot.slane %v5615, 4
      %v5618 = vrot.slane %v5467, 5
      %v5619 = vsel %vm680, %v5617, %v5618
      %v5620 = vrot.slane %v5468, 5
      %v5621 = vrot.slane %v5620, 4
      %v5622 = vrot.slane %v5469, 5
      %v5623 = vsel %vm680, %v5621, %v5622
      %v5624 = vrot.slane %v5622, 4
      %v5625 = vrot.slane %v5470, 5
      %v5626 = vsel %vm680, %v5624, %v5625
      %v5627 = vrot.slane %v5471, 5
      %v5628 = vrot.slane %v5627, 4
      %v5629 = vrot.slane %v5472, 5
      %v5630 = vsel %vm680, %v5628, %v5629
      %v5631 = vrot.slane %v5629, 4
      %v5632 = vrot.slane %v5473, 5
      %v5633 = vsel %vm680, %v5631, %v5632
      %5666 = vst.msk [vmem:[#allocation4 + $0x10] sm:$0xf] %vm301, %v5525
      %5667 = vst.msk [vmem:[#allocation4 + $0x24] sm:$0xf] %vm301, %v5528
      %5668 = vst.msk [vmem:[#allocation4 + $0x38] sm:$0xf] %vm301, %v5532
      %5669 = vst.msk [vmem:[#allocation4 + $0x4c] sm:$0xf] %vm301, %v5535
      %5670 = vst.msk [vmem:[#allocation4 + $0x60] sm:$0xf] %vm301, %v5539
      %5671 = vst.msk [vmem:[#allocation4 + $0x74] sm:$0xf] %vm301, %v5542
      %5672 = vst.msk [vmem:[#allocation4 + $0x88] sm:$0xf] %vm301, %v5546
      %5673 = vst.msk [vmem:[#allocation4 + $0x9c] sm:$0xf] %vm301, %v5549
      %5674 = vst.msk [vmem:[#allocation4 + $0xb0] sm:$0xf] %vm301, %v5553
      %5675 = vst.msk [vmem:[#allocation4 + $0xc4] sm:$0xf] %vm301, %v5556
      %5676 = vst.msk [vmem:[#allocation4 + $0xd8] sm:$0xf] %vm301, %v5560
      %5677 = vst.msk [vmem:[#allocation4 + $0xec] sm:$0xf] %vm301, %v5563
      %5678 = vst.msk [vmem:[#allocation4 + $0x100] sm:$0xf] %vm301, %v5567
      %5679 = vst.msk [vmem:[#allocation4 + $0x114] sm:$0xf] %vm301, %v5570
      %5680 = vst.msk [vmem:[#allocation4 + $0x128] sm:$0xf] %vm301, %v5574
      %5681 = vst.msk [vmem:[#allocation4 + $0x13c] sm:$0xf] %vm301, %v5577
      %5682 = vst.msk [vmem:[#allocation4 + $0x150] sm:$0xf] %vm301, %v5581
      %5683 = vst.msk [vmem:[#allocation4 + $0x164] sm:$0xf] %vm301, %v5584
      %5684 = vst.msk [vmem:[#allocation4 + $0x178] sm:$0xf] %vm301, %v5588
      %5685 = vst.msk [vmem:[#allocation4 + $0x18c] sm:$0xf] %vm301, %v5591
      %5686 = vst.msk [vmem:[#allocation4 + $0x1a0] sm:$0xf] %vm301, %v5595
      %5687 = vst.msk [vmem:[#allocation4 + $0x1b4] sm:$0xf] %vm301, %v5598
      %5688 = vst.msk [vmem:[#allocation4 + $0x1c8] sm:$0xf] %vm301, %v5602
      %5689 = vst.msk [vmem:[#allocation4 + $0x1dc] sm:$0xf] %vm301, %v5605
      %5690 = vst.msk [vmem:[#allocation4 + $0x1f0] sm:$0xf] %vm301, %v5609
      %5691 = vst.msk [vmem:[#allocation4 + $0x204] sm:$0xf] %vm301, %v5612
      %5692 = vst.msk [vmem:[#allocation4 + $0x218] sm:$0xf] %vm301, %v5616
      %5693 = vst.msk [vmem:[#allocation4 + $0x22c] sm:$0xf] %vm301, %v5619
      %5694 = vst.msk [vmem:[#allocation4 + $0x240] sm:$0xf] %vm301, %v5623
      %5695 = vst.msk [vmem:[#allocation4 + $0x254] sm:$0xf] %vm301, %v5626
      %5696 = vst.msk [vmem:[#allocation4 + $0x268] sm:$0xf] %vm301, %v5630
      %5697 = vst.msk [vmem:[#allocation4 + $0x27c] sm:$0xf] %vm301, %v5633
      %v5698 = vld [vmem:[#allocation4] sm:$0xff]
      %v5699 = vld [vmem:[#allocation4 + $0x8] sm:$0xff]
      %v5700 = vld [vmem:[#allocation4 + $0x10] sm:$0xf]
      %v5701 = vld [vmem:[#allocation4 + $0x14] sm:$0xff]
      %v5702 = vld [vmem:[#allocation4 + $0x1c] sm:$0xff]
      %v5703 = vld [vmem:[#allocation4 + $0x24] sm:$0xf]
      %v5704 = vld [vmem:[#allocation4 + $0x28] sm:$0xff]
      %v5705 = vld [vmem:[#allocation4 + $0x30] sm:$0xff]
      %v5706 = vld [vmem:[#allocation4 + $0x38] sm:$0xf]
      %v5707 = vld [vmem:[#allocation4 + $0x3c] sm:$0xff]
      %v5708 = vld [vmem:[#allocation4 + $0x44] sm:$0xff]
      %v5709 = vld [vmem:[#allocation4 + $0x4c] sm:$0xf]
      %v5710 = vld [vmem:[#allocation4 + $0x50] sm:$0xff]
      %v5711 = vld [vmem:[#allocation4 + $0x58] sm:$0xff]
      %v5712 = vld [vmem:[#allocation4 + $0x60] sm:$0xf]
      %v5713 = vld [vmem:[#allocation4 + $0x64] sm:$0xff]
      %v5714 = vld [vmem:[#allocation4 + $0x6c] sm:$0xff]
      %v5715 = vld [vmem:[#allocation4 + $0x74] sm:$0xf]
      %v5716 = vld [vmem:[#allocation4 + $0x78] sm:$0xff]
      %v5717 = vld [vmem:[#allocation4 + $0x80] sm:$0xff]
      %v5718 = vld [vmem:[#allocation4 + $0x88] sm:$0xf]
      %v5719 = vld [vmem:[#allocation4 + $0x8c] sm:$0xff]
      %v5720 = vld [vmem:[#allocation4 + $0x94] sm:$0xff]
      %v5721 = vld [vmem:[#allocation4 + $0x9c] sm:$0xf]
      %v5722 = vld [vmem:[#allocation4 + $0xa0] sm:$0xff]
      %v5723 = vld [vmem:[#allocation4 + $0xa8] sm:$0xff]
      %v5724 = vld [vmem:[#allocation4 + $0xb0] sm:$0xf]
      %v5725 = vld [vmem:[#allocation4 + $0xb4] sm:$0xff]
      %v5726 = vld [vmem:[#allocation4 + $0xbc] sm:$0xff]
      %v5727 = vld [vmem:[#allocation4 + $0xc4] sm:$0xf]
      %v5728 = vld [vmem:[#allocation4 + $0xc8] sm:$0xff]
      %v5729 = vld [vmem:[#allocation4 + $0xd0] sm:$0xff]
      %v5730 = vld [vmem:[#allocation4 + $0xd8] sm:$0xf]
      %v5731 = vld [vmem:[#allocation4 + $0xdc] sm:$0xff]
      %v5732 = vld [vmem:[#allocation4 + $0xe4] sm:$0xff]
      %v5733 = vld [vmem:[#allocation4 + $0xec] sm:$0xf]
      %v5734 = vld [vmem:[#allocation4 + $0xf0] sm:$0xff]
      %v5735 = vld [vmem:[#allocation4 + $0xf8] sm:$0xff]
      %v5736 = vld [vmem:[#allocation4 + $0x100] sm:$0xf]
      %v5737 = vld [vmem:[#allocation4 + $0x104] sm:$0xff]
      %v5738 = vld [vmem:[#allocation4 + $0x10c] sm:$0xff]
      %v5739 = vld [vmem:[#allocation4 + $0x114] sm:$0xf]
      %v5740 = vld [vmem:[#allocation4 + $0x118] sm:$0xff]
      %v5741 = vld [vmem:[#allocation4 + $0x120] sm:$0xff]
      %v5742 = vld [vmem:[#allocation4 + $0x128] sm:$0xf]
      %v5743 = vld [vmem:[#allocation4 + $0x12c] sm:$0xff]
      %v5744 = vld [vmem:[#allocation4 + $0x134] sm:$0xff]
      %v5745 = vld [vmem:[#allocation4 + $0x13c] sm:$0xf]
      %v5746 = vld [vmem:[#allocation4 + $0x140] sm:$0xff]
      %v5747 = vld [vmem:[#allocation4 + $0x148] sm:$0xff]
      %v5748 = vld [vmem:[#allocation4 + $0x150] sm:$0xf]
      %v5749 = vld [vmem:[#allocation4 + $0x154] sm:$0xff]
      %v5750 = vld [vmem:[#allocation4 + $0x15c] sm:$0xff]
      %v5751 = vld [vmem:[#allocation4 + $0x164] sm:$0xf]
      %v5752 = vld [vmem:[#allocation4 + $0x168] sm:$0xff]
      %v5753 = vld [vmem:[#allocation4 + $0x170] sm:$0xff]
      %v5754 = vld [vmem:[#allocation4 + $0x178] sm:$0xf]
      %v5755 = vld [vmem:[#allocation4 + $0x17c] sm:$0xff]
      %v5756 = vld [vmem:[#allocation4 + $0x184] sm:$0xff]
      %v5757 = vld [vmem:[#allocation4 + $0x18c] sm:$0xf]
      %v5758 = vld [vmem:[#allocation4 + $0x190] sm:$0xff]
      %v5759 = vld [vmem:[#allocation4 + $0x198] sm:$0xff]
      %v5760 = vld [vmem:[#allocation4 + $0x1a0] sm:$0xf]
      %v5761 = vld [vmem:[#allocation4 + $0x1a4] sm:$0xff]
      %v5762 = vld [vmem:[#allocation4 + $0x1ac] sm:$0xff]
      %v5763 = vld [vmem:[#allocation4 + $0x1b4] sm:$0xf]
      %v5764 = vld [vmem:[#allocation4 + $0x1b8] sm:$0xff]
      %v5765 = vld [vmem:[#allocation4 + $0x1c0] sm:$0xff]
      %v5766 = vld [vmem:[#allocation4 + $0x1c8] sm:$0xf]
      %v5767 = vld [vmem:[#allocation4 + $0x1cc] sm:$0xff]
      %v5768 = vld [vmem:[#allocation4 + $0x1d4] sm:$0xff]
      %v5769 = vld [vmem:[#allocation4 + $0x1dc] sm:$0xf]
      %v5770 = vld [vmem:[#allocation4 + $0x1e0] sm:$0xff]
      %v5771 = vld [vmem:[#allocation4 + $0x1e8] sm:$0xff]
      %v5772 = vld [vmem:[#allocation4 + $0x1f0] sm:$0xf]
      %v5773 = vld [vmem:[#allocation4 + $0x1f4] sm:$0xff]
      %v5774 = vld [vmem:[#allocation4 + $0x1fc] sm:$0xff]
      %v5775 = vld [vmem:[#allocation4 + $0x204] sm:$0xf]
      %v5776 = vld [vmem:[#allocation4 + $0x208] sm:$0xff]
      %v5777 = vld [vmem:[#allocation4 + $0x210] sm:$0xff]
      %v5778 = vld [vmem:[#allocation4 + $0x218] sm:$0xf]
      %v5779 = vld [vmem:[#allocation4 + $0x21c] sm:$0xff]
      %v5780 = vld [vmem:[#allocation4 + $0x224] sm:$0xff]
      %v5781 = vld [vmem:[#allocation4 + $0x22c] sm:$0xf]
      %v5782 = vld [vmem:[#allocation4 + $0x230] sm:$0xff]
      %v5783 = vld [vmem:[#allocation4 + $0x238] sm:$0xff]
      %v5784 = vld [vmem:[#allocation4 + $0x240] sm:$0xf]
      %v5785 = vld [vmem:[#allocation4 + $0x244] sm:$0xff]
      %v5786 = vld [vmem:[#allocation4 + $0x24c] sm:$0xff]
      %v5787 = vld [vmem:[#allocation4 + $0x254] sm:$0xf]
      %v5788 = vld [vmem:[#allocation4 + $0x258] sm:$0xff]
      %v5789 = vld [vmem:[#allocation4 + $0x260] sm:$0xff]
      %v5790 = vld [vmem:[#allocation4 + $0x268] sm:$0xf]
      %v5791 = vld [vmem:[#allocation4 + $0x26c] sm:$0xff]
      %v5792 = vld [vmem:[#allocation4 + $0x274] sm:$0xff]
      %v5793 = vld [vmem:[#allocation4 + $0x27c] sm:$0xf]
      %v5794 = vld [vmem:[%s2] sm:$0xf]
      %v5795 = vld [vmem:[%s2 + $0x4] sm:$0xf]
      %v5796 = vld [vmem:[%s2 + $0x8] sm:$0xf]
      %v5797 = vld [vmem:[%s2 + $0xc] sm:$0xf]
      %v5798 = vld [vmem:[%s2 + $0x10] sm:$0xf]
      %v5799 = vld [vmem:[%s2 + $0x14] sm:$0xf]
      %v5800 = vld [vmem:[%s2 + $0x18] sm:$0xf]
      %v5801 = vld [vmem:[%s2 + $0x1c] sm:$0xf]
      %v5802 = vld [vmem:[%s2 + $0x20] sm:$0xf]
      %v5803 = vld [vmem:[%s2 + $0x24] sm:$0xf]
      %v5804 = vld [vmem:[%s2 + $0x28] sm:$0xf]
      %v5805 = vld [vmem:[%s2 + $0x2c] sm:$0xf]
      %v5806 = vld [vmem:[%s2 + $0x30] sm:$0xf]
      %v5807 = vld [vmem:[%s2 + $0x34] sm:$0xf]
      %v5808 = vld [vmem:[%s2 + $0x38] sm:$0xf]
      %v5809 = vld [vmem:[%s2 + $0x3c] sm:$0xf]
      %v5810 = vld [vmem:[%s2 + $0x40] sm:$0xf]
      %v5811 = vld [vmem:[%s2 + $0x44] sm:$0xf]
      %v5812 = vld [vmem:[%s2 + $0x48] sm:$0xf]
      %v5813 = vld [vmem:[%s2 + $0x4c] sm:$0xf]
      %v5814 = vld [vmem:[%s2 + $0x50] sm:$0xf]
      %v5815 = vld [vmem:[%s2 + $0x54] sm:$0xf]
      %v5816 = vld [vmem:[%s2 + $0x58] sm:$0xf]
      %v5817 = vld [vmem:[%s2 + $0x5c] sm:$0xf]
      %v5818 = vld [vmem:[%s2 + $0x60] sm:$0xf]
      %v5819 = vld [vmem:[%s2 + $0x64] sm:$0xf]
      %v5820 = vld [vmem:[%s2 + $0x68] sm:$0xf]
      %v5821 = vld [vmem:[%s2 + $0x6c] sm:$0xf]
      %v5822 = vld [vmem:[%s2 + $0x70] sm:$0xf]
      %v5823 = vld [vmem:[%s2 + $0x74] sm:$0xf]
      %v5824 = vld [vmem:[%s2 + $0x78] sm:$0xf]
      %v5825 = vld [vmem:[%s2 + $0x7c] sm:$0xf]
      %v5826 = vld [vmem:[%s2 + $0x80] sm:$0xf]
      %v5827 = vld [vmem:[%s2 + $0x84] sm:$0xf]
      %v5828 = vld [vmem:[%s2 + $0x88] sm:$0xf]
      %v5829 = vld [vmem:[%s2 + $0x8c] sm:$0xf]
      %v5830 = vld [vmem:[%s2 + $0x90] sm:$0xf]
      %v5831 = vld [vmem:[%s2 + $0x94] sm:$0xf]
      %v5832 = vld [vmem:[%s2 + $0x98] sm:$0xf]
      %v5833 = vld [vmem:[%s2 + $0x9c] sm:$0xf]
      %v5834 = vld [vmem:[%s2 + $0xa0] sm:$0xf]
      %v5835 = vld [vmem:[%s2 + $0xa4] sm:$0xf]
      %v5836 = vld [vmem:[%s2 + $0xa8] sm:$0xf]
      %v5837 = vld [vmem:[%s2 + $0xac] sm:$0xf]
      %v5838 = vld [vmem:[%s2 + $0xb0] sm:$0xf]
      %v5839 = vld [vmem:[%s2 + $0xb4] sm:$0xf]
      %v5840 = vld [vmem:[%s2 + $0xb8] sm:$0xf]
      %v5841 = vld [vmem:[%s2 + $0xbc] sm:$0xf]
      %v5842 = vld [vmem:[%s2 + $0xc0] sm:$0xf]
      %v5843 = vld [vmem:[%s2 + $0xc4] sm:$0xf]
      %v5844 = vld [vmem:[%s2 + $0xc8] sm:$0xf]
      %v5845 = vld [vmem:[%s2 + $0xcc] sm:$0xf]
      %v5846 = vld [vmem:[%s2 + $0xd0] sm:$0xf]
      %v5847 = vld [vmem:[%s2 + $0xd4] sm:$0xf]
      %v5848 = vld [vmem:[%s2 + $0xd8] sm:$0xf]
      %v5849 = vld [vmem:[%s2 + $0xdc] sm:$0xf]
      %v5850 = vld [vmem:[%s2 + $0xe0] sm:$0xf]
      %v5851 = vld [vmem:[%s2 + $0xe4] sm:$0xf]
      %v5852 = vld [vmem:[%s2 + $0xe8] sm:$0xf]
      %v5853 = vld [vmem:[%s2 + $0xec] sm:$0xf]
      %v5854 = vld [vmem:[%s2 + $0xf0] sm:$0xf]
      %v5855 = vld [vmem:[%s2 + $0xf4] sm:$0xf]
      %v5856 = vld [vmem:[%s2 + $0xf8] sm:$0xf]
      %v5857 = vld [vmem:[%s2 + $0xfc] sm:$0xf]
      %v5858 = vld [vmem:[%s2 + $0x100] sm:$0xf]
      %v5859 = vld [vmem:[%s2 + $0x104] sm:$0xf]
      %v5860 = vld [vmem:[%s2 + $0x108] sm:$0xf]
      %v5861 = vld [vmem:[%s2 + $0x10c] sm:$0xf]
      %v5862 = vld [vmem:[%s2 + $0x110] sm:$0xf]
      %v5863 = vld [vmem:[%s2 + $0x114] sm:$0xf]
      %v5864 = vld [vmem:[%s2 + $0x118] sm:$0xf]
      %v5865 = vld [vmem:[%s2 + $0x11c] sm:$0xf]
      %v5866 = vperm.slane %v2359, 0
      %v5963 = vunpack.c.l.b16 %v5698
      %v5964 = vunpack.c.h.b16 %v5698
      %v5965 = vunpack.c.l.b16 %v5699
      %v5966 = vunpack.c.h.b16 %v5699
      %v5967 = vunpack.c.l.b16 %v5700
      %v5968 = vunpack.c.l.b16 %v5701
      %v5969 = vunpack.c.h.b16 %v5701
      %v5970 = vunpack.c.l.b16 %v5702
      %v5971 = vunpack.c.h.b16 %v5702
      %v5972 = vunpack.c.l.b16 %v5703
      %v5973 = vunpack.c.l.b16 %v5704
      %v5974 = vunpack.c.h.b16 %v5704
      %v5975 = vunpack.c.l.b16 %v5705
      %v5976 = vunpack.c.h.b16 %v5705
      %v5977 = vunpack.c.l.b16 %v5706
      %v5978 = vunpack.c.l.b16 %v5707
      %v5979 = vunpack.c.h.b16 %v5707
      %v5980 = vunpack.c.l.b16 %v5708
      %v5981 = vunpack.c.h.b16 %v5708
      %v5982 = vunpack.c.l.b16 %v5709
      %v5983 = vunpack.c.l.b16 %v5710
      %v5984 = vunpack.c.h.b16 %v5710
      %v5985 = vunpack.c.l.b16 %v5711
      %v5986 = vunpack.c.h.b16 %v5711
      %v5987 = vunpack.c.l.b16 %v5712
      %v5988 = vunpack.c.l.b16 %v5713
      %v5989 = vunpack.c.h.b16 %v5713
      %v5990 = vunpack.c.l.b16 %v5714
      %v5991 = vunpack.c.h.b16 %v5714
      %v5992 = vunpack.c.l.b16 %v5715
      %v5993 = vunpack.c.l.b16 %v5716
      %v5994 = vunpack.c.h.b16 %v5716
      %v5995 = vunpack.c.l.b16 %v5717
      %v5996 = vunpack.c.h.b16 %v5717
      %v5997 = vunpack.c.l.b16 %v5718
      %v5998 = vunpack.c.l.b16 %v5719
      %v5999 = vunpack.c.h.b16 %v5719
      %v6000 = vunpack.c.l.b16 %v5720
      %v6001 = vunpack.c.h.b16 %v5720
      %v6002 = vunpack.c.l.b16 %v5721
      %v6003 = vunpack.c.l.b16 %v5722
      %v6004 = vunpack.c.h.b16 %v5722
      %v6005 = vunpack.c.l.b16 %v5723
      %v6006 = vunpack.c.h.b16 %v5723
      %v6007 = vunpack.c.l.b16 %v5724
      %v6008 = vunpack.c.l.b16 %v5725
      %v6009 = vunpack.c.h.b16 %v5725
      %v6010 = vunpack.c.l.b16 %v5726
      %v6011 = vunpack.c.h.b16 %v5726
      %v6012 = vunpack.c.l.b16 %v5727
      %v6013 = vunpack.c.l.b16 %v5728
      %v6014 = vunpack.c.h.b16 %v5728
      %v6015 = vunpack.c.l.b16 %v5729
      %v6016 = vunpack.c.h.b16 %v5729
      %v6017 = vunpack.c.l.b16 %v5730
      %v6018 = vunpack.c.l.b16 %v5731
      %v6019 = vunpack.c.h.b16 %v5731
      %v6020 = vunpack.c.l.b16 %v5732
      %v6021 = vunpack.c.h.b16 %v5732
      %v6022 = vunpack.c.l.b16 %v5733
      %v6023 = vunpack.c.l.b16 %v5734
      %v6024 = vunpack.c.h.b16 %v5734
      %v6025 = vunpack.c.l.b16 %v5735
      %v6026 = vunpack.c.h.b16 %v5735
      %v6027 = vunpack.c.l.b16 %v5736
      %v6028 = vunpack.c.l.b16 %v5737
      %v6029 = vunpack.c.h.b16 %v5737
      %v6030 = vunpack.c.l.b16 %v5738
      %v6031 = vunpack.c.h.b16 %v5738
      %v6032 = vunpack.c.l.b16 %v5739
      %v6033 = vunpack.c.l.b16 %v5740
      %v6034 = vunpack.c.h.b16 %v5740
      %v6035 = vunpack.c.l.b16 %v5741
      %v6036 = vunpack.c.h.b16 %v5741
      %v6037 = vunpack.c.l.b16 %v5742
      %v6038 = vunpack.c.l.b16 %v5743
      %v6039 = vunpack.c.h.b16 %v5743
      %v6040 = vunpack.c.l.b16 %v5744
      %v6041 = vunpack.c.h.b16 %v5744
      %v6042 = vunpack.c.l.b16 %v5745
      %v6043 = vunpack.c.l.b16 %v5746
      %v6044 = vunpack.c.h.b16 %v5746
      %v6045 = vunpack.c.l.b16 %v5747
      %v6046 = vunpack.c.h.b16 %v5747
      %v6047 = vunpack.c.l.b16 %v5748
      %v6048 = vunpack.c.l.b16 %v5749
      %v6049 = vunpack.c.h.b16 %v5749
      %v6050 = vunpack.c.l.b16 %v5750
      %v6051 = vunpack.c.h.b16 %v5750
      %v6052 = vunpack.c.l.b16 %v5751
      %v6053 = vunpack.c.l.b16 %v5752
      %v6054 = vunpack.c.h.b16 %v5752
      %v6055 = vunpack.c.l.b16 %v5753
      %v6056 = vunpack.c.h.b16 %v5753
      %v6057 = vunpack.c.l.b16 %v5754
      %v6058 = vunpack.c.l.b16 %v5755
      %v6059 = vunpack.c.h.b16 %v5755
      %v6060 = vunpack.c.l.b16 %v5756
      %v6061 = vunpack.c.h.b16 %v5756
      %v6062 = vunpack.c.l.b16 %v5757
      %v6063 = vunpack.c.l.b16 %v5758
      %v6064 = vunpack.c.h.b16 %v5758
      %v6065 = vunpack.c.l.b16 %v5759
      %v6066 = vunpack.c.h.b16 %v5759
      %v6067 = vunpack.c.l.b16 %v5760
      %v6068 = vunpack.c.l.b16 %v5761
      %v6069 = vunpack.c.h.b16 %v5761
      %v6070 = vunpack.c.l.b16 %v5762
      %v6071 = vunpack.c.h.b16 %v5762
      %v6072 = vunpack.c.l.b16 %v5763
      %v6073 = vunpack.c.l.b16 %v5764
      %v6074 = vunpack.c.h.b16 %v5764
      %v6075 = vunpack.c.l.b16 %v5765
      %v6076 = vunpack.c.h.b16 %v5765
      %v6077 = vunpack.c.l.b16 %v5766
      %v6078 = vunpack.c.l.b16 %v5767
      %v6079 = vunpack.c.h.b16 %v5767
      %v6080 = vunpack.c.l.b16 %v5768
      %v6081 = vunpack.c.h.b16 %v5768
      %v6082 = vunpack.c.l.b16 %v5769
      %v6083 = vunpack.c.l.b16 %v5770
      %v6084 = vunpack.c.h.b16 %v5770
      %v6085 = vunpack.c.l.b16 %v5771
      %v6086 = vunpack.c.h.b16 %v5771
      %v6087 = vunpack.c.l.b16 %v5772
      %v6088 = vunpack.c.l.b16 %v5773
      %v6089 = vunpack.c.h.b16 %v5773
      %v6090 = vunpack.c.l.b16 %v5774
      %v6091 = vunpack.c.h.b16 %v5774
      %v6092 = vunpack.c.l.b16 %v5775
      %v6093 = vunpack.c.l.b16 %v5776
      %v6094 = vunpack.c.h.b16 %v5776
      %v6095 = vunpack.c.l.b16 %v5777
      %v6096 = vunpack.c.h.b16 %v5777
      %v6097 = vunpack.c.l.b16 %v5778
      %v6098 = vunpack.c.l.b16 %v5779
      %v6099 = vunpack.c.h.b16 %v5779
      %v6100 = vunpack.c.l.b16 %v5780
      %v6101 = vunpack.c.h.b16 %v5780
      %v6102 = vunpack.c.l.b16 %v5781
      %v6103 = vunpack.c.l.b16 %v5782
      %v6104 = vunpack.c.h.b16 %v5782
      %v6105 = vunpack.c.l.b16 %v5783
      %v6106 = vunpack.c.h.b16 %v5783
      %v6107 = vunpack.c.l.b16 %v5784
      %v6108 = vunpack.c.l.b16 %v5785
      %v6109 = vunpack.c.h.b16 %v5785
      %v6110 = vunpack.c.l.b16 %v5786
      %v6111 = vunpack.c.h.b16 %v5786
      %v6112 = vunpack.c.l.b16 %v5787
      %v6113 = vunpack.c.l.b16 %v5788
      %v6114 = vunpack.c.h.b16 %v5788
      %v6115 = vunpack.c.l.b16 %v5789
      %v6116 = vunpack.c.h.b16 %v5789
      %v6117 = vunpack.c.l.b16 %v5790
      %v6118 = vunpack.c.l.b16 %v5791
      %v6119 = vunpack.c.h.b16 %v5791
      %v6120 = vunpack.c.l.b16 %v5792
      %v6121 = vunpack.c.h.b16 %v5792
      %v6122 = vunpack.c.l.b16 %v5793
      %v6123 = vpack.c.b16 %v5968, %v5963
      %v6124 = vpack.c.b16 %v5969, %v5964
      %v6125 = vpack.c.b16 %v5970, %v5965
      %v6126 = vpack.c.b16 %v5971, %v5966
      %v6127 = vpack.c.b16 %v5972, %v5967
      %v6128 = vpack.c.b16 %v5978, %v5973
      %v6129 = vpack.c.b16 %v5979, %v5974
      %v6130 = vpack.c.b16 %v5980, %v5975
      %v6131 = vpack.c.b16 %v5981, %v5976
      %v6132 = vpack.c.b16 %v5982, %v5977
      %v6133 = vpack.c.b16 %v5988, %v5983
      %v6134 = vpack.c.b16 %v5989, %v5984
      %v6135 = vpack.c.b16 %v5990, %v5985
      %v6136 = vpack.c.b16 %v5991, %v5986
      %v6137 = vpack.c.b16 %v5992, %v5987
      %v6138 = vpack.c.b16 %v5998, %v5993
      %v6139 = vpack.c.b16 %v5999, %v5994
      %v6140 = vpack.c.b16 %v6000, %v5995
      %v6141 = vpack.c.b16 %v6001, %v5996
      %v6142 = vpack.c.b16 %v6002, %v5997
      %v6143 = vpack.c.b16 %v6008, %v6003
      %v6144 = vpack.c.b16 %v6009, %v6004
      %v6145 = vpack.c.b16 %v6010, %v6005
      %v6146 = vpack.c.b16 %v6011, %v6006
      %v6147 = vpack.c.b16 %v6012, %v6007
      %v6148 = vpack.c.b16 %v6018, %v6013
      %v6149 = vpack.c.b16 %v6019, %v6014
      %v6150 = vpack.c.b16 %v6020, %v6015
      %v6151 = vpack.c.b16 %v6021, %v6016
      %v6152 = vpack.c.b16 %v6022, %v6017
      %v6153 = vpack.c.b16 %v6028, %v6023
      %v6154 = vpack.c.b16 %v6029, %v6024
      %v6155 = vpack.c.b16 %v6030, %v6025
      %v6156 = vpack.c.b16 %v6031, %v6026
      %v6157 = vpack.c.b16 %v6032, %v6027
      %v6158 = vpack.c.b16 %v6038, %v6033
      %v6159 = vpack.c.b16 %v6039, %v6034
      %v6160 = vpack.c.b16 %v6040, %v6035
      %v6161 = vpack.c.b16 %v6041, %v6036
      %v6162 = vpack.c.b16 %v6042, %v6037
      %v6163 = vpack.c.b16 %v6048, %v6043
      %v6164 = vpack.c.b16 %v6049, %v6044
      %v6165 = vpack.c.b16 %v6050, %v6045
      %v6166 = vpack.c.b16 %v6051, %v6046
      %v6167 = vpack.c.b16 %v6052, %v6047
      %v6168 = vpack.c.b16 %v6058, %v6053
      %v6169 = vpack.c.b16 %v6059, %v6054
      %v6170 = vpack.c.b16 %v6060, %v6055
      %v6171 = vpack.c.b16 %v6061, %v6056
      %v6172 = vpack.c.b16 %v6062, %v6057
      %v6173 = vpack.c.b16 %v6068, %v6063
      %v6174 = vpack.c.b16 %v6069, %v6064
      %v6175 = vpack.c.b16 %v6070, %v6065
      %v6176 = vpack.c.b16 %v6071, %v6066
      %v6177 = vpack.c.b16 %v6072, %v6067
      %v6178 = vpack.c.b16 %v6078, %v6073
      %v6179 = vpack.c.b16 %v6079, %v6074
      %v6180 = vpack.c.b16 %v6080, %v6075
      %v6181 = vpack.c.b16 %v6081, %v6076
      %v6182 = vpack.c.b16 %v6082, %v6077
      %v6183 = vpack.c.b16 %v6088, %v6083
      %v6184 = vpack.c.b16 %v6089, %v6084
      %v6185 = vpack.c.b16 %v6090, %v6085
      %v6186 = vpack.c.b16 %v6091, %v6086
      %v6187 = vpack.c.b16 %v6092, %v6087
      %v6188 = vpack.c.b16 %v6098, %v6093
      %v6189 = vpack.c.b16 %v6099, %v6094
      %v6190 = vpack.c.b16 %v6100, %v6095
      %v6191 = vpack.c.b16 %v6101, %v6096
      %v6192 = vpack.c.b16 %v6102, %v6097
      %v6193 = vpack.c.b16 %v6108, %v6103
      %v6194 = vpack.c.b16 %v6109, %v6104
      %v6195 = vpack.c.b16 %v6110, %v6105
      %v6196 = vpack.c.b16 %v6111, %v6106
      %v6197 = vpack.c.b16 %v6112, %v6107
      %v6198 = vpack.c.b16 %v6118, %v6113
      %v6199 = vpack.c.b16 %v6119, %v6114
      %v6200 = vpack.c.b16 %v6120, %v6115
      %v6201 = vpack.c.b16 %v6121, %v6116
      %v6202 = vpack.c.b16 %v6122, %v6117
      %v6339 = vunpack.c.l.b16 %v5794
      %v6340 = vunpack.c.l.b16 %v5795
      %v6341 = vunpack.c.l.b16 %v5796
      %v6342 = vunpack.c.l.b16 %v5797
      %v6343 = vunpack.c.l.b16 %v5798
      %v6344 = vunpack.c.l.b16 %v5799
      %v6345 = vunpack.c.l.b16 %v5800
      %v6346 = vunpack.c.l.b16 %v5801
      %v6347 = vunpack.c.l.b16 %v5802
      %v6348 = vunpack.c.l.b16 %v5803
      %v6349 = vunpack.c.l.b16 %v5804
      %v6350 = vunpack.c.l.b16 %v5805
      %v6351 = vunpack.c.l.b16 %v5806
      %v6352 = vunpack.c.l.b16 %v5807
      %v6353 = vunpack.c.l.b16 %v5808
      %v6354 = vunpack.c.l.b16 %v5809
      %v6355 = vunpack.c.l.b16 %v5810
      %v6356 = vunpack.c.l.b16 %v5811
      %v6357 = vunpack.c.l.b16 %v5812
      %v6358 = vunpack.c.l.b16 %v5813
      %v6359 = vunpack.c.l.b16 %v5814
      %v6360 = vunpack.c.l.b16 %v5815
      %v6361 = vunpack.c.l.b16 %v5816
      %v6362 = vunpack.c.l.b16 %v5817
      %v6363 = vunpack.c.l.b16 %v5818
      %v6364 = vunpack.c.l.b16 %v5819
      %v6365 = vunpack.c.l.b16 %v5820
      %v6366 = vunpack.c.l.b16 %v5821
      %v6367 = vunpack.c.l.b16 %v5822
      %v6368 = vunpack.c.l.b16 %v5823
      %v6369 = vunpack.c.l.b16 %v5824
      %v6370 = vunpack.c.l.b16 %v5825
      %v6371 = vunpack.c.l.b16 %v5826
      %v6372 = vunpack.c.l.b16 %v5827
      %v6373 = vunpack.c.l.b16 %v5828
      %v6374 = vunpack.c.l.b16 %v5829
      %v6375 = vunpack.c.l.b16 %v5830
      %v6376 = vunpack.c.l.b16 %v5831
      %v6377 = vunpack.c.l.b16 %v5832
      %v6378 = vunpack.c.l.b16 %v5833
      %v6379 = vunpack.c.l.b16 %v5834
      %v6380 = vunpack.c.l.b16 %v5835
      %v6381 = vunpack.c.l.b16 %v5836
      %v6382 = vunpack.c.l.b16 %v5837
      %v6383 = vunpack.c.l.b16 %v5838
      %v6384 = vunpack.c.l.b16 %v5839
      %v6385 = vunpack.c.l.b16 %v5840
      %v6386 = vunpack.c.l.b16 %v5841
      %v6387 = vunpack.c.l.b16 %v5842
      %v6388 = vunpack.c.l.b16 %v5843
      %v6389 = vunpack.c.l.b16 %v5844
      %v6390 = vunpack.c.l.b16 %v5845
      %v6391 = vunpack.c.l.b16 %v5846
      %v6392 = vunpack.c.l.b16 %v5847
      %v6393 = vunpack.c.l.b16 %v5848
      %v6394 = vunpack.c.l.b16 %v5849
      %v6395 = vunpack.c.l.b16 %v5850
      %v6396 = vunpack.c.l.b16 %v5851
      %v6397 = vunpack.c.l.b16 %v5852
      %v6398 = vunpack.c.l.b16 %v5853
      %v6399 = vunpack.c.l.b16 %v5854
      %v6400 = vunpack.c.l.b16 %v5855
      %v6401 = vunpack.c.l.b16 %v5856
      %v6402 = vunpack.c.l.b16 %v5857
      %v6403 = vunpack.c.l.b16 %v5858
      %v6404 = vunpack.c.l.b16 %v5859
      %v6405 = vunpack.c.l.b16 %v5860
      %v6406 = vunpack.c.l.b16 %v5861
      %v6407 = vunpack.c.l.b16 %v5862
      %v6408 = vunpack.c.l.b16 %v5863
      %v6409 = vunpack.c.l.b16 %v5864
      %v6410 = vunpack.c.l.b16 %v5865
      %v6411 = vpack.c.b16 %v6340, %v6339
      %v6412 = vpack.c.b16 %v6342, %v6341
      %v6413 = vpack.c.b16 %v6344, %v6343
      %v6414 = vpack.c.b16 %v6346, %v6345
      %v6415 = vpack.c.b16 %v6348, %v6347
      %v6416 = vpack.c.b16 %v6350, %v6349
      %v6417 = vpack.c.b16 %v6352, %v6351
      %v6418 = vpack.c.b16 %v6354, %v6353
      %v6419 = vpack.c.b16 %v6356, %v6355
      %v6420 = vpack.c.b16 %v6358, %v6357
      %v6421 = vpack.c.b16 %v6360, %v6359
      %v6422 = vpack.c.b16 %v6362, %v6361
      %v6423 = vpack.c.b16 %v6364, %v6363
      %v6424 = vpack.c.b16 %v6366, %v6365
      %v6425 = vpack.c.b16 %v6368, %v6367
      %v6426 = vpack.c.b16 %v6370, %v6369
      %v6427 = vpack.c.b16 %v6372, %v6371
      %v6428 = vpack.c.b16 %v6374, %v6373
      %v6429 = vpack.c.b16 %v6376, %v6375
      %v6430 = vpack.c.b16 %v6378, %v6377
      %v6431 = vpack.c.b16 %v6380, %v6379
      %v6432 = vpack.c.b16 %v6382, %v6381
      %v6433 = vpack.c.b16 %v6384, %v6383
      %v6434 = vpack.c.b16 %v6386, %v6385
      %v6435 = vpack.c.b16 %v6388, %v6387
      %v6436 = vpack.c.b16 %v6390, %v6389
      %v6437 = vpack.c.b16 %v6392, %v6391
      %v6438 = vpack.c.b16 %v6394, %v6393
      %v6439 = vpack.c.b16 %v6396, %v6395
      %v6440 = vpack.c.b16 %v6398, %v6397
      %v6441 = vpack.c.b16 %v6400, %v6399
      %v6442 = vpack.c.b16 %v6402, %v6401
      %v6443 = vpack.c.b16 %v6404, %v6403
      %v6444 = vpack.c.b16 %v6406, %v6405
      %v6445 = vpack.c.b16 %v6408, %v6407
      %v6446 = vpack.c.b16 %v6410, %v6409
      %v6484 = vsel %vm1687, %v6127, 0
      %v6487 = vsel %vm1687, %v6132, 0
      %v6490 = vsel %vm1687, %v6137, 0
      %v6493 = vsel %vm1687, %v6142, 0
      %v6496 = vsel %vm1687, %v6147, 0
      %v6499 = vsel %vm1687, %v6152, 0
      %v6502 = vsel %vm1687, %v6157, 0
      %v6505 = vsel %vm1687, %v6162, 0
      %v6508 = vsel %vm1687, %v6167, 0
      %v6511 = vsel %vm1687, %v6172, 0
      %v6514 = vsel %vm1687, %v6177, 0
      %v6517 = vsel %vm1687, %v6182, 0
      %v6520 = vsel %vm1687, %v6187, 0
      %v6523 = vsel %vm1687, %v6192, 0
      %v6526 = vsel %vm1687, %v6197, 0
      %v6529 = vsel %vm1687, %v6202, 0
      %6531 = vmatpush.bf16.msra.mxu0 %v6418
      %6532 = vmatpush.bf16.msra.mxu0 %v6417
      %6533 = vmatpush.bf16.msra.mxu0 %v6416
      %6534 = vmatpush.bf16.msra.mxu0 %v6415
      %6535 = vmatpush.bf16.msra.mxu0 %v6414
      %6536 = vmatpush.bf16.msra.mxu0 %v6413
      %6537 = vmatpush.bf16.msra.mxu0 %v6412
      %6538 = vmatpush.bf16.msra.mxu0 %v6411
      %6539 = vmatmul.bf16.gmra.mxu0 %v6123
      %v6540 = vpop.f32.mrf.mxu0
      %v6541 = vadd.f32 %v5866, %v6540
      %v6542 = vpop.f32.mrf.mxu0
      %v6543 = vadd.f32 %v5866, %v6542
      %6544 = vmatmul.bf16.gmra.mxu0 %v6128
      %v6545 = vpop.f32.mrf.mxu0
      %v6546 = vadd.f32 %v5866, %v6545
      %v6547 = vpop.f32.mrf.mxu0
      %v6548 = vadd.f32 %v5866, %v6547
      %6549 = vmatmul.bf16.gmra.mxu0 %v6133
      %v6550 = vpop.f32.mrf.mxu0
      %v6551 = vadd.f32 %v5866, %v6550
      %v6552 = vpop.f32.mrf.mxu0
      %v6553 = vadd.f32 %v5866, %v6552
      %6554 = vmatmul.bf16.gmra.mxu0 %v6138
      %v6555 = vpop.f32.mrf.mxu0
      %v6556 = vadd.f32 %v5866, %v6555
      %v6557 = vpop.f32.mrf.mxu0
      %v6558 = vadd.f32 %v5866, %v6557
      %6559 = vmatmul.bf16.gmra.mxu0 %v6143
      %v6560 = vpop.f32.mrf.mxu0
      %v6561 = vadd.f32 %v5866, %v6560
      %v6562 = vpop.f32.mrf.mxu0
      %v6563 = vadd.f32 %v5866, %v6562
      %6564 = vmatmul.bf16.gmra.mxu0 %v6148
      %v6565 = vpop.f32.mrf.mxu0
      %v6566 = vadd.f32 %v5866, %v6565
      %v6567 = vpop.f32.mrf.mxu0
      %v6568 = vadd.f32 %v5866, %v6567
      %6569 = vmatmul.bf16.gmra.mxu0 %v6153
      %v6570 = vpop.f32.mrf.mxu0
      %v6571 = vadd.f32 %v5866, %v6570
      %v6572 = vpop.f32.mrf.mxu0
      %v6573 = vadd.f32 %v5866, %v6572
      %6574 = vmatmul.bf16.gmra.mxu0 %v6158
      %v6575 = vpop.f32.mrf.mxu0
      %v6576 = vadd.f32 %v5866, %v6575
      %v6577 = vpop.f32.mrf.mxu0
      %v6578 = vadd.f32 %v5866, %v6577
      %6579 = vmatmul.bf16.gmra.mxu0 %v6163
      %v6580 = vpop.f32.mrf.mxu0
      %v6581 = vadd.f32 %v5866, %v6580
      %v6582 = vpop.f32.mrf.mxu0
      %v6583 = vadd.f32 %v5866, %v6582
      %6584 = vmatmul.bf16.gmra.mxu0 %v6168
      %v6585 = vpop.f32.mrf.mxu0
      %v6586 = vadd.f32 %v5866, %v6585
      %v6587 = vpop.f32.mrf.mxu0
      %v6588 = vadd.f32 %v5866, %v6587
      %6589 = vmatmul.bf16.gmra.mxu0 %v6173
      %v6590 = vpop.f32.mrf.mxu0
      %v6591 = vadd.f32 %v5866, %v6590
      %v6592 = vpop.f32.mrf.mxu0
      %v6593 = vadd.f32 %v5866, %v6592
      %6594 = vmatmul.bf16.gmra.mxu0 %v6178
      %v6595 = vpop.f32.mrf.mxu0
      %v6596 = vadd.f32 %v5866, %v6595
      %v6597 = vpop.f32.mrf.mxu0
      %v6598 = vadd.f32 %v5866, %v6597
      %6599 = vmatmul.bf16.gmra.mxu0 %v6183
      %v6600 = vpop.f32.mrf.mxu0
      %v6601 = vadd.f32 %v5866, %v6600
      %v6602 = vpop.f32.mrf.mxu0
      %v6603 = vadd.f32 %v5866, %v6602
      %6604 = vmatmul.bf16.gmra.mxu0 %v6188
      %v6605 = vpop.f32.mrf.mxu0
      %v6606 = vadd.f32 %v5866, %v6605
      %v6607 = vpop.f32.mrf.mxu0
      %v6608 = vadd.f32 %v5866, %v6607
      %6609 = vmatmul.bf16.gmra.mxu0 %v6193
      %v6610 = vpop.f32.mrf.mxu0
      %v6611 = vadd.f32 %v5866, %v6610
      %v6612 = vpop.f32.mrf.mxu0
      %v6613 = vadd.f32 %v5866, %v6612
      %6614 = vmatmul.bf16.gmra.mxu0 %v6198
      %v6615 = vpop.f32.mrf.mxu0
      %v6616 = vadd.f32 %v5866, %v6615
      %v6617 = vpop.f32.mrf.mxu0
      %v6618 = vadd.f32 %v5866, %v6617
      %6619 = vdwg.mxu0
      %6620 = vmatpush.bf16.msra.mxu0 %v6426
      %6621 = vmatpush.bf16.msra.mxu0 %v6425
      %6622 = vmatpush.bf16.msra.mxu0 %v6424
      %6623 = vmatpush.bf16.msra.mxu0 %v6423
      %6624 = vmatpush.bf16.msra.mxu0 %v6422
      %6625 = vmatpush.bf16.msra.mxu0 %v6421
      %6626 = vmatpush.bf16.msra.mxu0 %v6420
      %6627 = vmatpush.bf16.msra.mxu0 %v6419
      %6628 = vmatmul.bf16.gmra.mxu0 %v6124
      %v6629 = vpop.f32.mrf.mxu0
      %v6630 = vadd.f32 %v6541, %v6629
      %v6631 = vpop.f32.mrf.mxu0
      %v6632 = vadd.f32 %v6543, %v6631
      %6633 = vmatmul.bf16.gmra.mxu0 %v6129
      %v6634 = vpop.f32.mrf.mxu0
      %v6635 = vadd.f32 %v6546, %v6634
      %v6636 = vpop.f32.mrf.mxu0
      %v6637 = vadd.f32 %v6548, %v6636
      %6638 = vmatmul.bf16.gmra.mxu0 %v6134
      %v6639 = vpop.f32.mrf.mxu0
      %v6640 = vadd.f32 %v6551, %v6639
      %v6641 = vpop.f32.mrf.mxu0
      %v6642 = vadd.f32 %v6553, %v6641
      %6643 = vmatmul.bf16.gmra.mxu0 %v6139
      %v6644 = vpop.f32.mrf.mxu0
      %v6645 = vadd.f32 %v6556, %v6644
      %v6646 = vpop.f32.mrf.mxu0
      %v6647 = vadd.f32 %v6558, %v6646
      %6648 = vmatmul.bf16.gmra.mxu0 %v6144
      %v6649 = vpop.f32.mrf.mxu0
      %v6650 = vadd.f32 %v6561, %v6649
      %v6651 = vpop.f32.mrf.mxu0
      %v6652 = vadd.f32 %v6563, %v6651
      %6653 = vmatmul.bf16.gmra.mxu0 %v6149
      %v6654 = vpop.f32.mrf.mxu0
      %v6655 = vadd.f32 %v6566, %v6654
      %v6656 = vpop.f32.mrf.mxu0
      %v6657 = vadd.f32 %v6568, %v6656
      %6658 = vmatmul.bf16.gmra.mxu0 %v6154
      %v6659 = vpop.f32.mrf.mxu0
      %v6660 = vadd.f32 %v6571, %v6659
      %v6661 = vpop.f32.mrf.mxu0
      %v6662 = vadd.f32 %v6573, %v6661
      %6663 = vmatmul.bf16.gmra.mxu0 %v6159
      %v6664 = vpop.f32.mrf.mxu0
      %v6665 = vadd.f32 %v6576, %v6664
      %v6666 = vpop.f32.mrf.mxu0
      %v6667 = vadd.f32 %v6578, %v6666
      %6668 = vmatmul.bf16.gmra.mxu0 %v6164
      %v6669 = vpop.f32.mrf.mxu0
      %v6670 = vadd.f32 %v6581, %v6669
      %v6671 = vpop.f32.mrf.mxu0
      %v6672 = vadd.f32 %v6583, %v6671
      %6673 = vmatmul.bf16.gmra.mxu0 %v6169
      %v6674 = vpop.f32.mrf.mxu0
      %v6675 = vadd.f32 %v6586, %v6674
      %v6676 = vpop.f32.mrf.mxu0
      %v6677 = vadd.f32 %v6588, %v6676
      %6678 = vmatmul.bf16.gmra.mxu0 %v6174
      %v6679 = vpop.f32.mrf.mxu0
      %v6680 = vadd.f32 %v6591, %v6679
      %v6681 = vpop.f32.mrf.mxu0
      %v6682 = vadd.f32 %v6593, %v6681
      %6683 = vmatmul.bf16.gmra.mxu0 %v6179
      %v6684 = vpop.f32.mrf.mxu0
      %v6685 = vadd.f32 %v6596, %v6684
      %v6686 = vpop.f32.mrf.mxu0
      %v6687 = vadd.f32 %v6598, %v6686
      %6688 = vmatmul.bf16.gmra.mxu0 %v6184
      %v6689 = vpop.f32.mrf.mxu0
      %v6690 = vadd.f32 %v6601, %v6689
      %v6691 = vpop.f32.mrf.mxu0
      %v6692 = vadd.f32 %v6603, %v6691
      %6693 = vmatmul.bf16.gmra.mxu0 %v6189
      %v6694 = vpop.f32.mrf.mxu0
      %v6695 = vadd.f32 %v6606, %v6694
      %v6696 = vpop.f32.mrf.mxu0
      %v6697 = vadd.f32 %v6608, %v6696
      %6698 = vmatmul.bf16.gmra.mxu0 %v6194
      %v6699 = vpop.f32.mrf.mxu0
      %v6700 = vadd.f32 %v6611, %v6699
      %v6701 = vpop.f32.mrf.mxu0
      %v6702 = vadd.f32 %v6613, %v6701
      %6703 = vmatmul.bf16.gmra.mxu0 %v6199
      %v6704 = vpop.f32.mrf.mxu0
      %v6705 = vadd.f32 %v6616, %v6704
      %v6706 = vpop.f32.mrf.mxu0
      %v6707 = vadd.f32 %v6618, %v6706
      %6708 = vdwg.mxu0
      %6709 = vmatpush.bf16.msra.mxu0 %v6434
      %6710 = vmatpush.bf16.msra.mxu0 %v6433
      %6711 = vmatpush.bf16.msra.mxu0 %v6432
      %6712 = vmatpush.bf16.msra.mxu0 %v6431
      %6713 = vmatpush.bf16.msra.mxu0 %v6430
      %6714 = vmatpush.bf16.msra.mxu0 %v6429
      %6715 = vmatpush.bf16.msra.mxu0 %v6428
      %6716 = vmatpush.bf16.msra.mxu0 %v6427
      %6717 = vmatmul.bf16.gmra.mxu0 %v6125
      %v6718 = vpop.f32.mrf.mxu0
      %v6719 = vadd.f32 %v6630, %v6718
      %v6720 = vpop.f32.mrf.mxu0
      %v6721 = vadd.f32 %v6632, %v6720
      %6722 = vmatmul.bf16.gmra.mxu0 %v6130
      %v6723 = vpop.f32.mrf.mxu0
      %v6724 = vadd.f32 %v6635, %v6723
      %v6725 = vpop.f32.mrf.mxu0
      %v6726 = vadd.f32 %v6637, %v6725
      %6727 = vmatmul.bf16.gmra.mxu0 %v6135
      %v6728 = vpop.f32.mrf.mxu0
      %v6729 = vadd.f32 %v6640, %v6728
      %v6730 = vpop.f32.mrf.mxu0
      %v6731 = vadd.f32 %v6642, %v6730
      %6732 = vmatmul.bf16.gmra.mxu0 %v6140
      %v6733 = vpop.f32.mrf.mxu0
      %v6734 = vadd.f32 %v6645, %v6733
      %v6735 = vpop.f32.mrf.mxu0
      %v6736 = vadd.f32 %v6647, %v6735
      %6737 = vmatmul.bf16.gmra.mxu0 %v6145
      %v6738 = vpop.f32.mrf.mxu0
      %v6739 = vadd.f32 %v6650, %v6738
      %v6740 = vpop.f32.mrf.mxu0
      %v6741 = vadd.f32 %v6652, %v6740
      %6742 = vmatmul.bf16.gmra.mxu0 %v6150
      %v6743 = vpop.f32.mrf.mxu0
      %v6744 = vadd.f32 %v6655, %v6743
      %v6745 = vpop.f32.mrf.mxu0
      %v6746 = vadd.f32 %v6657, %v6745
      %6747 = vmatmul.bf16.gmra.mxu0 %v6155
      %v6748 = vpop.f32.mrf.mxu0
      %v6749 = vadd.f32 %v6660, %v6748
      %v6750 = vpop.f32.mrf.mxu0
      %v6751 = vadd.f32 %v6662, %v6750
      %6752 = vmatmul.bf16.gmra.mxu0 %v6160
      %v6753 = vpop.f32.mrf.mxu0
      %v6754 = vadd.f32 %v6665, %v6753
      %v6755 = vpop.f32.mrf.mxu0
      %v6756 = vadd.f32 %v6667, %v6755
      %6757 = vmatmul.bf16.gmra.mxu0 %v6165
      %v6758 = vpop.f32.mrf.mxu0
      %v6759 = vadd.f32 %v6670, %v6758
      %v6760 = vpop.f32.mrf.mxu0
      %v6761 = vadd.f32 %v6672, %v6760
      %6762 = vmatmul.bf16.gmra.mxu0 %v6170
      %v6763 = vpop.f32.mrf.mxu0
      %v6764 = vadd.f32 %v6675, %v6763
      %v6765 = vpop.f32.mrf.mxu0
      %v6766 = vadd.f32 %v6677, %v6765
      %6767 = vmatmul.bf16.gmra.mxu0 %v6175
      %v6768 = vpop.f32.mrf.mxu0
      %v6769 = vadd.f32 %v6680, %v6768
      %v6770 = vpop.f32.mrf.mxu0
      %v6771 = vadd.f32 %v6682, %v6770
      %6772 = vmatmul.bf16.gmra.mxu0 %v6180
      %v6773 = vpop.f32.mrf.mxu0
      %v6774 = vadd.f32 %v6685, %v6773
      %v6775 = vpop.f32.mrf.mxu0
      %v6776 = vadd.f32 %v6687, %v6775
      %6777 = vmatmul.bf16.gmra.mxu0 %v6185
      %v6778 = vpop.f32.mrf.mxu0
      %v6779 = vadd.f32 %v6690, %v6778
      %v6780 = vpop.f32.mrf.mxu0
      %v6781 = vadd.f32 %v6692, %v6780
      %6782 = vmatmul.bf16.gmra.mxu0 %v6190
      %v6783 = vpop.f32.mrf.mxu0
      %v6784 = vadd.f32 %v6695, %v6783
      %v6785 = vpop.f32.mrf.mxu0
      %v6786 = vadd.f32 %v6697, %v6785
      %6787 = vmatmul.bf16.gmra.mxu0 %v6195
      %v6788 = vpop.f32.mrf.mxu0
      %v6789 = vadd.f32 %v6700, %v6788
      %v6790 = vpop.f32.mrf.mxu0
      %v6791 = vadd.f32 %v6702, %v6790
      %6792 = vmatmul.bf16.gmra.mxu0 %v6200
      %v6793 = vpop.f32.mrf.mxu0
      %v6794 = vadd.f32 %v6705, %v6793
      %v6795 = vpop.f32.mrf.mxu0
      %v6796 = vadd.f32 %v6707, %v6795
      %6797 = vdwg.mxu0
      %6798 = vmatpush.bf16.msra.mxu0 %v6442
      %6799 = vmatpush.bf16.msra.mxu0 %v6441
      %6800 = vmatpush.bf16.msra.mxu0 %v6440
      %6801 = vmatpush.bf16.msra.mxu0 %v6439
      %6802 = vmatpush.bf16.msra.mxu0 %v6438
      %6803 = vmatpush.bf16.msra.mxu0 %v6437
      %6804 = vmatpush.bf16.msra.mxu0 %v6436
      %6805 = vmatpush.bf16.msra.mxu0 %v6435
      %6806 = vmatmul.bf16.gmra.mxu0 %v6126
      %v6807 = vpop.f32.mrf.mxu0
      %v6808 = vadd.f32 %v6719, %v6807
      %v6809 = vpop.f32.mrf.mxu0
      %v6810 = vadd.f32 %v6721, %v6809
      %6811 = vmatmul.bf16.gmra.mxu0 %v6131
      %v6812 = vpop.f32.mrf.mxu0
      %v6813 = vadd.f32 %v6724, %v6812
      %v6814 = vpop.f32.mrf.mxu0
      %v6815 = vadd.f32 %v6726, %v6814
      %6816 = vmatmul.bf16.gmra.mxu0 %v6136
      %v6817 = vpop.f32.mrf.mxu0
      %v6818 = vadd.f32 %v6729, %v6817
      %v6819 = vpop.f32.mrf.mxu0
      %v6820 = vadd.f32 %v6731, %v6819
      %6821 = vmatmul.bf16.gmra.mxu0 %v6141
      %v6822 = vpop.f32.mrf.mxu0
      %v6823 = vadd.f32 %v6734, %v6822
      %v6824 = vpop.f32.mrf.mxu0
      %v6825 = vadd.f32 %v6736, %v6824
      %6826 = vmatmul.bf16.gmra.mxu0 %v6146
      %v6827 = vpop.f32.mrf.mxu0
      %v6828 = vadd.f32 %v6739, %v6827
      %v6829 = vpop.f32.mrf.mxu0
      %v6830 = vadd.f32 %v6741, %v6829
      %6831 = vmatmul.bf16.gmra.mxu0 %v6151
      %v6832 = vpop.f32.mrf.mxu0
      %v6833 = vadd.f32 %v6744, %v6832
      %v6834 = vpop.f32.mrf.mxu0
      %v6835 = vadd.f32 %v6746, %v6834
      %6836 = vmatmul.bf16.gmra.mxu0 %v6156
      %v6837 = vpop.f32.mrf.mxu0
      %v6838 = vadd.f32 %v6749, %v6837
      %v6839 = vpop.f32.mrf.mxu0
      %v6840 = vadd.f32 %v6751, %v6839
      %6841 = vmatmul.bf16.gmra.mxu0 %v6161
      %v6842 = vpop.f32.mrf.mxu0
      %v6843 = vadd.f32 %v6754, %v6842
      %v6844 = vpop.f32.mrf.mxu0
      %v6845 = vadd.f32 %v6756, %v6844
      %6846 = vmatmul.bf16.gmra.mxu0 %v6166
      %v6847 = vpop.f32.mrf.mxu0
      %v6848 = vadd.f32 %v6759, %v6847
      %v6849 = vpop.f32.mrf.mxu0
      %v6850 = vadd.f32 %v6761, %v6849
      %6851 = vmatmul.bf16.gmra.mxu0 %v6171
      %v6852 = vpop.f32.mrf.mxu0
      %v6853 = vadd.f32 %v6764, %v6852
      %v6854 = vpop.f32.mrf.mxu0
      %v6855 = vadd.f32 %v6766, %v6854
      %6856 = vmatmul.bf16.gmra.mxu0 %v6176
      %v6857 = vpop.f32.mrf.mxu0
      %v6858 = vadd.f32 %v6769, %v6857
      %v6859 = vpop.f32.mrf.mxu0
      %v6860 = vadd.f32 %v6771, %v6859
      %6861 = vmatmul.bf16.gmra.mxu0 %v6181
      %v6862 = vpop.f32.mrf.mxu0
      %v6863 = vadd.f32 %v6774, %v6862
      %v6864 = vpop.f32.mrf.mxu0
      %v6865 = vadd.f32 %v6776, %v6864
      %6866 = vmatmul.bf16.gmra.mxu0 %v6186
      %v6867 = vpop.f32.mrf.mxu0
      %v6868 = vadd.f32 %v6779, %v6867
      %v6869 = vpop.f32.mrf.mxu0
      %v6870 = vadd.f32 %v6781, %v6869
      %6871 = vmatmul.bf16.gmra.mxu0 %v6191
      %v6872 = vpop.f32.mrf.mxu0
      %v6873 = vadd.f32 %v6784, %v6872
      %v6874 = vpop.f32.mrf.mxu0
      %v6875 = vadd.f32 %v6786, %v6874
      %6876 = vmatmul.bf16.gmra.mxu0 %v6196
      %v6877 = vpop.f32.mrf.mxu0
      %v6878 = vadd.f32 %v6789, %v6877
      %v6879 = vpop.f32.mrf.mxu0
      %v6880 = vadd.f32 %v6791, %v6879
      %6881 = vmatmul.bf16.gmra.mxu0 %v6201
      %v6882 = vpop.f32.mrf.mxu0
      %v6883 = vadd.f32 %v6794, %v6882
      %v6884 = vpop.f32.mrf.mxu0
      %v6885 = vadd.f32 %v6796, %v6884
      %6886 = vdwg.mxu0
      %6887 = vmatpush.bf16.msra.mxu0 0
      %6888 = vmatpush.bf16.msra.mxu0 0
      %6889 = vmatpush.bf16.msra.mxu0 0
      %6890 = vmatpush.bf16.msra.mxu0 0
      %6891 = vmatpush.bf16.msra.mxu0 %v6446
      %6892 = vmatpush.bf16.msra.mxu0 %v6445
      %6893 = vmatpush.bf16.msra.mxu0 %v6444
      %6894 = vmatpush.bf16.msra.mxu0 %v6443
      %6895 = vmatmul.bf16.gmra.mxu0 %v6484
      %v6896 = vpop.f32.mrf.mxu0
      %v6897 = vadd.f32 %v6808, %v6896
      %v6898 = vpop.f32.mrf.mxu0
      %v6899 = vadd.f32 %v6810, %v6898
      %6900 = vmatmul.bf16.gmra.mxu0 %v6487
      %v6901 = vpop.f32.mrf.mxu0
      %v6902 = vadd.f32 %v6813, %v6901
      %v6903 = vpop.f32.mrf.mxu0
      %v6904 = vadd.f32 %v6815, %v6903
      %6905 = vmatmul.bf16.gmra.mxu0 %v6490
      %v6906 = vpop.f32.mrf.mxu0
      %v6907 = vadd.f32 %v6818, %v6906
      %v6908 = vpop.f32.mrf.mxu0
      %v6909 = vadd.f32 %v6820, %v6908
      %6910 = vmatmul.bf16.gmra.mxu0 %v6493
      %v6911 = vpop.f32.mrf.mxu0
      %v6912 = vadd.f32 %v6823, %v6911
      %v6913 = vpop.f32.mrf.mxu0
      %v6914 = vadd.f32 %v6825, %v6913
      %6915 = vmatmul.bf16.gmra.mxu0 %v6496
      %v6916 = vpop.f32.mrf.mxu0
      %v6917 = vadd.f32 %v6828, %v6916
      %v6918 = vpop.f32.mrf.mxu0
      %v6919 = vadd.f32 %v6830, %v6918
      %6920 = vmatmul.bf16.gmra.mxu0 %v6499
      %v6921 = vpop.f32.mrf.mxu0
      %v6922 = vadd.f32 %v6833, %v6921
      %v6923 = vpop.f32.mrf.mxu0
      %v6924 = vadd.f32 %v6835, %v6923
      %6925 = vmatmul.bf16.gmra.mxu0 %v6502
      %v6926 = vpop.f32.mrf.mxu0
      %v6927 = vadd.f32 %v6838, %v6926
      %v6928 = vpop.f32.mrf.mxu0
      %v6929 = vadd.f32 %v6840, %v6928
      %6930 = vmatmul.bf16.gmra.mxu0 %v6505
      %v6931 = vpop.f32.mrf.mxu0
      %v6932 = vadd.f32 %v6843, %v6931
      %v6933 = vpop.f32.mrf.mxu0
      %v6934 = vadd.f32 %v6845, %v6933
      %6935 = vmatmul.bf16.gmra.mxu0 %v6508
      %v6936 = vpop.f32.mrf.mxu0
      %v6937 = vadd.f32 %v6848, %v6936
      %v6938 = vpop.f32.mrf.mxu0
      %v6939 = vadd.f32 %v6850, %v6938
      %6940 = vmatmul.bf16.gmra.mxu0 %v6511
      %v6941 = vpop.f32.mrf.mxu0
      %v6942 = vadd.f32 %v6853, %v6941
      %v6943 = vpop.f32.mrf.mxu0
      %v6944 = vadd.f32 %v6855, %v6943
      %6945 = vmatmul.bf16.gmra.mxu0 %v6514
      %v6946 = vpop.f32.mrf.mxu0
      %v6947 = vadd.f32 %v6858, %v6946
      %v6948 = vpop.f32.mrf.mxu0
      %v6949 = vadd.f32 %v6860, %v6948
      %6950 = vmatmul.bf16.gmra.mxu0 %v6517
      %v6951 = vpop.f32.mrf.mxu0
      %v6952 = vadd.f32 %v6863, %v6951
      %v6953 = vpop.f32.mrf.mxu0
      %v6954 = vadd.f32 %v6865, %v6953
      %6955 = vmatmul.bf16.gmra.mxu0 %v6520
      %v6956 = vpop.f32.mrf.mxu0
      %v6957 = vadd.f32 %v6868, %v6956
      %v6958 = vpop.f32.mrf.mxu0
      %v6959 = vadd.f32 %v6870, %v6958
      %6960 = vmatmul.bf16.gmra.mxu0 %v6523
      %v6961 = vpop.f32.mrf.mxu0
      %v6962 = vadd.f32 %v6873, %v6961
      %v6963 = vpop.f32.mrf.mxu0
      %v6964 = vadd.f32 %v6875, %v6963
      %6965 = vmatmul.bf16.gmra.mxu0 %v6526
      %v6966 = vpop.f32.mrf.mxu0
      %v6967 = vadd.f32 %v6878, %v6966
      %v6968 = vpop.f32.mrf.mxu0
      %v6969 = vadd.f32 %v6880, %v6968
      %6970 = vmatmul.bf16.gmra.mxu0 %v6529
      %v6971 = vpop.f32.mrf.mxu0
      %v6972 = vadd.f32 %v6883, %v6971
      %v6973 = vpop.f32.mrf.mxu0
      %v6974 = vadd.f32 %v6885, %v6973
      %6975 = vdwg.mxu0
      %v6976 = vmax.f32 %v6897, 0.0
      %v6977 = vmax.f32 %v6899, 0.0
      %v6978 = vmax.f32 %v6902, 0.0
      %v6979 = vmax.f32 %v6904, 0.0
      %v6980 = vmax.f32 %v6907, 0.0
      %v6981 = vmax.f32 %v6909, 0.0
      %v6982 = vmax.f32 %v6912, 0.0
      %v6983 = vmax.f32 %v6914, 0.0
      %v6984 = vmax.f32 %v6917, 0.0
      %v6985 = vmax.f32 %v6919, 0.0
      %v6986 = vmax.f32 %v6922, 0.0
      %v6987 = vmax.f32 %v6924, 0.0
      %v6988 = vmax.f32 %v6927, 0.0
      %v6989 = vmax.f32 %v6929, 0.0
      %v6990 = vmax.f32 %v6932, 0.0
      %v6991 = vmax.f32 %v6934, 0.0
      %v6992 = vmax.f32 %v6937, 0.0
      %v6993 = vmax.f32 %v6939, 0.0
      %v6994 = vmax.f32 %v6942, 0.0
      %v6995 = vmax.f32 %v6944, 0.0
      %v6996 = vmax.f32 %v6947, 0.0
      %v6997 = vmax.f32 %v6949, 0.0
      %v6998 = vmax.f32 %v6952, 0.0
      %v6999 = vmax.f32 %v6954, 0.0
      %v7000 = vmax.f32 %v6957, 0.0
      %v7001 = vmax.f32 %v6959, 0.0
      %v7002 = vmax.f32 %v6962, 0.0
      %v7003 = vmax.f32 %v6964, 0.0
      %v7004 = vmax.f32 %v6967, 0.0
      %v7005 = vmax.f32 %v6969, 0.0
      %v7006 = vmax.f32 %v6972, 0.0
      %v7007 = vmax.f32 %v6974, 0.0
      %7040 = vrot.lane.b32.xlu0 %v6976, 64
      %v7041 = vpop.permute.xlu0 %7040
      %7042 = vrot.lane.b32.xlu0 %v6977, 64
      %v7043 = vpop.permute.xlu0 %7042
      %7044 = vrot.lane.b32.xlu0 %v6978, 64
      %v7045 = vpop.permute.xlu0 %7044
      %7046 = vrot.lane.b32.xlu0 %v6979, 64
      %v7047 = vpop.permute.xlu0 %7046
      %7048 = vrot.lane.b32.xlu0 %v6980, 64
      %v7049 = vpop.permute.xlu0 %7048
      %7050 = vrot.lane.b32.xlu0 %v6981, 64
      %v7051 = vpop.permute.xlu0 %7050
      %7052 = vrot.lane.b32.xlu0 %v6982, 64
      %v7053 = vpop.permute.xlu0 %7052
      %7054 = vrot.lane.b32.xlu0 %v6983, 64
      %v7055 = vpop.permute.xlu0 %7054
      %7056 = vrot.lane.b32.xlu0 %v6984, 64
      %v7057 = vpop.permute.xlu0 %7056
      %7058 = vrot.lane.b32.xlu0 %v6985, 64
      %v7059 = vpop.permute.xlu0 %7058
      %7060 = vrot.lane.b32.xlu0 %v6986, 64
      %v7061 = vpop.permute.xlu0 %7060
      %7062 = vrot.lane.b32.xlu0 %v6987, 64
      %v7063 = vpop.permute.xlu0 %7062
      %7064 = vrot.lane.b32.xlu0 %v6988, 64
      %v7065 = vpop.permute.xlu0 %7064
      %7066 = vrot.lane.b32.xlu0 %v6989, 64
      %v7067 = vpop.permute.xlu0 %7066
      %7068 = vrot.lane.b32.xlu0 %v6990, 64
      %v7069 = vpop.permute.xlu0 %7068
      %7070 = vrot.lane.b32.xlu0 %v6991, 64
      %v7071 = vpop.permute.xlu0 %7070
      %7072 = vrot.lane.b32.xlu0 %v6992, 64
      %v7073 = vpop.permute.xlu0 %7072
      %7074 = vrot.lane.b32.xlu0 %v6993, 64
      %v7075 = vpop.permute.xlu0 %7074
      %7076 = vrot.lane.b32.xlu0 %v6994, 64
      %v7077 = vpop.permute.xlu0 %7076
      %7078 = vrot.lane.b32.xlu0 %v6995, 64
      %v7079 = vpop.permute.xlu0 %7078
      %7080 = vrot.lane.b32.xlu0 %v6996, 64
      %v7081 = vpop.permute.xlu0 %7080
      %7082 = vrot.lane.b32.xlu0 %v6997, 64
      %v7083 = vpop.permute.xlu0 %7082
      %7084 = vrot.lane.b32.xlu0 %v6998, 64
      %v7085 = vpop.permute.xlu0 %7084
      %7086 = vrot.lane.b32.xlu0 %v6999, 64
      %v7087 = vpop.permute.xlu0 %7086
      %7088 = vrot.lane.b32.xlu0 %v7000, 64
      %v7089 = vpop.permute.xlu0 %7088
      %7090 = vrot.lane.b32.xlu0 %v7001, 64
      %v7091 = vpop.permute.xlu0 %7090
      %7092 = vrot.lane.b32.xlu0 %v7002, 64
      %v7093 = vpop.permute.xlu0 %7092
      %7094 = vrot.lane.b32.xlu0 %v7003, 64
      %v7095 = vpop.permute.xlu0 %7094
      %7096 = vrot.lane.b32.xlu0 %v7004, 64
      %v7097 = vpop.permute.xlu0 %7096
      %7098 = vrot.lane.b32.xlu0 %v7005, 64
      %v7099 = vpop.permute.xlu0 %7098
      %7100 = vrot.lane.b32.xlu0 %v7006, 64
      %v7101 = vpop.permute.xlu0 %7100
      %7102 = vrot.lane.b32.xlu0 %v7007, 64
      %v7103 = vpop.permute.xlu0 %7102
      %v7136 = vsel %vm1687, %v2009, %v7041
      %v7137 = vsel %vm1687, %v2012, %v7043
      %v7138 = vsel %vm1687, %v2032, %v7045
      %v7139 = vsel %vm1687, %v2035, %v7047
      %v7140 = vsel %vm1687, %v2055, %v7049
      %v7141 = vsel %vm1687, %v2058, %v7051
      %v7142 = vsel %vm1687, %v2078, %v7053
      %v7143 = vsel %vm1687, %v2081, %v7055
      %v7144 = vsel %vm1687, %v2101, %v7057
      %v7145 = vsel %vm1687, %v2104, %v7059
      %v7146 = vsel %vm1687, %v2124, %v7061
      %v7147 = vsel %vm1687, %v2127, %v7063
      %v7148 = vsel %vm1687, %v2147, %v7065
      %v7149 = vsel %vm1687, %v2150, %v7067
      %v7150 = vsel %vm1687, %v2170, %v7069
      %v7151 = vsel %vm1687, %v2173, %v7071
      %v7152 = vsel %vm1687, %v2193, %v7073
      %v7153 = vsel %vm1687, %v2196, %v7075
      %v7154 = vsel %vm1687, %v2216, %v7077
      %v7155 = vsel %vm1687, %v2219, %v7079
      %v7156 = vsel %vm1687, %v2239, %v7081
      %v7157 = vsel %vm1687, %v2242, %v7083
      %v7158 = vsel %vm1687, %v2262, %v7085
      %v7159 = vsel %vm1687, %v2265, %v7087
      %v7160 = vsel %vm1687, %v2285, %v7089
      %v7161 = vsel %vm1687, %v2288, %v7091
      %v7162 = vsel %vm1687, %v2308, %v7093
      %v7163 = vsel %vm1687, %v2311, %v7095
      %v7164 = vsel %vm1687, %v2331, %v7097
      %v7165 = vsel %vm1687, %v2334, %v7099
      %v7166 = vsel %vm1687, %v2354, %v7101
      %v7167 = vsel %vm1687, %v2357, %v7103
      %7168 = vst [vmem:[%s298] sm:$0xff] %v7136
      %7169 = vst [vmem:[%s298 + $0x8] sm:$0xff] %v7137
      %7170 = vst [vmem:[%s298 + $0x10] sm:$0xff] %v7138
      %7171 = vst [vmem:[%s298 + $0x18] sm:$0xff] %v7139
      %7172 = vst [vmem:[%s298 + $0x20] sm:$0xff] %v7140
      %7173 = vst [vmem:[%s298 + $0x28] sm:$0xff] %v7141
      %7174 = vst [vmem:[%s298 + $0x30] sm:$0xff] %v7142
      %7175 = vst [vmem:[%s298 + $0x38] sm:$0xff] %v7143
      %7176 = vst [vmem:[%s298 + $0x40] sm:$0xff] %v7144
      %7177 = vst [vmem:[%s298 + $0x48] sm:$0xff] %v7145
      %7178 = vst [vmem:[%s298 + $0x50] sm:$0xff] %v7146
      %7179 = vst [vmem:[%s298 + $0x58] sm:$0xff] %v7147
      %7180 = vst [vmem:[%s298 + $0x60] sm:$0xff] %v7148
      %7181 = vst [vmem:[%s298 + $0x68] sm:$0xff] %v7149
      %7182 = vst [vmem:[%s298 + $0x70] sm:$0xff] %v7150
      %7183 = vst [vmem:[%s298 + $0x78] sm:$0xff] %v7151
      %7184 = vst [vmem:[%s298 + $0x80] sm:$0xff] %v7152
      %7185 = vst [vmem:[%s298 + $0x88] sm:$0xff] %v7153
      %7186 = vst [vmem:[%s298 + $0x90] sm:$0xff] %v7154
      %7187 = vst [vmem:[%s298 + $0x98] sm:$0xff] %v7155
      %7188 = vst [vmem:[%s298 + $0xa0] sm:$0xff] %v7156
      %7189 = vst [vmem:[%s298 + $0xa8] sm:$0xff] %v7157
      %7190 = vst [vmem:[%s298 + $0xb0] sm:$0xff] %v7158
      %7191 = vst [vmem:[%s298 + $0xb8] sm:$0xff] %v7159
      %7192 = vst [vmem:[%s298 + $0xc0] sm:$0xff] %v7160
      %7193 = vst [vmem:[%s298 + $0xc8] sm:$0xff] %v7161
      %7194 = vst [vmem:[%s298 + $0xd0] sm:$0xff] %v7162
      %7195 = vst [vmem:[%s298 + $0xd8] sm:$0xff] %v7163
      %7196 = vst [vmem:[%s298 + $0xe0] sm:$0xff] %v7164
      %7197 = vst [vmem:[%s298 + $0xe8] sm:$0xff] %v7165
      %7198 = vst [vmem:[%s298 + $0xf0] sm:$0xff] %v7166
      %7199 = vst [vmem:[%s298 + $0xf8] sm:$0xff] %v7167
      %p7200 = scmp.lt.s32.totalorder %s18, 1
      %s7201 = scalar_select %p7200, %s18, 1
      %s7202 = smul.addr %s7201, 32
      %s7203 = smul.addr %s7202, 8
      %s7204 = scalar_lea.vmem %s7, %s7203
      // Predicated region
      $region49: #{dcab_forward.1} parent=47 // pred_check
        %p7205 = pneg %p193
      $region50: #{dcab_forward.1} parent=47 // pred_check_branch
        %7207 = sbr.rel (%p7205) target = $region52
      $region51: #{dcab_forward.1} parent=47 // pred_region
        _
      $region52: #{dcab_forward.1} parent=47 // pred_fallthru
        _
    $region48: #{dcab_forward.1} parent=5 // pred_fallthru
      _
    %p7208 = scmp.le.s32.totalorder 2, %s13
    // Predicated region
    $region53: #{dcab_forward.1} parent=5 // pred_check
      %p7209 = pneg %p7208
    $region54: #{dcab_forward.1} parent=5 // pred_check_branch
      %7211 = sbr.rel (%p7209) target = $region56
    $region55: #{dcab_forward.1} parent=5 // pred_region
      %s7212 = ssub.s32 %s13, 2
      // Predicated region
      $region57: #{dcab_forward.1} parent=55 // pred_check
        %p7213 = pneg %p199
      $region58: #{dcab_forward.1} parent=55 // pred_check_branch
        %7215 = sbr.rel (%p7213) target = $region60
      $region59: #{dcab_forward.1} parent=55 // pred_region
        %p7216 = scmp.lt.s32.totalorder %s19, 1
        %s7217 = scalar_select %p7216, %s19, 1
        %s7218 = smul.addr %s7217, 32
        %s7219 = smul.addr %s7218, 8
        %s7220 = scalar_lea.vmem %s7, %s7219
      $region60: #{dcab_forward.1} parent=55 // pred_fallthru
        _
    $region56: #{dcab_forward.1} parent=5 // pred_fallthru
      _
  $region6: #{dcab_forward.1} parent=0 // loop_footer
    %s17 = sadd.s32 1, %s13
  $region7: #{dcab_forward.1} parent=0 // loop_footer_branch
    %12 = sbr.rel target = $region3
  $region8: #{dcab_forward.1} parent=0 // loop_exit
    _

</llo_original>
